<compile_context>
chip_gen: v6e
topology: v6e:2x2x1
jax: 0.10.0
libtpu: 0.0.40
codegen_flags: <defaults>
</compile_context>

<pallas_src>
import functools

import jax
import jax.numpy as jnp
from jax.experimental import pallas as pl
from jax.experimental.pallas import tpu as pltpu


# ----------------------------------------------------------------------------
# Pallas kernel: full DPCNN trunk + classifier head for one batch tile.
# ----------------------------------------------------------------------------
def _dpcnn_kernel(x_ref, wr_ref, br_ref, wc_ref, bc_ref, wfc_ref, bfc_ref,
                  out_ref, gather_ref, *, S, L, b_tile, mm_dtype):
    """x_ref: (b_tile*S, E) stacked slab; out_ref: (b_tile, C) logits.

    Slab layout: example e owns slot rows [e*S_cur, (e+1)*S_cur); live rows are
    slot positions 0..H-1.  CORRECTNESS INVARIANT: shift() rotates the WHOLE slab,
    so shifted reads may wrap into a neighbouring example's slot; every such read
    that feeds a *valid* output row must land on a zero row.  This holds because
    (a) conv/pool inputs are always masked first (slot rows >= H zeroed) and
    (b) S_cur >= H + 1 at every level (asserted at trace time below).
    Do not reorder masks relative to shifts.
    """
    f32 = jnp.float32
    R0 = b_tile * S

    x = x_ref[...].astype(f32)
    wr = wr_ref[...]
    br = br_ref[...].astype(f32)
    wc = wc_ref[...]
    bc = bc_ref[...].astype(f32)
    wfc = wfc_ref[...]
    bfc = bfc_ref[...].astype(f32)

    def dot(a, w):                       # MXU matmul, f32 accumulation
        if mm_dtype is not None:
            a = a.astype(mm_dtype)
            w = w.astype(mm_dtype)
        return jnp.dot(a, w, preferred_element_type=f32)

    def shift(v, k):                     # shift(v, k)[r] == v[(r + k) % rows]
        rows = v.shape[0]
        return pltpu.roll(v, shift=(-k) % rows, axis=0)

    def slot_mask(rows, s_cur, h):       # (rows, 1) bool, True on live slot rows
        pos = jax.lax.broadcasted_iota(jnp.int32, (rows, 1), 0) % s_cur
        return pos < h

    def conv3(a):                        # pad1 -> (already relu'd+masked) -> conv(3,1)
        u = jnp.concatenate([shift(a, -1), a, shift(a, 1)], axis=1)   # (rows, 3F)
        return dot(u, wc) + bc

    # ---- conv_region: (rows, E) -> (rows, F); live rows h < L-2 ----------------
    u0 = jnp.concatenate([x, shift(x, 1), shift(x, 2)], axis=1)       # (rows, 3E)
    y = dot(u0, wr) + br

    H, S_cur, rows = L - 2, S, R0
    assert S_cur >= H + 1
    m = slot_mask(rows, S_cur, H)        # hoisted: reused for both convs + pooling

    # ---- trunk: two (pad1, relu, conv) layers ----------------------------------
    y = conv3(jnp.where(m, jnp.maximum(y, 0.0), 0.0))
    y = conv3(jnp.where(m, jnp.maximum(y, 0.0), 0.0))

    # ---- pyramid: `while x.size()[2] > 2` (H, S_cur are Python ints -> unrolled)
    while H > 2:
        assert S_cur >= H + 1 and S_cur % 2 == 0
        # pad2 + MaxPool2d((3,1), stride=2): pooled output h sits at slot row 2h.
        ym = jnp.where(m, y, 0.0)
        pooled = jnp.maximum(ym, jnp.maximum(shift(ym, 1), shift(ym, 2)))
        # Compact: keep even rows only (stride-2 sublane gather through scratch):
        # slot height, slab height and all subsequent per-level work halve.
        gather_ref[pl.ds(0, rows), :] = pooled
        rows //= 2
        S_cur //= 2
        H = (H - 2) // 2 + 1
        assert S_cur >= H + 1
        px = gather_ref[pl.ds(0, rows, stride=2), :]                  # (rows, F)
        m = slot_mask(rows, S_cur, H)    # hoisted: reused by both convs (+ next ym)
        z = conv3(jnp.where(m, jnp.maximum(px, 0.0), 0.0))
        z = conv3(jnp.where(m, jnp.maximum(z, 0.0), 0.0))
        y = z + px                                                    # residual

    # ---- head: squeeze + fc (dense (b_tile, F) @ (F, C)) -----------------------
    assert H == 1
    if S_cur > 1:
        gather_ref[pl.ds(0, rows), :] = y
        feat = gather_ref[pl.ds(0, b_tile, stride=S_cur), :]          # slot row 0
    else:
        feat = y
    out_ref[...] = (dot(feat, wfc) + bfc).astype(out_ref.dtype)


# ----------------------------------------------------------------------------
# Wrapper
# ----------------------------------------------------------------------------
def _final_height(L):
    h = L - 2
    while h > 2:
        h = (h - 2) // 2 + 1
    return h


def dpcnn_forward(x_emb, wr, br, wc, bc, wfc, bfc, *, b_tile=None,
                  use_bf16_matmul=False):
    B, L, E = x_emb.shape
    F = wr.shape[-1]
    C = wfc.shape[-1]
    assert L >= 8, f"sequence length {L} too short for DPCNN pyramid"
    # torch's final .squeeze() + fc requires the spatial dim to collapse to 1
    assert _final_height(L) == 1, \
        f"sequence length {L} does not collapse to height 1 ({_final_height(L)})"

    S = pl.next_power_of_2(L)            # per-example slot height (power of two)

    # ---- batch tile selection ---------------------------------------------------
    # b_tile must be a multiple of 8 (sublane-aligned (b_tile, C) output block).
    # Stay under a VMEM budget; prefer >= 2 grid steps when the batch allows so a
    # 2-TensorCore chip (v7x) can shard the "parallel" batch axis; on single-TC
    # chips the extra grid step costs ~0.35 us.
    per_ex_bytes = 4 * S * (4 * E + 12 * F)              # coarse live-f32 estimate
    budget = 24 * 2 ** 20
    cap = max(8, (budget // per_ex_bytes) // 8 * 8)
    B8 = -(-B // 8) * 8
    if b_tile is None:
        half = ((B8 // 2 + 7) // 8) * 8 if B8 >= 16 else B8
        b_tile = min(cap, max(8, half))
    b_tile = max(8, (b_tile // 8) * 8)
    n_tiles = -(-B // b_tile)
    B_pad = n_tiles * b_tile

    est_bytes = b_tile * per_ex_bytes + 4 * (3 * E * F + 3 * F * F + F * C + 2 * F + C)
    vmem_limit = int(min(48 * 2 ** 20, max(32 * 2 ** 20, 3 * est_bytes)))

    # ---- host-side layout prep (trivial XLA ops) --------------------------------
    in_dtype = jnp.bfloat16 if use_bf16_matmul else jnp.float32
    x = x_emb.astype(jnp.float32)
    if S != L:
        x = jnp.pad(x, ((0, 0), (0, S - L), (0, 0)))     # zero tail rows per slot
    if B_pad != B:
        x = jnp.pad(x, ((0, B_pad - B), (0, 0), (0, 0)))
    x_slab = x.reshape(B_pad * S, E).astype(in_dtype)    # stacked slab
    wr_cat = wr.astype(jnp.float32).reshape(3 * E, F).astype(in_dtype)
    wc_cat = wc.astype(jnp.float32).reshape(3 * F, F).astype(in_dtype)
    wfc_m = wfc.astype(in_dtype)

    rows = b_tile * S
    kernel = functools.partial(
        _dpcnn_kernel, S=S, L=L, b_tile=b_tile,
        mm_dtype=(jnp.bfloat16 if use_bf16_matmul else None))

    out = pl.pallas_call(
        kernel,
        out_shape=jax.ShapeDtypeStruct((B_pad, C), jnp.float32),
        grid=(n_tiles,),
        in_specs=[
            pl.BlockSpec((rows, E), lambda i: (i, 0)),       # stacked embeddings
            pl.BlockSpec((3 * E, F), lambda i: (0, 0)),      # conv_region weight
            pl.BlockSpec((1, F), lambda i: (0, 0)),          # conv_region bias
            pl.BlockSpec((3 * F, F), lambda i: (0, 0)),      # conv weight
            pl.BlockSpec((1, F), lambda i: (0, 0)),          # conv bias
            pl.BlockSpec((F, C), lambda i: (0, 0)),          # fc weight
            pl.BlockSpec((1, C), lambda i: (0, 0)),          # fc bias
        ],
        out_specs=pl.BlockSpec((b_tile, C), lambda i: (i, 0)),
        scratch_shapes=[pltpu.VMEM((rows, F), jnp.float32)], # gather scratch
        compiler_params=pltpu.CompilerParams(
            dimension_semantics=("parallel",),
            vmem_limit_bytes=vmem_limit),
    )(x_slab, wr_cat, br.astype(jnp.float32), wc_cat, bc.astype(jnp.float32),
      wfc_m, bfc.astype(jnp.float32))

    return out[:B]


# ----------------------------------------------------------------------------
# Pure-JAX reference (straightforward per-example math, no Pallas).
# ----------------------------------------------------------------------------
def dpcnn_reference(x_emb, wr, br, wc, bc, wfc, bfc):
    F = wr.shape[-1]

    def conv_region(v):
        h = v.shape[0] - 2
        return sum(v[k:k + h] @ wr[k] for k in range(3)) + br

    def conv3(v):
        h = v.shape[0] - 2
        return sum(v[k:k + h] @ wc[k] for k in range(3)) + bc

    def pad1(v):
        z = jnp.zeros((1, F), v.dtype)
        return jnp.concatenate([z, v, z], axis=0)

    def pad2(v):
        z = jnp.zeros((1, F), v.dtype)
        return jnp.concatenate([v, z], axis=0)

    def max_pool3_s2(v):
        h_out = (v.shape[0] - 3) // 2 + 1
        rows = [jnp.max(v[2 * i:2 * i + 3], axis=0, keepdims=True)
                for i in range(h_out)]
        return jnp.concatenate(rows, axis=0)

    def one(x):
        y = conv_region(x)
        y = conv3(jnp.maximum(pad1(y), 0.0))
        y = conv3(jnp.maximum(pad1(y), 0.0))
        while y.shape[0] > 2:
            px = max_pool3_s2(pad2(y))
            z = conv3(jnp.maximum(pad1(px), 0.0))
            z = conv3(jnp.maximum(pad1(z), 0.0))
            y = z + px
        return (y[0:1] @ wfc + bfc)[0]

    return jax.vmap(one)(x_emb)


# ----------------------------------------------------------------------------
if __name__ == "__main__":
    # Small config consistent with the module's forward:
    #   batch=16 (2 grid tiles of 8), seq_len=16 (14 -> 7 -> 3 -> 1), embed=32,
    #   num_filters=32, num_classes=8, vocab=50.
    B, L, E, F, C, VOCAB = 16, 16, 32, 32, 8, 50

    key = jax.random.PRNGKey(0)
    k_tab, k_ids, k_wr, k_br, k_wc, k_bc, k_wf, k_bf = jax.random.split(key, 8)

    # TODO(synk): config.embedding is an external frozen encoder (e.g. BERT);
    # approximated here as a frozen token-embedding lookup scaled by the mask.
    embed_table = jax.random.normal(k_tab, (VOCAB, E), jnp.float32) * 0.5
    emb = jax.random.randint(k_ids, (B, L), 0, VOCAB, jnp.int32)     # token ids
    mask = jnp.ones((B, L), jnp.float32).at[:, L - 2:].set(0.0)      # attention mask
    x_emb = embed_table[emb] * mask[:, :, None]                      # (B, L, E)

    # Parameters (deterministic init). Weight layouts chosen for matmul form:
    #   wr[k][e, f] == torch conv_region.weight[f, 0, k, e]
    #   wc[k][c, f] == torch conv.weight[f, c, k, 0]
    #   wfc[f, c]   == torch fc.weight[c, f]
    wr = jax.random.normal(k_wr, (3, E, F), jnp.float32) * 0.05
    br = jax.random.normal(k_br, (1, F), jnp.float32) * 0.05
    wc = jax.random.normal(k_wc, (3, F, F), jnp.float32) * 0.05
    bc = jax.random.normal(k_bc, (1, F), jnp.float32) * 0.05
    wfc = jax.random.normal(k_wf, (F, C), jnp.float32) * 0.05
    bfc = jax.random.normal(k_bf, (1, C), jnp.float32) * 0.05

    out = dpcnn_forward(x_emb, wr, br, wc, bc, wfc, bfc)   # default b_tile policy
    out = jax.block_until_ready(out)

    ref = jax.block_until_ready(
        dpcnn_reference(x_emb, wr, br, wc, bc, wfc, bfc))

    assert out.shape == (B, C), out.shape
    assert jnp.allclose(out, ref, atol=1e-3, rtol=1e-3), (out, ref)
    print("KERNEL_OK")
</pallas_src>

<mosaic_0001>
module attributes {stable_mosaic.version = 11 : i64} {
  func.func @_dpcnn_kernel(%arg0: i32, %arg1: memref<128x32xf32, #tpu.memory_space<vmem>>, %arg2: memref<96x32xf32, #tpu.memory_space<vmem>>, %arg3: memref<1x32xf32, #tpu.memory_space<vmem>>, %arg4: memref<96x32xf32, #tpu.memory_space<vmem>>, %arg5: memref<1x32xf32, #tpu.memory_space<vmem>>, %arg6: memref<32x8xf32, #tpu.memory_space<vmem>>, %arg7: memref<1x8xf32, #tpu.memory_space<vmem>>, %arg8: memref<8x8xf32, #tpu.memory_space<vmem>>, %arg9: memref<128x32xf32, #tpu.memory_space<vmem>>) attributes {dimension_semantics = [#tpu.dimension_semantics<parallel>], iteration_bounds = array<i64: 2>, scalar_prefetch = 0 : i64, scratch_operands = 1 : i64, tpu.core_type = #tpu.core_type<tc>, window_params = [{transform_indices = @transform_0, window_bounds = array<i64: 128, 32>}, {pipeline_mode = #tpu.pipeline_mode<synchronous>, transform_indices = @transform_1, window_bounds = array<i64: 96, 32>}, {pipeline_mode = #tpu.pipeline_mode<synchronous>, transform_indices = @transform_2, window_bounds = array<i64: 1, 32>}, {pipeline_mode = #tpu.pipeline_mode<synchronous>, transform_indices = @transform_3, window_bounds = array<i64: 96, 32>}, {pipeline_mode = #tpu.pipeline_mode<synchronous>, transform_indices = @transform_4, window_bounds = array<i64: 1, 32>}, {pipeline_mode = #tpu.pipeline_mode<synchronous>, transform_indices = @transform_5, window_bounds = array<i64: 32, 8>}, {pipeline_mode = #tpu.pipeline_mode<synchronous>, transform_indices = @transform_6, window_bounds = array<i64: 1, 8>}, {transform_indices = @transform_7, window_bounds = array<i64: 8, 8>}]} {
    %c0 = arith.constant 0 : index
    %c0_0 = arith.constant 0 : index
    %0 = vector.load %arg1[%c0, %c0_0] : memref<128x32xf32, #tpu.memory_space<vmem>>, vector<128x32xf32>
    %c0_1 = arith.constant 0 : index
    %c0_2 = arith.constant 0 : index
    %1 = vector.load %arg2[%c0_1, %c0_2] : memref<96x32xf32, #tpu.memory_space<vmem>>, vector<96x32xf32>
    %c0_3 = arith.constant 0 : index
    %c0_4 = arith.constant 0 : index
    %2 = vector.load %arg3[%c0_3, %c0_4] : memref<1x32xf32, #tpu.memory_space<vmem>>, vector<1x32xf32>
    %c0_5 = arith.constant 0 : index
    %c0_6 = arith.constant 0 : index
    %3 = vector.load %arg4[%c0_5, %c0_6] : memref<96x32xf32, #tpu.memory_space<vmem>>, vector<96x32xf32>
    %c0_7 = arith.constant 0 : index
    %c0_8 = arith.constant 0 : index
    %4 = vector.load %arg5[%c0_7, %c0_8] : memref<1x32xf32, #tpu.memory_space<vmem>>, vector<1x32xf32>
    %c0_9 = arith.constant 0 : index
    %c0_10 = arith.constant 0 : index
    %5 = vector.load %arg6[%c0_9, %c0_10] : memref<32x8xf32, #tpu.memory_space<vmem>>, vector<32x8xf32>
    %c0_11 = arith.constant 0 : index
    %c0_12 = arith.constant 0 : index
    %6 = vector.load %arg7[%c0_11, %c0_12] : memref<1x8xf32, #tpu.memory_space<vmem>>, vector<1x8xf32>
    %c127_i32 = arith.constant 127 : i32
    %7 = tpu.dynamic_rotate %0 by %c127_i32 dim 0 : vector<128x32xf32>, i32 -> vector<128x32xf32>
    %c126_i32 = arith.constant 126 : i32
    %8 = tpu.dynamic_rotate %0 by %c126_i32 dim 0 : vector<128x32xf32>, i32 -> vector<128x32xf32>
    %9 = tpu.concatenate %0, %7, %8 in 1 : vector<128x32xf32>, vector<128x32xf32>, vector<128x32xf32> -> vector<128x96xf32>
    %cst = arith.constant dense<0.000000e+00> : vector<128x32xf32>
    %10 = tpu.matmul %9, %1, %cst {dimension_numbers = #tpu.dot_dimension_numbers<[1], [0], [0], [1], [0, 0, 1, 1], [], []>} : vector<128x96xf32>, vector<96x32xf32>, vector<128x32xf32> -> vector<128x32xf32>
    %11 = vector.broadcast %2 : vector<1x32xf32> to vector<128x32xf32>
    %12 = arith.addf %10, %11 : vector<128x32xf32>
    %13 = tpu.iota {dimensions = array<i32: 0>} : vector<128x1xi32>
    %c16_i32 = arith.constant 16 : i32
    %c0_i32 = arith.constant 0 : i32
    %14 = arith.cmpi eq, %c16_i32, %c0_i32 : i32
    %c1_i32 = arith.constant 1 : i32
    %15 = arith.select %14, %c1_i32, %c16_i32 : i32
    %16 = vector.broadcast %15 : i32 to vector<128x1xi32>
    %17 = arith.remsi %13, %16 : vector<128x1xi32>
    %c0_i32_13 = arith.constant 0 : i32
    %18 = vector.broadcast %c0_i32_13 : i32 to vector<128x1xi32>
    %19 = arith.cmpi ne, %17, %18 : vector<128x1xi32>
    %c0_i32_14 = arith.constant 0 : i32
    %20 = vector.broadcast %c0_i32_14 : i32 to vector<128x1xi32>
    %21 = arith.cmpi slt, %17, %20 : vector<128x1xi32>
    %c0_i32_15 = arith.constant 0 : i32
    %22 = arith.cmpi slt, %15, %c0_i32_15 : i32
    %23 = vector.broadcast %22 : i1 to vector<128x1xi1>
    %24 = vector.broadcast %23 : vector<128x1xi1> to vector<128x1xi1>
    %25 = arith.xori %21, %24 : vector<128x1xi1>
    %26 = arith.andi %25, %19 : vector<128x1xi1>
    %27 = vector.broadcast %15 : i32 to vector<128x1xi32>
    %28 = arith.addi %17, %27 : vector<128x1xi32>
    %29 = arith.select %26, %28, %17 : vector<128x1xi1>, vector<128x1xi32>
    %c14_i32 = arith.constant 14 : i32
    %30 = vector.broadcast %c14_i32 : i32 to vector<128x1xi32>
    %31 = arith.cmpi slt, %29, %30 : vector<128x1xi32>
    %cst_16 = arith.constant 0.000000e+00 : f32
    %32 = vector.broadcast %cst_16 : f32 to vector<128x32xf32>
    %33 = arith.maximumf %12, %32 : vector<128x32xf32>
    %cst_17 = arith.constant 0.000000e+00 : f32
    %34 = vector.shape_cast %31 : vector<128x1xi1> to vector<128x1xi1>
    %35 = vector.broadcast %34 : vector<128x1xi1> to vector<128x32xi1>
    %36 = vector.broadcast %cst_17 : f32 to vector<128x32xf32>
    %37 = arith.select %35, %33, %36 : vector<128x32xi1>, vector<128x32xf32>
    %c1_i32_18 = arith.constant 1 : i32
    %38 = tpu.dynamic_rotate %37 by %c1_i32_18 dim 0 : vector<128x32xf32>, i32 -> vector<128x32xf32>
    %c127_i32_19 = arith.constant 127 : i32
    %39 = tpu.dynamic_rotate %37 by %c127_i32_19 dim 0 : vector<128x32xf32>, i32 -> vector<128x32xf32>
    %40 = tpu.concatenate %38, %37, %39 in 1 : vector<128x32xf32>, vector<128x32xf32>, vector<128x32xf32> -> vector<128x96xf32>
    %cst_20 = arith.constant dense<0.000000e+00> : vector<128x32xf32>
    %41 = tpu.matmul %40, %3, %cst_20 {dimension_numbers = #tpu.dot_dimension_numbers<[1], [0], [0], [1], [0, 0, 1, 1], [], []>} : vector<128x96xf32>, vector<96x32xf32>, vector<128x32xf32> -> vector<128x32xf32>
    %42 = vector.broadcast %4 : vector<1x32xf32> to vector<128x32xf32>
    %43 = arith.addf %41, %42 : vector<128x32xf32>
    %cst_21 = arith.constant 0.000000e+00 : f32
    %44 = vector.broadcast %cst_21 : f32 to vector<128x32xf32>
    %45 = arith.maximumf %43, %44 : vector<128x32xf32>
    %cst_22 = arith.constant 0.000000e+00 : f32
    %46 = vector.shape_cast %31 : vector<128x1xi1> to vector<128x1xi1>
    %47 = vector.broadcast %46 : vector<128x1xi1> to vector<128x32xi1>
    %48 = vector.broadcast %cst_22 : f32 to vector<128x32xf32>
    %49 = arith.select %47, %45, %48 : vector<128x32xi1>, vector<128x32xf32>
    %c1_i32_23 = arith.constant 1 : i32
    %50 = tpu.dynamic_rotate %49 by %c1_i32_23 dim 0 : vector<128x32xf32>, i32 -> vector<128x32xf32>
    %c127_i32_24 = arith.constant 127 : i32
    %51 = tpu.dynamic_rotate %49 by %c127_i32_24 dim 0 : vector<128x32xf32>, i32 -> vector<128x32xf32>
    %52 = tpu.concatenate %50, %49, %51 in 1 : vector<128x32xf32>, vector<128x32xf32>, vector<128x32xf32> -> vector<128x96xf32>
    %cst_25 = arith.constant dense<0.000000e+00> : vector<128x32xf32>
    %53 = tpu.matmul %52, %3, %cst_25 {dimension_numbers = #tpu.dot_dimension_numbers<[1], [0], [0], [1], [0, 0, 1, 1], [], []>} : vector<128x96xf32>, vector<96x32xf32>, vector<128x32xf32> -> vector<128x32xf32>
    %54 = vector.broadcast %4 : vector<1x32xf32> to vector<128x32xf32>
    %55 = arith.addf %53, %54 : vector<128x32xf32>
    %cst_26 = arith.constant 0.000000e+00 : f32
    %56 = vector.shape_cast %31 : vector<128x1xi1> to vector<128x1xi1>
    %57 = vector.broadcast %56 : vector<128x1xi1> to vector<128x32xi1>
    %58 = vector.broadcast %cst_26 : f32 to vector<128x32xf32>
    %59 = arith.select %57, %55, %58 : vector<128x32xi1>, vector<128x32xf32>
    %c127_i32_27 = arith.constant 127 : i32
    %60 = tpu.dynamic_rotate %59 by %c127_i32_27 dim 0 : vector<128x32xf32>, i32 -> vector<128x32xf32>
    %c126_i32_28 = arith.constant 126 : i32
    %61 = tpu.dynamic_rotate %59 by %c126_i32_28 dim 0 : vector<128x32xf32>, i32 -> vector<128x32xf32>
    %62 = arith.maximumf %60, %61 : vector<128x32xf32>
    %63 = arith.maximumf %59, %62 : vector<128x32xf32>
    %c0_29 = arith.constant 0 : index
    %c0_30 = arith.constant 0 : index
    %64 = vector.load %arg9[%c0_29, %c0_30] : memref<128x32xf32, #tpu.memory_space<vmem>>, vector<128x32xf32>
    tpu.vector_store %arg9[%c0_29, %c0_30], %63 {strides = array<i32>} : memref<128x32xf32, #tpu.memory_space<vmem>>, vector<128x32xf32>,
    %c0_31 = arith.constant 0 : index
    %c0_32 = arith.constant 0 : index
    %65 = tpu.strided_load %arg9[%c0_31, %c0_32] {strides = array<i32: 2, 1>} : memref<128x32xf32, #tpu.memory_space<vmem>>, vector<64x32xf32>
    %66 = tpu.iota {dimensions = array<i32: 0>} : vector<64x1xi32>
    %c8_i32 = arith.constant 8 : i32
    %c0_i32_33 = arith.constant 0 : i32
    %67 = arith.cmpi eq, %c8_i32, %c0_i32_33 : i32
    %c1_i32_34 = arith.constant 1 : i32
    %68 = arith.select %67, %c1_i32_34, %c8_i32 : i32
    %69 = vector.broadcast %68 : i32 to vector<64x1xi32>
    %70 = arith.remsi %66, %69 : vector<64x1xi32>
    %c0_i32_35 = arith.constant 0 : i32
    %71 = vector.broadcast %c0_i32_35 : i32 to vector<64x1xi32>
    %72 = arith.cmpi ne, %70, %71 : vector<64x1xi32>
    %c0_i32_36 = arith.constant 0 : i32
    %73 = vector.broadcast %c0_i32_36 : i32 to vector<64x1xi32>
    %74 = arith.cmpi slt, %70, %73 : vector<64x1xi32>
    %c0_i32_37 = arith.constant 0 : i32
    %75 = arith.cmpi slt, %68, %c0_i32_37 : i32
    %76 = vector.broadcast %75 : i1 to vector<64x1xi1>
    %77 = vector.broadcast %76 : vector<64x1xi1> to vector<64x1xi1>
    %78 = arith.xori %74, %77 : vector<64x1xi1>
    %79 = arith.andi %78, %72 : vector<64x1xi1>
    %80 = vector.broadcast %68 : i32 to vector<64x1xi32>
    %81 = arith.addi %70, %80 : vector<64x1xi32>
    %82 = arith.select %79, %81, %70 : vector<64x1xi1>, vector<64x1xi32>
    %c7_i32 = arith.constant 7 : i32
    %83 = vector.broadcast %c7_i32 : i32 to vector<64x1xi32>
    %84 = arith.cmpi slt, %82, %83 : vector<64x1xi32>
    %cst_38 = arith.constant 0.000000e+00 : f32
    %85 = vector.broadcast %cst_38 : f32 to vector<64x32xf32>
    %86 = arith.maximumf %65, %85 : vector<64x32xf32>
    %cst_39 = arith.constant 0.000000e+00 : f32
    %87 = vector.shape_cast %84 : vector<64x1xi1> to vector<64x1xi1>
    %88 = vector.broadcast %87 : vector<64x1xi1> to vector<64x32xi1>
    %89 = vector.broadcast %cst_39 : f32 to vector<64x32xf32>
    %90 = arith.select %88, %86, %89 : vector<64x32xi1>, vector<64x32xf32>
    %c1_i32_40 = arith.constant 1 : i32
    %91 = tpu.dynamic_rotate %90 by %c1_i32_40 dim 0 : vector<64x32xf32>, i32 -> vector<64x32xf32>
    %c63_i32 = arith.constant 63 : i32
    %92 = tpu.dynamic_rotate %90 by %c63_i32 dim 0 : vector<64x32xf32>, i32 -> vector<64x32xf32>
    %93 = tpu.concatenate %91, %90, %92 in 1 : vector<64x32xf32>, vector<64x32xf32>, vector<64x32xf32> -> vector<64x96xf32>
    %cst_41 = arith.constant dense<0.000000e+00> : vector<64x32xf32>
    %94 = tpu.matmul %93, %3, %cst_41 {dimension_numbers = #tpu.dot_dimension_numbers<[1], [0], [0], [1], [0, 0, 1, 1], [], []>} : vector<64x96xf32>, vector<96x32xf32>, vector<64x32xf32> -> vector<64x32xf32>
    %95 = vector.broadcast %4 : vector<1x32xf32> to vector<64x32xf32>
    %96 = arith.addf %94, %95 : vector<64x32xf32>
    %cst_42 = arith.constant 0.000000e+00 : f32
    %97 = vector.broadcast %cst_42 : f32 to vector<64x32xf32>
    %98 = arith.maximumf %96, %97 : vector<64x32xf32>
    %cst_43 = arith.constant 0.000000e+00 : f32
    %99 = vector.shape_cast %84 : vector<64x1xi1> to vector<64x1xi1>
    %100 = vector.broadcast %99 : vector<64x1xi1> to vector<64x32xi1>
    %101 = vector.broadcast %cst_43 : f32 to vector<64x32xf32>
    %102 = arith.select %100, %98, %101 : vector<64x32xi1>, vector<64x32xf32>
    %c1_i32_44 = arith.constant 1 : i32
    %103 = tpu.dynamic_rotate %102 by %c1_i32_44 dim 0 : vector<64x32xf32>, i32 -> vector<64x32xf32>
    %c63_i32_45 = arith.constant 63 : i32
    %104 = tpu.dynamic_rotate %102 by %c63_i32_45 dim 0 : vector<64x32xf32>, i32 -> vector<64x32xf32>
    %105 = tpu.concatenate %103, %102, %104 in 1 : vector<64x32xf32>, vector<64x32xf32>, vector<64x32xf32> -> vector<64x96xf32>
    %cst_46 = arith.constant dense<0.000000e+00> : vector<64x32xf32>
    %106 = tpu.matmul %105, %3, %cst_46 {dimension_numbers = #tpu.dot_dimension_numbers<[1], [0], [0], [1], [0, 0, 1, 1], [], []>} : vector<64x96xf32>, vector<96x32xf32>, vector<64x32xf32> -> vector<64x32xf32>
    %107 = vector.broadcast %4 : vector<1x32xf32> to vector<64x32xf32>
    %108 = arith.addf %106, %107 : vector<64x32xf32>
    %109 = arith.addf %108, %65 : vector<64x32xf32>
    %cst_47 = arith.constant 0.000000e+00 : f32
    %110 = vector.shape_cast %84 : vector<64x1xi1> to vector<64x1xi1>
    %111 = vector.broadcast %110 : vector<64x1xi1> to vector<64x32xi1>
    %112 = vector.broadcast %cst_47 : f32 to vector<64x32xf32>
    %113 = arith.select %111, %109, %112 : vector<64x32xi1>, vector<64x32xf32>
    %c63_i32_48 = arith.constant 63 : i32
    %114 = tpu.dynamic_rotate %113 by %c63_i32_48 dim 0 : vector<64x32xf32>, i32 -> vector<64x32xf32>
    %c62_i32 = arith.constant 62 : i32
    %115 = tpu.dynamic_rotate %113 by %c62_i32 dim 0 : vector<64x32xf32>, i32 -> vector<64x32xf32>
    %116 = arith.maximumf %114, %115 : vector<64x32xf32>
    %117 = arith.maximumf %113, %116 : vector<64x32xf32>
    %c0_49 = arith.constant 0 : index
    %c0_50 = arith.constant 0 : index
    %118 = vector.load %arg9[%c0_49, %c0_50] : memref<128x32xf32, #tpu.memory_space<vmem>>, vector<64x32xf32>
    tpu.vector_store %arg9[%c0_49, %c0_50], %117 {strides = array<i32>} : memref<128x32xf32, #tpu.memory_space<vmem>>, vector<64x32xf32>,
    %c0_51 = arith.constant 0 : index
    %c0_52 = arith.constant 0 : index
    %119 = tpu.strided_load %arg9[%c0_51, %c0_52] {strides = array<i32: 2, 1>} : memref<128x32xf32, #tpu.memory_space<vmem>>, vector<32x32xf32>
    %120 = tpu.iota {dimensions = array<i32: 0>} : vector<32x1xi32>
    %c4_i32 = arith.constant 4 : i32
    %c0_i32_53 = arith.constant 0 : i32
    %121 = arith.cmpi eq, %c4_i32, %c0_i32_53 : i32
    %c1_i32_54 = arith.constant 1 : i32
    %122 = arith.select %121, %c1_i32_54, %c4_i32 : i32
    %123 = vector.broadcast %122 : i32 to vector<32x1xi32>
    %124 = arith.remsi %120, %123 : vector<32x1xi32>
    %c0_i32_55 = arith.constant 0 : i32
    %125 = vector.broadcast %c0_i32_55 : i32 to vector<32x1xi32>
    %126 = arith.cmpi ne, %124, %125 : vector<32x1xi32>
    %c0_i32_56 = arith.constant 0 : i32
    %127 = vector.broadcast %c0_i32_56 : i32 to vector<32x1xi32>
    %128 = arith.cmpi slt, %124, %127 : vector<32x1xi32>
    %c0_i32_57 = arith.constant 0 : i32
    %129 = arith.cmpi slt, %122, %c0_i32_57 : i32
    %130 = vector.broadcast %129 : i1 to vector<32x1xi1>
    %131 = vector.broadcast %130 : vector<32x1xi1> to vector<32x1xi1>
    %132 = arith.xori %128, %131 : vector<32x1xi1>
    %133 = arith.andi %132, %126 : vector<32x1xi1>
    %134 = vector.broadcast %122 : i32 to vector<32x1xi32>
    %135 = arith.addi %124, %134 : vector<32x1xi32>
    %136 = arith.select %133, %135, %124 : vector<32x1xi1>, vector<32x1xi32>
    %c3_i32 = arith.constant 3 : i32
    %137 = vector.broadcast %c3_i32 : i32 to vector<32x1xi32>
    %138 = arith.cmpi slt, %136, %137 : vector<32x1xi32>
    %cst_58 = arith.constant 0.000000e+00 : f32
    %139 = vector.broadcast %cst_58 : f32 to vector<32x32xf32>
    %140 = arith.maximumf %119, %139 : vector<32x32xf32>
    %cst_59 = arith.constant 0.000000e+00 : f32
    %141 = vector.shape_cast %138 : vector<32x1xi1> to vector<32x1xi1>
    %142 = vector.broadcast %141 : vector<32x1xi1> to vector<32x32xi1>
    %143 = vector.broadcast %cst_59 : f32 to vector<32x32xf32>
    %144 = arith.select %142, %140, %143 : vector<32x32xi1>, vector<32x32xf32>
    %c1_i32_60 = arith.constant 1 : i32
    %145 = tpu.dynamic_rotate %144 by %c1_i32_60 dim 0 : vector<32x32xf32>, i32 -> vector<32x32xf32>
    %c31_i32 = arith.constant 31 : i32
    %146 = tpu.dynamic_rotate %144 by %c31_i32 dim 0 : vector<32x32xf32>, i32 -> vector<32x32xf32>
    %147 = tpu.concatenate %145, %144, %146 in 1 : vector<32x32xf32>, vector<32x32xf32>, vector<32x32xf32> -> vector<32x96xf32>
    %cst_61 = arith.constant dense<0.000000e+00> : vector<32x32xf32>
    %148 = tpu.matmul %147, %3, %cst_61 {dimension_numbers = #tpu.dot_dimension_numbers<[1], [0], [0], [1], [0, 0, 1, 1], [], []>} : vector<32x96xf32>, vector<96x32xf32>, vector<32x32xf32> -> vector<32x32xf32>
    %149 = vector.broadcast %4 : vector<1x32xf32> to vector<32x32xf32>
    %150 = arith.addf %148, %149 : vector<32x32xf32>
    %cst_62 = arith.constant 0.000000e+00 : f32
    %151 = vector.broadcast %cst_62 : f32 to vector<32x32xf32>
    %152 = arith.maximumf %150, %151 : vector<32x32xf32>
    %cst_63 = arith.constant 0.000000e+00 : f32
    %153 = vector.shape_cast %138 : vector<32x1xi1> to vector<32x1xi1>
    %154 = vector.broadcast %153 : vector<32x1xi1> to vector<32x32xi1>
    %155 = vector.broadcast %cst_63 : f32 to vector<32x32xf32>
    %156 = arith.select %154, %152, %155 : vector<32x32xi1>, vector<32x32xf32>
    %c1_i32_64 = arith.constant 1 : i32
    %157 = tpu.dynamic_rotate %156 by %c1_i32_64 dim 0 : vector<32x32xf32>, i32 -> vector<32x32xf32>
    %c31_i32_65 = arith.constant 31 : i32
    %158 = tpu.dynamic_rotate %156 by %c31_i32_65 dim 0 : vector<32x32xf32>, i32 -> vector<32x32xf32>
    %159 = tpu.concatenate %157, %156, %158 in 1 : vector<32x32xf32>, vector<32x32xf32>, vector<32x32xf32> -> vector<32x96xf32>
    %cst_66 = arith.constant dense<0.000000e+00> : vector<32x32xf32>
    %160 = tpu.matmul %159, %3, %cst_66 {dimension_numbers = #tpu.dot_dimension_numbers<[1], [0], [0], [1], [0, 0, 1, 1], [], []>} : vector<32x96xf32>, vector<96x32xf32>, vector<32x32xf32> -> vector<32x32xf32>
    %161 = vector.broadcast %4 : vector<1x32xf32> to vector<32x32xf32>
    %162 = arith.addf %160, %161 : vector<32x32xf32>
    %163 = arith.addf %162, %119 : vector<32x32xf32>
    %cst_67 = arith.constant 0.000000e+00 : f32
    %164 = vector.shape_cast %138 : vector<32x1xi1> to vector<32x1xi1>
    %165 = vector.broadcast %164 : vector<32x1xi1> to vector<32x32xi1>
    %166 = vector.broadcast %cst_67 : f32 to vector<32x32xf32>
    %167 = arith.select %165, %163, %166 : vector<32x32xi1>, vector<32x32xf32>
    %c31_i32_68 = arith.constant 31 : i32
    %168 = tpu.dynamic_rotate %167 by %c31_i32_68 dim 0 : vector<32x32xf32>, i32 -> vector<32x32xf32>
    %c30_i32 = arith.constant 30 : i32
    %169 = tpu.dynamic_rotate %167 by %c30_i32 dim 0 : vector<32x32xf32>, i32 -> vector<32x32xf32>
    %170 = arith.maximumf %168, %169 : vector<32x32xf32>
    %171 = arith.maximumf %167, %170 : vector<32x32xf32>
    %c0_69 = arith.constant 0 : index
    %c0_70 = arith.constant 0 : index
    %172 = vector.load %arg9[%c0_69, %c0_70] : memref<128x32xf32, #tpu.memory_space<vmem>>, vector<32x32xf32>
    tpu.vector_store %arg9[%c0_69, %c0_70], %171 {strides = array<i32>} : memref<128x32xf32, #tpu.memory_space<vmem>>, vector<32x32xf32>,
    %c0_71 = arith.constant 0 : index
    %c0_72 = arith.constant 0 : index
    %173 = tpu.strided_load %arg9[%c0_71, %c0_72] {strides = array<i32: 2, 1>} : memref<128x32xf32, #tpu.memory_space<vmem>>, vector<16x32xf32>
    %174 = tpu.iota {dimensions = array<i32: 0>} : vector<16x1xi32>
    %c2_i32 = arith.constant 2 : i32
    %c0_i32_73 = arith.constant 0 : i32
    %175 = arith.cmpi eq, %c2_i32, %c0_i32_73 : i32
    %c1_i32_74 = arith.constant 1 : i32
    %176 = arith.select %175, %c1_i32_74, %c2_i32 : i32
    %177 = vector.broadcast %176 : i32 to vector<16x1xi32>
    %178 = arith.remsi %174, %177 : vector<16x1xi32>
    %c0_i32_75 = arith.constant 0 : i32
    %179 = vector.broadcast %c0_i32_75 : i32 to vector<16x1xi32>
    %180 = arith.cmpi ne, %178, %179 : vector<16x1xi32>
    %c0_i32_76 = arith.constant 0 : i32
    %181 = vector.broadcast %c0_i32_76 : i32 to vector<16x1xi32>
    %182 = arith.cmpi slt, %178, %181 : vector<16x1xi32>
    %c0_i32_77 = arith.constant 0 : i32
    %183 = arith.cmpi slt, %176, %c0_i32_77 : i32
    %184 = vector.broadcast %183 : i1 to vector<16x1xi1>
    %185 = vector.broadcast %184 : vector<16x1xi1> to vector<16x1xi1>
    %186 = arith.xori %182, %185 : vector<16x1xi1>
    %187 = arith.andi %186, %180 : vector<16x1xi1>
    %188 = vector.broadcast %176 : i32 to vector<16x1xi32>
    %189 = arith.addi %178, %188 : vector<16x1xi32>
    %190 = arith.select %187, %189, %178 : vector<16x1xi1>, vector<16x1xi32>
    %c1_i32_78 = arith.constant 1 : i32
    %191 = vector.broadcast %c1_i32_78 : i32 to vector<16x1xi32>
    %192 = arith.cmpi slt, %190, %191 : vector<16x1xi32>
    %cst_79 = arith.constant 0.000000e+00 : f32
    %193 = vector.broadcast %cst_79 : f32 to vector<16x32xf32>
    %194 = arith.maximumf %173, %193 : vector<16x32xf32>
    %cst_80 = arith.constant 0.000000e+00 : f32
    %195 = vector.shape_cast %192 : vector<16x1xi1> to vector<16x1xi1>
    %196 = vector.broadcast %195 : vector<16x1xi1> to vector<16x32xi1>
    %197 = vector.broadcast %cst_80 : f32 to vector<16x32xf32>
    %198 = arith.select %196, %194, %197 : vector<16x32xi1>, vector<16x32xf32>
    %c1_i32_81 = arith.constant 1 : i32
    %199 = tpu.dynamic_rotate %198 by %c1_i32_81 dim 0 : vector<16x32xf32>, i32 -> vector<16x32xf32>
    %c15_i32 = arith.constant 15 : i32
    %200 = tpu.dynamic_rotate %198 by %c15_i32 dim 0 : vector<16x32xf32>, i32 -> vector<16x32xf32>
    %201 = tpu.concatenate %199, %198, %200 in 1 : vector<16x32xf32>, vector<16x32xf32>, vector<16x32xf32> -> vector<16x96xf32>
    %cst_82 = arith.constant dense<0.000000e+00> : vector<16x32xf32>
    %202 = tpu.matmul %201, %3, %cst_82 {dimension_numbers = #tpu.dot_dimension_numbers<[1], [0], [0], [1], [0, 0, 1, 1], [], []>} : vector<16x96xf32>, vector<96x32xf32>, vector<16x32xf32> -> vector<16x32xf32>
    %203 = vector.broadcast %4 : vector<1x32xf32> to vector<16x32xf32>
    %204 = arith.addf %202, %203 : vector<16x32xf32>
    %cst_83 = arith.constant 0.000000e+00 : f32
    %205 = vector.broadcast %cst_83 : f32 to vector<16x32xf32>
    %206 = arith.maximumf %204, %205 : vector<16x32xf32>
    %cst_84 = arith.constant 0.000000e+00 : f32
    %207 = vector.shape_cast %192 : vector<16x1xi1> to vector<16x1xi1>
    %208 = vector.broadcast %207 : vector<16x1xi1> to vector<16x32xi1>
    %209 = vector.broadcast %cst_84 : f32 to vector<16x32xf32>
    %210 = arith.select %208, %206, %209 : vector<16x32xi1>, vector<16x32xf32>
    %c1_i32_85 = arith.constant 1 : i32
    %211 = tpu.dynamic_rotate %210 by %c1_i32_85 dim 0 : vector<16x32xf32>, i32 -> vector<16x32xf32>
    %c15_i32_86 = arith.constant 15 : i32
    %212 = tpu.dynamic_rotate %210 by %c15_i32_86 dim 0 : vector<16x32xf32>, i32 -> vector<16x32xf32>
    %213 = tpu.concatenate %211, %210, %212 in 1 : vector<16x32xf32>, vector<16x32xf32>, vector<16x32xf32> -> vector<16x96xf32>
    %cst_87 = arith.constant dense<0.000000e+00> : vector<16x32xf32>
    %214 = tpu.matmul %213, %3, %cst_87 {dimension_numbers = #tpu.dot_dimension_numbers<[1], [0], [0], [1], [0, 0, 1, 1], [], []>} : vector<16x96xf32>, vector<96x32xf32>, vector<16x32xf32> -> vector<16x32xf32>
    %215 = vector.broadcast %4 : vector<1x32xf32> to vector<16x32xf32>
    %216 = arith.addf %214, %215 : vector<16x32xf32>
    %217 = arith.addf %216, %173 : vector<16x32xf32>
    %c0_88 = arith.constant 0 : index
    %c0_89 = arith.constant 0 : index
    %218 = vector.load %arg9[%c0_88, %c0_89] : memref<128x32xf32, #tpu.memory_space<vmem>>, vector<16x32xf32>
    tpu.vector_store %arg9[%c0_88, %c0_89], %217 {strides = array<i32>} : memref<128x32xf32, #tpu.memory_space<vmem>>, vector<16x32xf32>,
    %c0_90 = arith.constant 0 : index
    %c0_91 = arith.constant 0 : index
    %219 = tpu.strided_load %arg9[%c0_90, %c0_91] {strides = array<i32: 2, 1>} : memref<128x32xf32, #tpu.memory_space<vmem>>, vector<8x32xf32>
    %cst_92 = arith.constant dense<0.000000e+00> : vector<8x8xf32>
    %220 = tpu.matmul %219, %5, %cst_92 {dimension_numbers = #tpu.dot_dimension_numbers<[1], [0], [0], [1], [0, 0, 1, 1], [], []>} : vector<8x32xf32>, vector<32x8xf32>, vector<8x8xf32> -> vector<8x8xf32>
    %221 = vector.broadcast %6 : vector<1x8xf32> to vector<8x8xf32>
    %222 = arith.addf %220, %221 : vector<8x8xf32>
    %c0_93 = arith.constant 0 : index
    %c0_94 = arith.constant 0 : index
    %223 = vector.load %arg8[%c0_93, %c0_94] : memref<8x8xf32, #tpu.memory_space<vmem>>, vector<8x8xf32>
    tpu.vector_store %arg8[%c0_93, %c0_94], %222 {strides = array<i32>} : memref<8x8xf32, #tpu.memory_space<vmem>>, vector<8x8xf32>,
    return
  }
  func.func @transform_0(%arg0: i32) -> (i32, i32) {
    %c0_i32 = arith.constant 0 : i32
    %c0_i32_0 = arith.constant 0 : i32
    return %arg0, %c0_i32 : i32, i32
  }
  func.func @transform_1(%arg0: i32) -> (i32, i32) {
    %c0_i32 = arith.constant 0 : i32
    %c0_i32_0 = arith.constant 0 : i32
    %c0_i32_1 = arith.constant 0 : i32
    return %c0_i32, %c0_i32_0 : i32, i32
  }
  func.func @transform_2(%arg0: i32) -> (i32, i32) {
    %c0_i32 = arith.constant 0 : i32
    %c0_i32_0 = arith.constant 0 : i32
    %c0_i32_1 = arith.constant 0 : i32
    return %c0_i32, %c0_i32_0 : i32, i32
  }
  func.func @transform_3(%arg0: i32) -> (i32, i32) {
    %c0_i32 = arith.constant 0 : i32
    %c0_i32_0 = arith.constant 0 : i32
    %c0_i32_1 = arith.constant 0 : i32
    return %c0_i32, %c0_i32_0 : i32, i32
  }
  func.func @transform_4(%arg0: i32) -> (i32, i32) {
    %c0_i32 = arith.constant 0 : i32
    %c0_i32_0 = arith.constant 0 : i32
    %c0_i32_1 = arith.constant 0 : i32
    return %c0_i32, %c0_i32_0 : i32, i32
  }
  func.func @transform_5(%arg0: i32) -> (i32, i32) {
    %c0_i32 = arith.constant 0 : i32
    %c0_i32_0 = arith.constant 0 : i32
    %c0_i32_1 = arith.constant 0 : i32
    return %c0_i32, %c0_i32_0 : i32, i32
  }
  func.func @transform_6(%arg0: i32) -> (i32, i32) {
    %c0_i32 = arith.constant 0 : i32
    %c0_i32_0 = arith.constant 0 : i32
    %c0_i32_1 = arith.constant 0 : i32
    return %c0_i32, %c0_i32_0 : i32, i32
  }
  func.func @transform_7(%arg0: i32) -> (i32, i32) {
    %c0_i32 = arith.constant 0 : i32
    %c0_i32_0 = arith.constant 0 : i32
    return %arg0, %c0_i32 : i32, i32
  }
}

</mosaic_0001>

<llo_original>
// kernel: tpu_custom_call.1
$region0: #{tpu_custom_call.1}
  #allocation0 [shape = 'u32[]', space=smem, size = 0x4, offset = 0x4, fixed_abs, tag = 'smem constant byte address 0x4 - core index']
  #allocation1 [shape = 'u32[144,128]{1,0:T(1,128)}', space=vmem, size = 0x12000, scoped, tag = 'internal scratch']
  #allocation2 [shape = 'f32[128,32]{1,0:T(8,128)}', space=vmem, size = 0x10000, scoped, tag = 'scratch operand']
  %s0 = inlined_call_operand.vmem [shape: f32[256,32], index: 0, kind: input, shape index: {}]
  %s1 = inlined_call_operand.vmem [shape: f32[96,32], index: 1, kind: input, shape index: {}]
  %s2 = inlined_call_operand.vmem [shape: f32[1,32], index: 2, kind: input, shape index: {}]
  %s3 = inlined_call_operand.vmem [shape: f32[96,32], index: 3, kind: input, shape index: {}]
  %s4 = inlined_call_operand.vmem [shape: f32[1,32], index: 4, kind: input, shape index: {}]
  %s5 = inlined_call_operand.vmem [shape: f32[32,8], index: 5, kind: input, shape index: {}]
  %s6 = inlined_call_operand.vmem [shape: f32[1,8], index: 6, kind: input, shape index: {}]
  %s7 = inlined_call_operand.vmem [shape: f32[16,8], index: 7, kind: output, shape index: {}]
  %s8 = sld [smem:[#allocation0]]
  $region61: #{tpu_custom_call.1} parent=0
    _
  %s10 = ssub.s32 1, %s8
  %s11 = scalar_select 0, %s10, %s8
  loop: start=0, step=1, limit=4
  $region2: #{tpu_custom_call.1} parent=0 // loop_pre_header
    _
  $region3: #{tpu_custom_call.1} parent=0 // loop_header
    %s13 = sphi 0, %s17
    %p14 = scmp.ge.s32.totalorder %s13, 4
    %s23 = sphi 0, %s25
    %s26 = sphi 0, %s23
    %s27 = sphi 0, %s26
    %s43 = sphi 0, %s27
    %s47 = sphi 0, %s47
    %s49 = sphi 0, %s47
    %s50 = sphi 0, %s49
    %s64 = sphi 0, %s50
    %s68 = sphi 0, %s68
    %s70 = sphi 0, %s68
    %s71 = sphi 0, %s70
    %s85 = sphi 0, %s71
    %s89 = sphi 0, %s89
    %s91 = sphi 0, %s89
    %s92 = sphi 0, %s91
    %s106 = sphi 0, %s92
    %s110 = sphi 0, %s110
    %s112 = sphi 0, %s110
    %s113 = sphi 0, %s112
    %s127 = sphi 0, %s113
    %s131 = sphi 0, %s131
    %s133 = sphi 0, %s131
    %s134 = sphi 0, %s133
    %s148 = sphi 0, %s134
    %s152 = sphi 0, %s152
    %s154 = sphi 0, %s152
    %s155 = sphi 0, %s154
    %s169 = sphi 0, %s155
    %s175 = sphi 0, %s177
    %s178 = sphi 0, %s175
    %s179 = sphi 0, %s178
    %s195 = sphi 0, %s179
  $region4: #{tpu_custom_call.1} parent=0 // loop_header_branch
    %16 = sbr.rel (%p14) target = $region8
  $region5: #{tpu_custom_call.1} parent=0 // loop_body
    %s18 = ssub.s32 %s13, 1
    %s19 = ssub.s32 %s13, 2
    %s20 = sadd.s32 %s13, 1
    %s21 = ssub.s32 %s13, %s20
    %p22 = scmp.eq.s32.totalorder %s21, 0
    %s24 = sadd.s32 %s23, 1
    %s25 = scalar_select %p22, %s23, %s24
    %p28 = pneg %p22
    %p29 = scmp.eq.s32.totalorder %s13, 1
    %p30 = por %p28, %p29
    %p31 = scmp.ne.s32.totalorder %s23, %s26
    %p32 = scmp.eq.s32.totalorder %s13, 0
    %p33 = por %p31, %p32
    %p34 = scmp.ne.s32.totalorder %s23, %s26
    %p35 = scmp.eq.s32.totalorder %s18, 1
    %p36 = por %p34, %p35
    %p37 = scmp.ne.s32.totalorder %s26, %s27
    %p38 = scmp.eq.s32.totalorder %s18, 0
    %p39 = por %p37, %p38
    %p40 = scmp.ne.s32.totalorder %s26, %s27
    %p41 = scmp.eq.s32.totalorder %s19, 1
    %p42 = por %p40, %p41
    %p44 = scmp.ne.s32.totalorder %s27, %s43
    %p45 = scmp.eq.s32.totalorder %s19, 0
    %p46 = por %p44, %p45
    %s48 = sadd.s32 %s47, 1
    %p51 = scmp.eq.s32.totalorder %s13, 1
    %p52 = scmp.ne.s32.totalorder %s47, %s49
    %p53 = scmp.eq.s32.totalorder %s13, 0
    %p54 = por %p52, %p53
    %p55 = scmp.ne.s32.totalorder %s47, %s49
    %p56 = scmp.eq.s32.totalorder %s18, 1
    %p57 = por %p55, %p56
    %p58 = scmp.ne.s32.totalorder %s49, %s50
    %p59 = scmp.eq.s32.totalorder %s18, 0
    %p60 = por %p58, %p59
    %p61 = scmp.ne.s32.totalorder %s49, %s50
    %p62 = scmp.eq.s32.totalorder %s19, 1
    %p63 = por %p61, %p62
    %p65 = scmp.ne.s32.totalorder %s50, %s64
    %p66 = scmp.eq.s32.totalorder %s19, 0
    %p67 = por %p65, %p66
    %s69 = sadd.s32 %s68, 1
    %p72 = scmp.eq.s32.totalorder %s13, 1
    %p73 = scmp.ne.s32.totalorder %s68, %s70
    %p74 = scmp.eq.s32.totalorder %s13, 0
    %p75 = por %p73, %p74
    %p76 = scmp.ne.s32.totalorder %s68, %s70
    %p77 = scmp.eq.s32.totalorder %s18, 1
    %p78 = por %p76, %p77
    %p79 = scmp.ne.s32.totalorder %s70, %s71
    %p80 = scmp.eq.s32.totalorder %s18, 0
    %p81 = por %p79, %p80
    %p82 = scmp.ne.s32.totalorder %s70, %s71
    %p83 = scmp.eq.s32.totalorder %s19, 1
    %p84 = por %p82, %p83
    %p86 = scmp.ne.s32.totalorder %s71, %s85
    %p87 = scmp.eq.s32.totalorder %s19, 0
    %p88 = por %p86, %p87
    %s90 = sadd.s32 %s89, 1
    %p93 = scmp.eq.s32.totalorder %s13, 1
    %p94 = scmp.ne.s32.totalorder %s89, %s91
    %p95 = scmp.eq.s32.totalorder %s13, 0
    %p96 = por %p94, %p95
    %p97 = scmp.ne.s32.totalorder %s89, %s91
    %p98 = scmp.eq.s32.totalorder %s18, 1
    %p99 = por %p97, %p98
    %p100 = scmp.ne.s32.totalorder %s91, %s92
    %p101 = scmp.eq.s32.totalorder %s18, 0
    %p102 = por %p100, %p101
    %p103 = scmp.ne.s32.totalorder %s91, %s92
    %p104 = scmp.eq.s32.totalorder %s19, 1
    %p105 = por %p103, %p104
    %p107 = scmp.ne.s32.totalorder %s92, %s106
    %p108 = scmp.eq.s32.totalorder %s19, 0
    %p109 = por %p107, %p108
    %s111 = sadd.s32 %s110, 1
    %p114 = scmp.eq.s32.totalorder %s13, 1
    %p115 = scmp.ne.s32.totalorder %s110, %s112
    %p116 = scmp.eq.s32.totalorder %s13, 0
    %p117 = por %p115, %p116
    %p118 = scmp.ne.s32.totalorder %s110, %s112
    %p119 = scmp.eq.s32.totalorder %s18, 1
    %p120 = por %p118, %p119
    %p121 = scmp.ne.s32.totalorder %s112, %s113
    %p122 = scmp.eq.s32.totalorder %s18, 0
    %p123 = por %p121, %p122
    %p124 = scmp.ne.s32.totalorder %s112, %s113
    %p125 = scmp.eq.s32.totalorder %s19, 1
    %p126 = por %p124, %p125
    %p128 = scmp.ne.s32.totalorder %s113, %s127
    %p129 = scmp.eq.s32.totalorder %s19, 0
    %p130 = por %p128, %p129
    %s132 = sadd.s32 %s131, 1
    %p135 = scmp.eq.s32.totalorder %s13, 1
    %p136 = scmp.ne.s32.totalorder %s131, %s133
    %p137 = scmp.eq.s32.totalorder %s13, 0
    %p138 = por %p136, %p137
    %p139 = scmp.ne.s32.totalorder %s131, %s133
    %p140 = scmp.eq.s32.totalorder %s18, 1
    %p141 = por %p139, %p140
    %p142 = scmp.ne.s32.totalorder %s133, %s134
    %p143 = scmp.eq.s32.totalorder %s18, 0
    %p144 = por %p142, %p143
    %p145 = scmp.ne.s32.totalorder %s133, %s134
    %p146 = scmp.eq.s32.totalorder %s19, 1
    %p147 = por %p145, %p146
    %p149 = scmp.ne.s32.totalorder %s134, %s148
    %p150 = scmp.eq.s32.totalorder %s19, 0
    %p151 = por %p149, %p150
    %s153 = sadd.s32 %s152, 1
    %p156 = scmp.eq.s32.totalorder %s13, 1
    %p157 = scmp.ne.s32.totalorder %s152, %s154
    %p158 = scmp.eq.s32.totalorder %s13, 0
    %p159 = por %p157, %p158
    %p160 = scmp.ne.s32.totalorder %s152, %s154
    %p161 = scmp.eq.s32.totalorder %s18, 1
    %p162 = por %p160, %p161
    %p163 = scmp.ne.s32.totalorder %s154, %s155
    %p164 = scmp.eq.s32.totalorder %s18, 0
    %p165 = por %p163, %p164
    %p166 = scmp.ne.s32.totalorder %s154, %s155
    %p167 = scmp.eq.s32.totalorder %s19, 1
    %p168 = por %p166, %p167
    %p170 = scmp.ne.s32.totalorder %s155, %s169
    %p171 = scmp.eq.s32.totalorder %s19, 0
    %p172 = por %p170, %p171
    %s173 = ssub.s32 %s13, %s20
    %p174 = scmp.eq.s32.totalorder %s173, 0
    %s176 = sadd.s32 %s175, 1
    %s177 = scalar_select %p174, %s175, %s176
    %p180 = pneg %p174
    %p181 = scmp.eq.s32.totalorder %s13, 1
    %p182 = por %p180, %p181
    %p183 = scmp.ne.s32.totalorder %s175, %s178
    %p184 = scmp.eq.s32.totalorder %s13, 0
    %p185 = por %p183, %p184
    %p186 = scmp.ne.s32.totalorder %s175, %s178
    %p187 = scmp.eq.s32.totalorder %s18, 1
    %p188 = por %p186, %p187
    %p189 = scmp.ne.s32.totalorder %s178, %s179
    %p190 = scmp.eq.s32.totalorder %s18, 0
    %p191 = por %p189, %p190
    %p192 = scmp.ne.s32.totalorder %s178, %s179
    %p193 = scmp.eq.s32.totalorder %s19, 1
    %p194 = por %p192, %p193
    %p196 = scmp.ne.s32.totalorder %s179, %s195
    %p197 = scmp.eq.s32.totalorder %s19, 0
    %p198 = por %p196, %p197
    %p199 = scmp.le.s32.totalorder 1, %s13
    %p200 = scmp.lt.s32.totalorder %s13, 3
    %p201 = pnand %p199, %p200
    %p202 = pneg %p201
    // Predicated region
    $region9: #{tpu_custom_call.1} parent=5 // pred_check
      _
    $region10: #{tpu_custom_call.1} parent=5 // pred_check_branch
      %204 = sbr.rel (%p201) target = $region12
    $region11: #{tpu_custom_call.1} parent=5 // pred_region
      %s205 = ssub.s32 %s13, 1
      // Predicated region
      $region13: #{tpu_custom_call.1} parent=11 // pred_check
        %p206 = pneg %p60
      $region14: #{tpu_custom_call.1} parent=11 // pred_check_branch
        %208 = sbr.rel (%p206) target = $region16
      $region15: #{tpu_custom_call.1} parent=11 // pred_region
        _
      $region16: #{tpu_custom_call.1} parent=11 // pred_fallthru
        _
      // Predicated region
      $region17: #{tpu_custom_call.1} parent=11 // pred_check
        %p209 = pneg %p81
      $region18: #{tpu_custom_call.1} parent=11 // pred_check_branch
        %211 = sbr.rel (%p209) target = $region20
      $region19: #{tpu_custom_call.1} parent=11 // pred_region
        _
      $region20: #{tpu_custom_call.1} parent=11 // pred_fallthru
        _
      // Predicated region
      $region21: #{tpu_custom_call.1} parent=11 // pred_check
        %p212 = pneg %p102
      $region22: #{tpu_custom_call.1} parent=11 // pred_check_branch
        %214 = sbr.rel (%p212) target = $region24
      $region23: #{tpu_custom_call.1} parent=11 // pred_region
        _
      $region24: #{tpu_custom_call.1} parent=11 // pred_fallthru
        _
      // Predicated region
      $region25: #{tpu_custom_call.1} parent=11 // pred_check
        %p215 = pneg %p123
      $region26: #{tpu_custom_call.1} parent=11 // pred_check_branch
        %217 = sbr.rel (%p215) target = $region28
      $region27: #{tpu_custom_call.1} parent=11 // pred_region
        _
      $region28: #{tpu_custom_call.1} parent=11 // pred_fallthru
        _
      // Predicated region
      $region29: #{tpu_custom_call.1} parent=11 // pred_check
        %p218 = pneg %p144
      $region30: #{tpu_custom_call.1} parent=11 // pred_check_branch
        %220 = sbr.rel (%p218) target = $region32
      $region31: #{tpu_custom_call.1} parent=11 // pred_region
        _
      $region32: #{tpu_custom_call.1} parent=11 // pred_fallthru
        _
      // Predicated region
      $region33: #{tpu_custom_call.1} parent=11 // pred_check
        %p221 = pneg %p165
      $region34: #{tpu_custom_call.1} parent=11 // pred_check_branch
        %223 = sbr.rel (%p221) target = $region36
      $region35: #{tpu_custom_call.1} parent=11 // pred_region
        _
      $region36: #{tpu_custom_call.1} parent=11 // pred_fallthru
        _
    $region12: #{tpu_custom_call.1} parent=5 // pred_fallthru
      _
    %p224 = scmp.lt.s32.totalorder %s13, 2
    // Predicated region
    $region37: #{tpu_custom_call.1} parent=5 // pred_check
      %p225 = pneg %p224
    $region38: #{tpu_custom_call.1} parent=5 // pred_check_branch
      %227 = sbr.rel (%p225) target = $region40
    $region39: #{tpu_custom_call.1} parent=5 // pred_region
      // Predicated region
      $region41: #{tpu_custom_call.1} parent=39 // pred_check
        %p228 = pneg %p33
      $region42: #{tpu_custom_call.1} parent=39 // pred_check_branch
        %230 = sbr.rel (%p228) target = $region44
      $region43: #{tpu_custom_call.1} parent=39 // pred_region
        %s231 = smul.u32 16, %s13
        %p232 = scmp.lt.s32.totalorder %s231, 31
        %s233 = scalar_select %p232, %s231, 31
        %s234 = smul.addr %s233, 8
        %s235 = scalar_lea.vmem %s0, %s234
        %s236 = smul.u32 16, %s13
      $region44: #{tpu_custom_call.1} parent=39 // pred_fallthru
        _
    $region40: #{tpu_custom_call.1} parent=5 // pred_fallthru
      _
    %p237 = scmp.le.s32.totalorder 1, %s13
    %p238 = scmp.lt.s32.totalorder %s13, 3
    %p239 = pnand %p237, %p238
    %p240 = pneg %p239
    // Predicated region
    $region45: #{tpu_custom_call.1} parent=5 // pred_check
      _
    $region46: #{tpu_custom_call.1} parent=5 // pred_check_branch
      %242 = sbr.rel (%p239) target = $region48
    $region47: #{tpu_custom_call.1} parent=5 // pred_region
      %s243 = ssub.s32 %s13, 1
      %s244 = smul.u32 16, %s18
      %p245 = scmp.lt.s32.totalorder %s244, 31
      %s246 = scalar_select %p245, %s244, 31
      %s247 = smul.addr %s246, 8
      %s248 = scalar_lea.vmem %s0, %s247
      %p249 = pneg %p39
      %p250 = pneg %p36
      %p251 = pneg %p60
      %p252 = pneg %p57
      %p253 = pneg %p81
      %p254 = pneg %p78
      %p255 = pneg %p102
      %p256 = pneg %p99
      %p257 = pneg %p123
      %p258 = pneg %p120
      %p259 = pneg %p144
      %p260 = pneg %p141
      %p261 = pneg %p165
      %p262 = pneg %p162
      %p263 = pneg %p191
      %p264 = pneg %p188
      %p265 = scmp.lt.s32.totalorder %s18, 1
      %s266 = scalar_select %p265, %s18, 1
      %s267 = smul.addr %s266, 8
      %s268 = scalar_lea.vmem %s7, %s267
      %s269 = smul.u32 16, %s18
      %p270 = scmp.lt.s32.totalorder %s269, 31
      %s271 = scalar_select %p270, %s269, 31
      %s272 = smul.addr %s271, 8
      %s273 = scalar_lea.vmem %s0, %s272
      %s274 = smul.u32 16, %s18
      %p275 = scmp.lt.s32.totalorder %s18, 1
      %s276 = scalar_select %p275, %s18, 1
      %s277 = smul.addr %s276, 8
      %s278 = scalar_lea.vmem %s7, %s277
      %v279 = vld [vmem:[%s273] sm:$0xff]
      %v280 = vld [vmem:[%s273 + $0x8] sm:$0xff]
      %v281 = vld [vmem:[%s273 + $0x10] sm:$0xff]
      %v282 = vld [vmem:[%s273 + $0x18] sm:$0xff]
      %v283 = vld [vmem:[%s273 + $0x20] sm:$0xff]
      %v284 = vld [vmem:[%s273 + $0x28] sm:$0xff]
      %v285 = vld [vmem:[%s273 + $0x30] sm:$0xff]
      %v286 = vld [vmem:[%s273 + $0x38] sm:$0xff]
      %v287 = vld [vmem:[%s273 + $0x40] sm:$0xff]
      %v288 = vld [vmem:[%s273 + $0x48] sm:$0xff]
      %v289 = vld [vmem:[%s273 + $0x50] sm:$0xff]
      %v290 = vld [vmem:[%s273 + $0x58] sm:$0xff]
      %v291 = vld [vmem:[%s273 + $0x60] sm:$0xff]
      %v292 = vld [vmem:[%s273 + $0x68] sm:$0xff]
      %v293 = vld [vmem:[%s273 + $0x70] sm:$0xff]
      %v294 = vld [vmem:[%s273 + $0x78] sm:$0xff]
      %v295 = vld [vmem:[%s1] sm:$0xff]
      %v296 = vld [vmem:[%s1 + $0x8] sm:$0xff]
      %v297 = vld [vmem:[%s1 + $0x10] sm:$0xff]
      %v298 = vld [vmem:[%s1 + $0x18] sm:$0xff]
      %v299 = vld [vmem:[%s1 + $0x20] sm:$0xff]
      %v300 = vld [vmem:[%s1 + $0x28] sm:$0xff]
      %v301 = vld [vmem:[%s1 + $0x30] sm:$0xff]
      %v302 = vld [vmem:[%s1 + $0x38] sm:$0xff]
      %v303 = vld [vmem:[%s1 + $0x40] sm:$0xff]
      %v304 = vld [vmem:[%s1 + $0x48] sm:$0xff]
      %v305 = vld [vmem:[%s1 + $0x50] sm:$0xff]
      %v306 = vld [vmem:[%s1 + $0x58] sm:$0xff]
      %v307 = vld [vmem:[%s2] sm:$0x1]
      %v308 = vld [vmem:[%s3] sm:$0xff]
      %v309 = vld [vmem:[%s3 + $0x8] sm:$0xff]
      %v310 = vld [vmem:[%s3 + $0x10] sm:$0xff]
      %v311 = vld [vmem:[%s3 + $0x18] sm:$0xff]
      %v312 = vld [vmem:[%s3 + $0x20] sm:$0xff]
      %v313 = vld [vmem:[%s3 + $0x28] sm:$0xff]
      %v314 = vld [vmem:[%s3 + $0x30] sm:$0xff]
      %v315 = vld [vmem:[%s3 + $0x38] sm:$0xff]
      %v316 = vld [vmem:[%s3 + $0x40] sm:$0xff]
      %v317 = vld [vmem:[%s3 + $0x48] sm:$0xff]
      %v318 = vld [vmem:[%s3 + $0x50] sm:$0xff]
      %v319 = vld [vmem:[%s3 + $0x58] sm:$0xff]
      %v320 = vld [vmem:[%s4] sm:$0x1]
      %v321 = vld [vmem:[%s5] sm:$0xff]
      %v322 = vld [vmem:[%s5 + $0x8] sm:$0xff]
      %v323 = vld [vmem:[%s5 + $0x10] sm:$0xff]
      %v324 = vld [vmem:[%s5 + $0x18] sm:$0xff]
      %v325 = vld [vmem:[%s6] sm:$0x1]
      %v326 = vrot.slane %v279, 1
      %v327 = vrot.slane %v280, 1
      %v328 = vrot.slane %v281, 1
      %v329 = vrot.slane %v282, 1
      %v330 = vrot.slane %v283, 1
      %v331 = vrot.slane %v284, 1
      %v332 = vrot.slane %v285, 1
      %v333 = vrot.slane %v286, 1
      %v334 = vrot.slane %v287, 1
      %v335 = vrot.slane %v288, 1
      %v336 = vrot.slane %v289, 1
      %v337 = vrot.slane %v290, 1
      %v338 = vrot.slane %v291, 1
      %v339 = vrot.slane %v292, 1
      %v340 = vrot.slane %v293, 1
      %v341 = vrot.slane %v294, 1
      %v342 = vlaneseq
      %v343 = vshrl.u32 %v342, 7
      %vm344 = vcmp.lt.s32.totalorder %v343, 7
      %v345 = vsel %vm344, %v340, %v341
      %v346 = vsel %vm344, %v339, %v340
      %v347 = vsel %vm344, %v338, %v339
      %v348 = vsel %vm344, %v337, %v338
      %v349 = vsel %vm344, %v336, %v337
      %v350 = vsel %vm344, %v335, %v336
      %v351 = vsel %vm344, %v334, %v335
      %v352 = vsel %vm344, %v333, %v334
      %v353 = vsel %vm344, %v332, %v333
      %v354 = vsel %vm344, %v331, %v332
      %v355 = vsel %vm344, %v330, %v331
      %v356 = vsel %vm344, %v329, %v330
      %v357 = vsel %vm344, %v328, %v329
      %v358 = vsel %vm344, %v327, %v328
      %v359 = vsel %vm344, %v326, %v327
      %v360 = vsel %vm344, %v341, %v326
      %v361 = vrot.slane %v279, 2
      %v362 = vrot.slane %v280, 2
      %v363 = vrot.slane %v281, 2
      %v364 = vrot.slane %v282, 2
      %v365 = vrot.slane %v283, 2
      %v366 = vrot.slane %v284, 2
      %v367 = vrot.slane %v285, 2
      %v368 = vrot.slane %v286, 2
      %v369 = vrot.slane %v287, 2
      %v370 = vrot.slane %v288, 2
      %v371 = vrot.slane %v289, 2
      %v372 = vrot.slane %v290, 2
      %v373 = vrot.slane %v291, 2
      %v374 = vrot.slane %v292, 2
      %v375 = vrot.slane %v293, 2
      %v376 = vrot.slane %v294, 2
      %vm377 = vcmp.lt.s32.totalorder %v343, 6
      %v378 = vsel %vm377, %v375, %v376
      %v379 = vsel %vm377, %v374, %v375
      %v380 = vsel %vm377, %v373, %v374
      %v381 = vsel %vm377, %v372, %v373
      %v382 = vsel %vm377, %v371, %v372
      %v383 = vsel %vm377, %v370, %v371
      %v384 = vsel %vm377, %v369, %v370
      %v385 = vsel %vm377, %v368, %v369
      %v386 = vsel %vm377, %v367, %v368
      %v387 = vsel %vm377, %v366, %v367
      %v388 = vsel %vm377, %v365, %v366
      %v389 = vsel %vm377, %v364, %v365
      %v390 = vsel %vm377, %v363, %v364
      %v391 = vsel %vm377, %v362, %v363
      %v392 = vsel %vm377, %v361, %v362
      %v393 = vsel %vm377, %v376, %v361
      %410 = vrot.lane.b32.xlu0 %v359, 32
      %v411 = vpop.permute.xlu0 %410
      %412 = vrot.lane.b32.xlu0 %v358, 32
      %v413 = vpop.permute.xlu0 %412
      %414 = vrot.lane.b32.xlu0 %v357, 32
      %v415 = vpop.permute.xlu0 %414
      %416 = vrot.lane.b32.xlu0 %v356, 32
      %v417 = vpop.permute.xlu0 %416
      %418 = vrot.lane.b32.xlu0 %v355, 32
      %v419 = vpop.permute.xlu0 %418
      %420 = vrot.lane.b32.xlu0 %v354, 32
      %v421 = vpop.permute.xlu0 %420
      %422 = vrot.lane.b32.xlu0 %v353, 32
      %v423 = vpop.permute.xlu0 %422
      %424 = vrot.lane.b32.xlu0 %v352, 32
      %v425 = vpop.permute.xlu0 %424
      %426 = vrot.lane.b32.xlu0 %v351, 32
      %v427 = vpop.permute.xlu0 %426
      %428 = vrot.lane.b32.xlu0 %v350, 32
      %v429 = vpop.permute.xlu0 %428
      %430 = vrot.lane.b32.xlu0 %v349, 32
      %v431 = vpop.permute.xlu0 %430
      %432 = vrot.lane.b32.xlu0 %v348, 32
      %v433 = vpop.permute.xlu0 %432
      %434 = vrot.lane.b32.xlu0 %v347, 32
      %v435 = vpop.permute.xlu0 %434
      %436 = vrot.lane.b32.xlu0 %v346, 32
      %v437 = vpop.permute.xlu0 %436
      %438 = vrot.lane.b32.xlu0 %v345, 32
      %v439 = vpop.permute.xlu0 %438
      %440 = vrot.lane.b32.xlu0 %v360, 32
      %v441 = vpop.permute.xlu0 %440
      %474 = vrot.lane.b32.xlu0 %v392, 64
      %v475 = vpop.permute.xlu0 %474
      %476 = vrot.lane.b32.xlu0 %v391, 64
      %v477 = vpop.permute.xlu0 %476
      %478 = vrot.lane.b32.xlu0 %v390, 64
      %v479 = vpop.permute.xlu0 %478
      %480 = vrot.lane.b32.xlu0 %v389, 64
      %v481 = vpop.permute.xlu0 %480
      %482 = vrot.lane.b32.xlu0 %v388, 64
      %v483 = vpop.permute.xlu0 %482
      %484 = vrot.lane.b32.xlu0 %v387, 64
      %v485 = vpop.permute.xlu0 %484
      %486 = vrot.lane.b32.xlu0 %v386, 64
      %v487 = vpop.permute.xlu0 %486
      %488 = vrot.lane.b32.xlu0 %v385, 64
      %v489 = vpop.permute.xlu0 %488
      %490 = vrot.lane.b32.xlu0 %v384, 64
      %v491 = vpop.permute.xlu0 %490
      %492 = vrot.lane.b32.xlu0 %v383, 64
      %v493 = vpop.permute.xlu0 %492
      %494 = vrot.lane.b32.xlu0 %v382, 64
      %v495 = vpop.permute.xlu0 %494
      %496 = vrot.lane.b32.xlu0 %v381, 64
      %v497 = vpop.permute.xlu0 %496
      %498 = vrot.lane.b32.xlu0 %v380, 64
      %v499 = vpop.permute.xlu0 %498
      %500 = vrot.lane.b32.xlu0 %v379, 64
      %v501 = vpop.permute.xlu0 %500
      %502 = vrot.lane.b32.xlu0 %v378, 64
      %v503 = vpop.permute.xlu0 %502
      %504 = vrot.lane.b32.xlu0 %v393, 64
      %v505 = vpop.permute.xlu0 %504
      %vm522 = vcmask 261120
      %v523 = vsel %vm522, %v279, %v411
      %v524 = vsel %vm522, %v280, %v413
      %v525 = vsel %vm522, %v281, %v415
      %v526 = vsel %vm522, %v282, %v417
      %v527 = vsel %vm522, %v283, %v419
      %v528 = vsel %vm522, %v284, %v421
      %v529 = vsel %vm522, %v285, %v423
      %v530 = vsel %vm522, %v286, %v425
      %v531 = vsel %vm522, %v287, %v427
      %v532 = vsel %vm522, %v288, %v429
      %v533 = vsel %vm522, %v289, %v431
      %v534 = vsel %vm522, %v290, %v433
      %v535 = vsel %vm522, %v291, %v435
      %v536 = vsel %vm522, %v292, %v437
      %v537 = vsel %vm522, %v293, %v439
      %v538 = vsel %vm522, %v294, %v441
      %vm539 = vcmask 523264
      %v540 = vsel %vm539, %v523, %v475
      %v541 = vsel %vm539, %v524, %v477
      %v542 = vsel %vm539, %v525, %v479
      %v543 = vsel %vm539, %v526, %v481
      %v544 = vsel %vm539, %v527, %v483
      %v545 = vsel %vm539, %v528, %v485
      %v546 = vsel %vm539, %v529, %v487
      %v547 = vsel %vm539, %v530, %v489
      %v548 = vsel %vm539, %v531, %v491
      %v549 = vsel %vm539, %v532, %v493
      %v550 = vsel %vm539, %v533, %v495
      %v551 = vsel %vm539, %v534, %v497
      %v552 = vsel %vm539, %v535, %v499
      %v553 = vsel %vm539, %v536, %v501
      %v554 = vsel %vm539, %v537, %v503
      %v555 = vsel %vm539, %v538, %v505
      %v557 = vlaneseq
      %v558 = vshrl.u32 %v557, 7
      %v559 = vsub.s32 0, %v558
      %v560 = vrot.slane %v307, %v559
      %vm562 = vcmask 785408
      %v564 = vsel %vm562, %v540, 0
      %v567 = vsel %vm562, %v541, 0
      %v570 = vsel %vm562, %v542, 0
      %v573 = vsel %vm562, %v543, 0
      %v576 = vsel %vm562, %v544, 0
      %v579 = vsel %vm562, %v545, 0
      %v582 = vsel %vm562, %v546, 0
      %v585 = vsel %vm562, %v547, 0
      %v588 = vsel %vm562, %v548, 0
      %v591 = vsel %vm562, %v549, 0
      %v594 = vsel %vm562, %v550, 0
      %v597 = vsel %vm562, %v551, 0
      %v600 = vsel %vm562, %v552, 0
      %v603 = vsel %vm562, %v553, 0
      %v606 = vsel %vm562, %v554, 0
      %v609 = vsel %vm562, %v555, 0
      %611 = vmatprep.subr.mxu0 0.0
      %612 = vmatpush1.msra.mxu0 0.0
      %613 = vmatprep.subr.mxu0 0.0
      %614 = vmatpush1.msra.mxu0 0.0
      %615 = vmatprep.subr.mxu0 0.0
      %616 = vmatpush1.msra.mxu0 0.0
      %617 = vmatprep.subr.mxu0 0.0
      %618 = vmatpush1.msra.mxu0 0.0
      %619 = vmatprep.subr.mxu0 0.0
      %620 = vmatpush1.msra.mxu0 %v306
      %621 = vmatprep.subr.mxu0 0.0
      %622 = vmatpush1.msra.mxu0 %v305
      %623 = vmatprep.subr.mxu0 0.0
      %624 = vmatpush1.msra.mxu0 %v304
      %625 = vmatprep.subr.mxu0 0.0
      %626 = vmatpush1.msra.mxu0 %v303
      %627 = vmatprep.subr.mxu0 0.0
      %628 = vmatpush1.msra.mxu0 %v302
      %629 = vmatprep.subr.mxu0 0.0
      %630 = vmatpush1.msra.mxu0 %v301
      %631 = vmatprep.subr.mxu0 0.0
      %632 = vmatpush1.msra.mxu0 %v300
      %633 = vmatprep.subr.mxu0 0.0
      %634 = vmatpush1.msra.mxu0 %v299
      %635 = vmatprep.subr.mxu0 0.0
      %636 = vmatpush1.msra.mxu0 %v298
      %637 = vmatprep.subr.mxu0 0.0
      %638 = vmatpush1.msra.mxu0 %v297
      %639 = vmatprep.subr.mxu0 0.0
      %640 = vmatpush1.msra.mxu0 %v296
      %641 = vmatprep.subr.mxu0 0.0
      %642 = vmatpush1.msra.mxu0 %v295
      %643 = vmatprep.subr.mxu0 0.0
      %644 = vmatpush2.msra.mxu0 0.0
      %645 = vmatprep.subr.mxu0 0.0
      %646 = vmatpush2.msra.mxu0 0.0
      %647 = vmatprep.subr.mxu0 0.0
      %648 = vmatpush2.msra.mxu0 0.0
      %649 = vmatprep.subr.mxu0 0.0
      %650 = vmatpush2.msra.mxu0 0.0
      %651 = vmatprep.subr.mxu0 0.0
      %652 = vmatpush2.msra.mxu0 0.0
      %653 = vmatprep.subr.mxu0 0.0
      %654 = vmatpush2.msra.mxu0 0.0
      %655 = vmatprep.subr.mxu0 0.0
      %656 = vmatpush2.msra.mxu0 0.0
      %657 = vmatprep.subr.mxu0 0.0
      %658 = vmatpush2.msra.mxu0 0.0
      %659 = vmatprep.subr.mxu0 0.0
      %660 = vmatpush2.msra.mxu0 0.0
      %661 = vmatprep.subr.mxu0 0.0
      %662 = vmatpush2.msra.mxu0 0.0
      %663 = vmatprep.subr.mxu0 0.0
      %664 = vmatpush2.msra.mxu0 0.0
      %665 = vmatprep.subr.mxu0 0.0
      %666 = vmatpush2.msra.mxu0 0.0
      %667 = vmatprep.subr.mxu0 0.0
      %668 = vmatpush2.msra.mxu0 0.0
      %669 = vmatprep.subr.mxu0 0.0
      %670 = vmatpush2.msra.mxu0 0.0
      %671 = vmatprep.subr.mxu0 0.0
      %672 = vmatpush2.msra.mxu0 0.0
      %673 = vmatprep.subr.mxu0 0.0
      %674 = vmatpush2.msra.mxu0 0.0
      %675 = vmatprep.mubr.f32.mxu0 0.0
      %676 = vmatmul.mubr.f32.gmra.mxu0 %v564
      %v677 = vpop.f32.mrf.mxu0
      %v678 = vadd.f32 %v560, %v677
      %v679 = vpop.f32.mrf.mxu0
      %680 = vmatprep.mubr.f32.mxu0 0.0
      %681 = vmatmul.mubr.f32.gmra.mxu0 %v567
      %v682 = vpop.f32.mrf.mxu0
      %v683 = vadd.f32 %v560, %v682
      %v684 = vpop.f32.mrf.mxu0
      %685 = vmatprep.mubr.f32.mxu0 0.0
      %686 = vmatmul.mubr.f32.gmra.mxu0 %v570
      %v687 = vpop.f32.mrf.mxu0
      %v688 = vadd.f32 %v560, %v687
      %v689 = vpop.f32.mrf.mxu0
      %690 = vmatprep.mubr.f32.mxu0 0.0
      %691 = vmatmul.mubr.f32.gmra.mxu0 %v573
      %v692 = vpop.f32.mrf.mxu0
      %v693 = vadd.f32 %v560, %v692
      %v694 = vpop.f32.mrf.mxu0
      %695 = vmatprep.mubr.f32.mxu0 0.0
      %696 = vmatmul.mubr.f32.gmra.mxu0 %v576
      %v697 = vpop.f32.mrf.mxu0
      %v698 = vadd.f32 %v560, %v697
      %v699 = vpop.f32.mrf.mxu0
      %700 = vmatprep.mubr.f32.mxu0 0.0
      %701 = vmatmul.mubr.f32.gmra.mxu0 %v579
      %v702 = vpop.f32.mrf.mxu0
      %v703 = vadd.f32 %v560, %v702
      %v704 = vpop.f32.mrf.mxu0
      %705 = vmatprep.mubr.f32.mxu0 0.0
      %706 = vmatmul.mubr.f32.gmra.mxu0 %v582
      %v707 = vpop.f32.mrf.mxu0
      %v708 = vadd.f32 %v560, %v707
      %v709 = vpop.f32.mrf.mxu0
      %710 = vmatprep.mubr.f32.mxu0 0.0
      %711 = vmatmul.mubr.f32.gmra.mxu0 %v585
      %v712 = vpop.f32.mrf.mxu0
      %v713 = vadd.f32 %v560, %v712
      %v714 = vpop.f32.mrf.mxu0
      %715 = vmatprep.mubr.f32.mxu0 0.0
      %716 = vmatmul.mubr.f32.gmra.mxu0 %v588
      %v717 = vpop.f32.mrf.mxu0
      %v718 = vadd.f32 %v560, %v717
      %v719 = vpop.f32.mrf.mxu0
      %720 = vmatprep.mubr.f32.mxu0 0.0
      %721 = vmatmul.mubr.f32.gmra.mxu0 %v591
      %v722 = vpop.f32.mrf.mxu0
      %v723 = vadd.f32 %v560, %v722
      %v724 = vpop.f32.mrf.mxu0
      %725 = vmatprep.mubr.f32.mxu0 0.0
      %726 = vmatmul.mubr.f32.gmra.mxu0 %v594
      %v727 = vpop.f32.mrf.mxu0
      %v728 = vadd.f32 %v560, %v727
      %v729 = vpop.f32.mrf.mxu0
      %730 = vmatprep.mubr.f32.mxu0 0.0
      %731 = vmatmul.mubr.f32.gmra.mxu0 %v597
      %v732 = vpop.f32.mrf.mxu0
      %v733 = vadd.f32 %v560, %v732
      %v734 = vpop.f32.mrf.mxu0
      %735 = vmatprep.mubr.f32.mxu0 0.0
      %736 = vmatmul.mubr.f32.gmra.mxu0 %v600
      %v737 = vpop.f32.mrf.mxu0
      %v738 = vadd.f32 %v560, %v737
      %v739 = vpop.f32.mrf.mxu0
      %740 = vmatprep.mubr.f32.mxu0 0.0
      %741 = vmatmul.mubr.f32.gmra.mxu0 %v603
      %v742 = vpop.f32.mrf.mxu0
      %v743 = vadd.f32 %v560, %v742
      %v744 = vpop.f32.mrf.mxu0
      %745 = vmatprep.mubr.f32.mxu0 0.0
      %746 = vmatmul.mubr.f32.gmra.mxu0 %v606
      %v747 = vpop.f32.mrf.mxu0
      %v748 = vadd.f32 %v560, %v747
      %v749 = vpop.f32.mrf.mxu0
      %750 = vmatprep.mubr.f32.mxu0 0.0
      %751 = vmatmul.mubr.f32.gmra.mxu0 %v609
      %v752 = vpop.f32.mrf.mxu0
      %v753 = vadd.f32 %v560, %v752
      %v754 = vpop.f32.mrf.mxu0
      %755 = vdwg.mxu0
      %v756 = vadd.s32 %v343, 8
      %v757 = vadd.s32 %v343, 16
      %v758 = vadd.s32 %v343, 24
      %v759 = vadd.s32 %v343, 32
      %v760 = vadd.s32 %v343, 40
      %v761 = vadd.s32 %v343, 48
      %v762 = vadd.s32 %v343, 56
      %v763 = vadd.s32 %v343, 64
      %v764 = vadd.s32 %v343, 72
      %v765 = vadd.s32 %v343, 80
      %v766 = vadd.s32 %v343, 88
      %v767 = vadd.s32 %v343, 96
      %v768 = vadd.s32 %v343, 104
      %v769 = vadd.s32 %v343, 112
      %v770 = vadd.s32 %v343, 120
      %vm771 = vcmp.lt.s32.totalorder %v343, 0
      %v772 = vsub.s32 0, %v343
      %v773 = vsel %vm771, %v772, %v343
      %v774 = vshrl.u32 %v773, 4
      %v775 = vand.u32 %v773, 15
      %v776 = vsub.s32 0, %v775
      %v777 = vsel %vm771, %v776, %v775
      %vm778 = vcmp.lt.s32.totalorder %v756, 0
      %v779 = vsub.s32 0, %v756
      %v780 = vsel %vm778, %v779, %v756
      %v781 = vshrl.u32 %v780, 4
      %v782 = vand.u32 %v780, 15
      %v783 = vsub.s32 0, %v782
      %v784 = vsel %vm778, %v783, %v782
      %vm785 = vcmp.lt.s32.totalorder %v757, 0
      %v786 = vsub.s32 0, %v757
      %v787 = vsel %vm785, %v786, %v757
      %v788 = vshrl.u32 %v787, 4
      %v789 = vand.u32 %v787, 15
      %v790 = vsub.s32 0, %v789
      %v791 = vsel %vm785, %v790, %v789
      %vm792 = vcmp.lt.s32.totalorder %v758, 0
      %v793 = vsub.s32 0, %v758
      %v794 = vsel %vm792, %v793, %v758
      %v795 = vshrl.u32 %v794, 4
      %v796 = vand.u32 %v794, 15
      %v797 = vsub.s32 0, %v796
      %v798 = vsel %vm792, %v797, %v796
      %vm799 = vcmp.lt.s32.totalorder %v759, 0
      %v800 = vsub.s32 0, %v759
      %v801 = vsel %vm799, %v800, %v759
      %v802 = vshrl.u32 %v801, 4
      %v803 = vand.u32 %v801, 15
      %v804 = vsub.s32 0, %v803
      %v805 = vsel %vm799, %v804, %v803
      %vm806 = vcmp.lt.s32.totalorder %v760, 0
      %v807 = vsub.s32 0, %v760
      %v808 = vsel %vm806, %v807, %v760
      %v809 = vshrl.u32 %v808, 4
      %v810 = vand.u32 %v808, 15
      %v811 = vsub.s32 0, %v810
      %v812 = vsel %vm806, %v811, %v810
      %vm813 = vcmp.lt.s32.totalorder %v761, 0
      %v814 = vsub.s32 0, %v761
      %v815 = vsel %vm813, %v814, %v761
      %v816 = vshrl.u32 %v815, 4
      %v817 = vand.u32 %v815, 15
      %v818 = vsub.s32 0, %v817
      %v819 = vsel %vm813, %v818, %v817
      %vm820 = vcmp.lt.s32.totalorder %v762, 0
      %v821 = vsub.s32 0, %v762
      %v822 = vsel %vm820, %v821, %v762
      %v823 = vshrl.u32 %v822, 4
      %v824 = vand.u32 %v822, 15
      %v825 = vsub.s32 0, %v824
      %v826 = vsel %vm820, %v825, %v824
      %vm827 = vcmp.lt.s32.totalorder %v763, 0
      %v828 = vsub.s32 0, %v763
      %v829 = vsel %vm827, %v828, %v763
      %v830 = vshrl.u32 %v829, 4
      %v831 = vand.u32 %v829, 15
      %v832 = vsub.s32 0, %v831
      %v833 = vsel %vm827, %v832, %v831
      %vm834 = vcmp.lt.s32.totalorder %v764, 0
      %v835 = vsub.s32 0, %v764
      %v836 = vsel %vm834, %v835, %v764
      %v837 = vshrl.u32 %v836, 4
      %v838 = vand.u32 %v836, 15
      %v839 = vsub.s32 0, %v838
      %v840 = vsel %vm834, %v839, %v838
      %vm841 = vcmp.lt.s32.totalorder %v765, 0
      %v842 = vsub.s32 0, %v765
      %v843 = vsel %vm841, %v842, %v765
      %v844 = vshrl.u32 %v843, 4
      %v845 = vand.u32 %v843, 15
      %v846 = vsub.s32 0, %v845
      %v847 = vsel %vm841, %v846, %v845
      %vm848 = vcmp.lt.s32.totalorder %v766, 0
      %v849 = vsub.s32 0, %v766
      %v850 = vsel %vm848, %v849, %v766
      %v851 = vshrl.u32 %v850, 4
      %v852 = vand.u32 %v850, 15
      %v853 = vsub.s32 0, %v852
      %v854 = vsel %vm848, %v853, %v852
      %vm855 = vcmp.lt.s32.totalorder %v767, 0
      %v856 = vsub.s32 0, %v767
      %v857 = vsel %vm855, %v856, %v767
      %v858 = vshrl.u32 %v857, 4
      %v859 = vand.u32 %v857, 15
      %v860 = vsub.s32 0, %v859
      %v861 = vsel %vm855, %v860, %v859
      %vm862 = vcmp.lt.s32.totalorder %v768, 0
      %v863 = vsub.s32 0, %v768
      %v864 = vsel %vm862, %v863, %v768
      %v865 = vshrl.u32 %v864, 4
      %v866 = vand.u32 %v864, 15
      %v867 = vsub.s32 0, %v866
      %v868 = vsel %vm862, %v867, %v866
      %vm869 = vcmp.lt.s32.totalorder %v769, 0
      %v870 = vsub.s32 0, %v769
      %v871 = vsel %vm869, %v870, %v769
      %v872 = vshrl.u32 %v871, 4
      %v873 = vand.u32 %v871, 15
      %v874 = vsub.s32 0, %v873
      %v875 = vsel %vm869, %v874, %v873
      %vm876 = vcmp.lt.s32.totalorder %v770, 0
      %v877 = vsub.s32 0, %v770
      %v878 = vsel %vm876, %v877, %v770
      %v879 = vshrl.u32 %v878, 4
      %v880 = vand.u32 %v878, 15
      %v881 = vsub.s32 0, %v880
      %v882 = vsel %vm876, %v881, %v880
      %vm883 = vcmp.ne.s32.totalorder %v777, 0
      %vm884 = vcmp.ne.s32.totalorder %v784, 0
      %vm885 = vcmp.ne.s32.totalorder %v791, 0
      %vm886 = vcmp.ne.s32.totalorder %v798, 0
      %vm887 = vcmp.ne.s32.totalorder %v805, 0
      %vm888 = vcmp.ne.s32.totalorder %v812, 0
      %vm889 = vcmp.ne.s32.totalorder %v819, 0
      %vm890 = vcmp.ne.s32.totalorder %v826, 0
      %vm891 = vcmp.ne.s32.totalorder %v833, 0
      %vm892 = vcmp.ne.s32.totalorder %v840, 0
      %vm893 = vcmp.ne.s32.totalorder %v847, 0
      %vm894 = vcmp.ne.s32.totalorder %v854, 0
      %vm895 = vcmp.ne.s32.totalorder %v861, 0
      %vm896 = vcmp.ne.s32.totalorder %v868, 0
      %vm897 = vcmp.ne.s32.totalorder %v875, 0
      %vm898 = vcmp.ne.s32.totalorder %v882, 0
      %vm899 = vcmp.lt.s32.totalorder %v777, 0
      %vm900 = vcmp.lt.s32.totalorder %v784, 0
      %vm901 = vcmp.lt.s32.totalorder %v791, 0
      %vm902 = vcmp.lt.s32.totalorder %v798, 0
      %vm903 = vcmp.lt.s32.totalorder %v805, 0
      %vm904 = vcmp.lt.s32.totalorder %v812, 0
      %vm905 = vcmp.lt.s32.totalorder %v819, 0
      %vm906 = vcmp.lt.s32.totalorder %v826, 0
      %vm907 = vcmp.lt.s32.totalorder %v833, 0
      %vm908 = vcmp.lt.s32.totalorder %v840, 0
      %vm909 = vcmp.lt.s32.totalorder %v847, 0
      %vm910 = vcmp.lt.s32.totalorder %v854, 0
      %vm911 = vcmp.lt.s32.totalorder %v861, 0
      %vm912 = vcmp.lt.s32.totalorder %v868, 0
      %vm913 = vcmp.lt.s32.totalorder %v875, 0
      %vm914 = vcmp.lt.s32.totalorder %v882, 0
      %vm915 = vmand %vm899, %vm883
      %vm916 = vmand %vm900, %vm884
      %vm917 = vmand %vm901, %vm885
      %vm918 = vmand %vm902, %vm886
      %vm919 = vmand %vm903, %vm887
      %vm920 = vmand %vm904, %vm888
      %vm921 = vmand %vm905, %vm889
      %vm922 = vmand %vm906, %vm890
      %vm923 = vmand %vm907, %vm891
      %vm924 = vmand %vm908, %vm892
      %vm925 = vmand %vm909, %vm893
      %vm926 = vmand %vm910, %vm894
      %vm927 = vmand %vm911, %vm895
      %vm928 = vmand %vm912, %vm896
      %vm929 = vmand %vm913, %vm897
      %vm930 = vmand %vm914, %vm898
      %v931 = vadd.s32 %v777, 16
      %v932 = vadd.s32 %v784, 16
      %v933 = vadd.s32 %v791, 16
      %v934 = vadd.s32 %v798, 16
      %v935 = vadd.s32 %v805, 16
      %v936 = vadd.s32 %v812, 16
      %v937 = vadd.s32 %v819, 16
      %v938 = vadd.s32 %v826, 16
      %v939 = vadd.s32 %v833, 16
      %v940 = vadd.s32 %v840, 16
      %v941 = vadd.s32 %v847, 16
      %v942 = vadd.s32 %v854, 16
      %v943 = vadd.s32 %v861, 16
      %v944 = vadd.s32 %v868, 16
      %v945 = vadd.s32 %v875, 16
      %v946 = vadd.s32 %v882, 16
      %v947 = vsel %vm915, %v931, %v777
      %v948 = vsel %vm916, %v932, %v784
      %v949 = vsel %vm917, %v933, %v791
      %v950 = vsel %vm918, %v934, %v798
      %v951 = vsel %vm919, %v935, %v805
      %v952 = vsel %vm920, %v936, %v812
      %v953 = vsel %vm921, %v937, %v819
      %v954 = vsel %vm922, %v938, %v826
      %v955 = vsel %vm923, %v939, %v833
      %v956 = vsel %vm924, %v940, %v840
      %v957 = vsel %vm925, %v941, %v847
      %v958 = vsel %vm926, %v942, %v854
      %v959 = vsel %vm927, %v943, %v861
      %v960 = vsel %vm928, %v944, %v868
      %v961 = vsel %vm929, %v945, %v875
      %v962 = vsel %vm930, %v946, %v882
      %vm963 = vcmp.lt.s32.totalorder %v947, 14
      %vm964 = vcmp.lt.s32.totalorder %v948, 14
      %vm965 = vcmp.lt.s32.totalorder %v949, 14
      %vm966 = vcmp.lt.s32.totalorder %v950, 14
      %vm967 = vcmp.lt.s32.totalorder %v951, 14
      %vm968 = vcmp.lt.s32.totalorder %v952, 14
      %vm969 = vcmp.lt.s32.totalorder %v953, 14
      %vm970 = vcmp.lt.s32.totalorder %v954, 14
      %vm971 = vcmp.lt.s32.totalorder %v955, 14
      %vm972 = vcmp.lt.s32.totalorder %v956, 14
      %vm973 = vcmp.lt.s32.totalorder %v957, 14
      %vm974 = vcmp.lt.s32.totalorder %v958, 14
      %vm975 = vcmp.lt.s32.totalorder %v959, 14
      %vm976 = vcmp.lt.s32.totalorder %v960, 14
      %vm977 = vcmp.lt.s32.totalorder %v961, 14
      %vm978 = vcmp.lt.s32.totalorder %v962, 14
      %v979 = vmax.f32 %v678, 0.0
      %v980 = vmax.f32 %v683, 0.0
      %v981 = vmax.f32 %v688, 0.0
      %v982 = vmax.f32 %v693, 0.0
      %v983 = vmax.f32 %v698, 0.0
      %v984 = vmax.f32 %v703, 0.0
      %v985 = vmax.f32 %v708, 0.0
      %v986 = vmax.f32 %v713, 0.0
      %v987 = vmax.f32 %v718, 0.0
      %v988 = vmax.f32 %v723, 0.0
      %v989 = vmax.f32 %v728, 0.0
      %v990 = vmax.f32 %v733, 0.0
      %v991 = vmax.f32 %v738, 0.0
      %v992 = vmax.f32 %v743, 0.0
      %v993 = vmax.f32 %v748, 0.0
      %v994 = vmax.f32 %v753, 0.0
      %v995 = vsel %vm963, 1, 0
      %v996 = vsel %vm964, 1, 0
      %v997 = vsel %vm965, 1, 0
      %v998 = vsel %vm966, 1, 0
      %v999 = vsel %vm967, 1, 0
      %v1000 = vsel %vm968, 1, 0
      %v1001 = vsel %vm969, 1, 0
      %v1002 = vsel %vm970, 1, 0
      %v1003 = vsel %vm971, 1, 0
      %v1004 = vsel %vm972, 1, 0
      %v1005 = vsel %vm973, 1, 0
      %v1006 = vsel %vm974, 1, 0
      %v1007 = vsel %vm975, 1, 0
      %v1008 = vsel %vm976, 1, 0
      %v1009 = vsel %vm977, 1, 0
      %v1010 = vsel %vm978, 1, 0
      %vm1011 = vcmp.eq.s32.totalorder %v995, 1
      %vm1012 = vcmp.eq.s32.totalorder %v996, 1
      %vm1013 = vcmp.eq.s32.totalorder %v997, 1
      %vm1014 = vcmp.eq.s32.totalorder %v998, 1
      %vm1015 = vcmp.eq.s32.totalorder %v999, 1
      %vm1016 = vcmp.eq.s32.totalorder %v1000, 1
      %vm1017 = vcmp.eq.s32.totalorder %v1001, 1
      %vm1018 = vcmp.eq.s32.totalorder %v1002, 1
      %vm1019 = vcmp.eq.s32.totalorder %v1003, 1
      %vm1020 = vcmp.eq.s32.totalorder %v1004, 1
      %vm1021 = vcmp.eq.s32.totalorder %v1005, 1
      %vm1022 = vcmp.eq.s32.totalorder %v1006, 1
      %vm1023 = vcmp.eq.s32.totalorder %v1007, 1
      %vm1024 = vcmp.eq.s32.totalorder %v1008, 1
      %vm1025 = vcmp.eq.s32.totalorder %v1009, 1
      %vm1026 = vcmp.eq.s32.totalorder %v1010, 1
      %v1027 = vsel %vm1011, %v979, 0.0
      %v1028 = vsel %vm1012, %v980, 0.0
      %v1029 = vsel %vm1013, %v981, 0.0
      %v1030 = vsel %vm1014, %v982, 0.0
      %v1031 = vsel %vm1015, %v983, 0.0
      %v1032 = vsel %vm1016, %v984, 0.0
      %v1033 = vsel %vm1017, %v985, 0.0
      %v1034 = vsel %vm1018, %v986, 0.0
      %v1035 = vsel %vm1019, %v987, 0.0
      %v1036 = vsel %vm1020, %v988, 0.0
      %v1037 = vsel %vm1021, %v989, 0.0
      %v1038 = vsel %vm1022, %v990, 0.0
      %v1039 = vsel %vm1023, %v991, 0.0
      %v1040 = vsel %vm1024, %v992, 0.0
      %v1041 = vsel %vm1025, %v993, 0.0
      %v1042 = vsel %vm1026, %v994, 0.0
      %v1043 = vrot.slane %v1027, 7
      %v1044 = vrot.slane %v1028, 7
      %v1045 = vrot.slane %v1029, 7
      %v1046 = vrot.slane %v1030, 7
      %v1047 = vrot.slane %v1031, 7
      %v1048 = vrot.slane %v1032, 7
      %v1049 = vrot.slane %v1033, 7
      %v1050 = vrot.slane %v1034, 7
      %v1051 = vrot.slane %v1035, 7
      %v1052 = vrot.slane %v1036, 7
      %v1053 = vrot.slane %v1037, 7
      %v1054 = vrot.slane %v1038, 7
      %v1055 = vrot.slane %v1039, 7
      %v1056 = vrot.slane %v1040, 7
      %v1057 = vrot.slane %v1041, 7
      %v1058 = vrot.slane %v1042, 7
      %vm1059 = vcmp.lt.s32.totalorder %v343, 1
      %v1060 = vsel %vm1059, %v1057, %v1058
      %v1061 = vsel %vm1059, %v1056, %v1057
      %v1062 = vsel %vm1059, %v1055, %v1056
      %v1063 = vsel %vm1059, %v1054, %v1055
      %v1064 = vsel %vm1059, %v1053, %v1054
      %v1065 = vsel %vm1059, %v1052, %v1053
      %v1066 = vsel %vm1059, %v1051, %v1052
      %v1067 = vsel %vm1059, %v1050, %v1051
      %v1068 = vsel %vm1059, %v1049, %v1050
      %v1069 = vsel %vm1059, %v1048, %v1049
      %v1070 = vsel %vm1059, %v1047, %v1048
      %v1071 = vsel %vm1059, %v1046, %v1047
      %v1072 = vsel %vm1059, %v1045, %v1046
      %v1073 = vsel %vm1059, %v1044, %v1045
      %v1074 = vsel %vm1059, %v1043, %v1044
      %v1075 = vsel %vm1059, %v1058, %v1043
      %v1076 = vrot.slane %v1027, 1
      %v1077 = vrot.slane %v1028, 1
      %v1078 = vrot.slane %v1029, 1
      %v1079 = vrot.slane %v1030, 1
      %v1080 = vrot.slane %v1031, 1
      %v1081 = vrot.slane %v1032, 1
      %v1082 = vrot.slane %v1033, 1
      %v1083 = vrot.slane %v1034, 1
      %v1084 = vrot.slane %v1035, 1
      %v1085 = vrot.slane %v1036, 1
      %v1086 = vrot.slane %v1037, 1
      %v1087 = vrot.slane %v1038, 1
      %v1088 = vrot.slane %v1039, 1
      %v1089 = vrot.slane %v1040, 1
      %v1090 = vrot.slane %v1041, 1
      %v1091 = vrot.slane %v1042, 1
      %v1092 = vsel %vm344, %v1090, %v1091
      %v1093 = vsel %vm344, %v1089, %v1090
      %v1094 = vsel %vm344, %v1088, %v1089
      %v1095 = vsel %vm344, %v1087, %v1088
      %v1096 = vsel %vm344, %v1086, %v1087
      %v1097 = vsel %vm344, %v1085, %v1086
      %v1098 = vsel %vm344, %v1084, %v1085
      %v1099 = vsel %vm344, %v1083, %v1084
      %v1100 = vsel %vm344, %v1082, %v1083
      %v1101 = vsel %vm344, %v1081, %v1082
      %v1102 = vsel %vm344, %v1080, %v1081
      %v1103 = vsel %vm344, %v1079, %v1080
      %v1104 = vsel %vm344, %v1078, %v1079
      %v1105 = vsel %vm344, %v1077, %v1078
      %v1106 = vsel %vm344, %v1076, %v1077
      %v1107 = vsel %vm344, %v1091, %v1076
      %1124 = vrot.lane.b32.xlu0 %v1027, 32
      %v1125 = vpop.permute.xlu0 %1124
      %1126 = vrot.lane.b32.xlu0 %v1028, 32
      %v1127 = vpop.permute.xlu0 %1126
      %1128 = vrot.lane.b32.xlu0 %v1029, 32
      %v1129 = vpop.permute.xlu0 %1128
      %1130 = vrot.lane.b32.xlu0 %v1030, 32
      %v1131 = vpop.permute.xlu0 %1130
      %1132 = vrot.lane.b32.xlu0 %v1031, 32
      %v1133 = vpop.permute.xlu0 %1132
      %1134 = vrot.lane.b32.xlu0 %v1032, 32
      %v1135 = vpop.permute.xlu0 %1134
      %1136 = vrot.lane.b32.xlu0 %v1033, 32
      %v1137 = vpop.permute.xlu0 %1136
      %1138 = vrot.lane.b32.xlu0 %v1034, 32
      %v1139 = vpop.permute.xlu0 %1138
      %1140 = vrot.lane.b32.xlu0 %v1035, 32
      %v1141 = vpop.permute.xlu0 %1140
      %1142 = vrot.lane.b32.xlu0 %v1036, 32
      %v1143 = vpop.permute.xlu0 %1142
      %1144 = vrot.lane.b32.xlu0 %v1037, 32
      %v1145 = vpop.permute.xlu0 %1144
      %1146 = vrot.lane.b32.xlu0 %v1038, 32
      %v1147 = vpop.permute.xlu0 %1146
      %1148 = vrot.lane.b32.xlu0 %v1039, 32
      %v1149 = vpop.permute.xlu0 %1148
      %1150 = vrot.lane.b32.xlu0 %v1040, 32
      %v1151 = vpop.permute.xlu0 %1150
      %1152 = vrot.lane.b32.xlu0 %v1041, 32
      %v1153 = vpop.permute.xlu0 %1152
      %1154 = vrot.lane.b32.xlu0 %v1042, 32
      %v1155 = vpop.permute.xlu0 %1154
      %1188 = vrot.lane.b32.xlu0 %v1106, 64
      %v1189 = vpop.permute.xlu0 %1188
      %1190 = vrot.lane.b32.xlu0 %v1105, 64
      %v1191 = vpop.permute.xlu0 %1190
      %1192 = vrot.lane.b32.xlu0 %v1104, 64
      %v1193 = vpop.permute.xlu0 %1192
      %1194 = vrot.lane.b32.xlu0 %v1103, 64
      %v1195 = vpop.permute.xlu0 %1194
      %1196 = vrot.lane.b32.xlu0 %v1102, 64
      %v1197 = vpop.permute.xlu0 %1196
      %1198 = vrot.lane.b32.xlu0 %v1101, 64
      %v1199 = vpop.permute.xlu0 %1198
      %1200 = vrot.lane.b32.xlu0 %v1100, 64
      %v1201 = vpop.permute.xlu0 %1200
      %1202 = vrot.lane.b32.xlu0 %v1099, 64
      %v1203 = vpop.permute.xlu0 %1202
      %1204 = vrot.lane.b32.xlu0 %v1098, 64
      %v1205 = vpop.permute.xlu0 %1204
      %1206 = vrot.lane.b32.xlu0 %v1097, 64
      %v1207 = vpop.permute.xlu0 %1206
      %1208 = vrot.lane.b32.xlu0 %v1096, 64
      %v1209 = vpop.permute.xlu0 %1208
      %1210 = vrot.lane.b32.xlu0 %v1095, 64
      %v1211 = vpop.permute.xlu0 %1210
      %1212 = vrot.lane.b32.xlu0 %v1094, 64
      %v1213 = vpop.permute.xlu0 %1212
      %1214 = vrot.lane.b32.xlu0 %v1093, 64
      %v1215 = vpop.permute.xlu0 %1214
      %1216 = vrot.lane.b32.xlu0 %v1092, 64
      %v1217 = vpop.permute.xlu0 %1216
      %1218 = vrot.lane.b32.xlu0 %v1107, 64
      %v1219 = vpop.permute.xlu0 %1218
      %v1236 = vsel %vm522, %v1075, %v1125
      %v1237 = vsel %vm522, %v1074, %v1127
      %v1238 = vsel %vm522, %v1073, %v1129
      %v1239 = vsel %vm522, %v1072, %v1131
      %v1240 = vsel %vm522, %v1071, %v1133
      %v1241 = vsel %vm522, %v1070, %v1135
      %v1242 = vsel %vm522, %v1069, %v1137
      %v1243 = vsel %vm522, %v1068, %v1139
      %v1244 = vsel %vm522, %v1067, %v1141
      %v1245 = vsel %vm522, %v1066, %v1143
      %v1246 = vsel %vm522, %v1065, %v1145
      %v1247 = vsel %vm522, %v1064, %v1147
      %v1248 = vsel %vm522, %v1063, %v1149
      %v1249 = vsel %vm522, %v1062, %v1151
      %v1250 = vsel %vm522, %v1061, %v1153
      %v1251 = vsel %vm522, %v1060, %v1155
      %v1252 = vsel %vm539, %v1236, %v1189
      %v1253 = vsel %vm539, %v1237, %v1191
      %v1254 = vsel %vm539, %v1238, %v1193
      %v1255 = vsel %vm539, %v1239, %v1195
      %v1256 = vsel %vm539, %v1240, %v1197
      %v1257 = vsel %vm539, %v1241, %v1199
      %v1258 = vsel %vm539, %v1242, %v1201
      %v1259 = vsel %vm539, %v1243, %v1203
      %v1260 = vsel %vm539, %v1244, %v1205
      %v1261 = vsel %vm539, %v1245, %v1207
      %v1262 = vsel %vm539, %v1246, %v1209
      %v1263 = vsel %vm539, %v1247, %v1211
      %v1264 = vsel %vm539, %v1248, %v1213
      %v1265 = vsel %vm539, %v1249, %v1215
      %v1266 = vsel %vm539, %v1250, %v1217
      %v1267 = vsel %vm539, %v1251, %v1219
      %v1269 = vlaneseq
      %v1270 = vshrl.u32 %v1269, 7
      %v1271 = vsub.s32 0, %v1270
      %v1272 = vrot.slane %v320, %v1271
      %v1275 = vsel %vm562, %v1252, 0
      %v1278 = vsel %vm562, %v1253, 0
      %v1281 = vsel %vm562, %v1254, 0
      %v1284 = vsel %vm562, %v1255, 0
      %v1287 = vsel %vm562, %v1256, 0
      %v1290 = vsel %vm562, %v1257, 0
      %v1293 = vsel %vm562, %v1258, 0
      %v1296 = vsel %vm562, %v1259, 0
      %v1299 = vsel %vm562, %v1260, 0
      %v1302 = vsel %vm562, %v1261, 0
      %v1305 = vsel %vm562, %v1262, 0
      %v1308 = vsel %vm562, %v1263, 0
      %v1311 = vsel %vm562, %v1264, 0
      %v1314 = vsel %vm562, %v1265, 0
      %v1317 = vsel %vm562, %v1266, 0
      %v1320 = vsel %vm562, %v1267, 0
      %1322 = vmatprep.subr.mxu0 0.0
      %1323 = vmatpush1.msra.mxu0 0.0
      %1324 = vmatprep.subr.mxu0 0.0
      %1325 = vmatpush1.msra.mxu0 0.0
      %1326 = vmatprep.subr.mxu0 0.0
      %1327 = vmatpush1.msra.mxu0 0.0
      %1328 = vmatprep.subr.mxu0 0.0
      %1329 = vmatpush1.msra.mxu0 0.0
      %1330 = vmatprep.subr.mxu0 0.0
      %1331 = vmatpush1.msra.mxu0 %v319
      %1332 = vmatprep.subr.mxu0 0.0
      %1333 = vmatpush1.msra.mxu0 %v318
      %1334 = vmatprep.subr.mxu0 0.0
      %1335 = vmatpush1.msra.mxu0 %v317
      %1336 = vmatprep.subr.mxu0 0.0
      %1337 = vmatpush1.msra.mxu0 %v316
      %1338 = vmatprep.subr.mxu0 0.0
      %1339 = vmatpush1.msra.mxu0 %v315
      %1340 = vmatprep.subr.mxu0 0.0
      %1341 = vmatpush1.msra.mxu0 %v314
      %1342 = vmatprep.subr.mxu0 0.0
      %1343 = vmatpush1.msra.mxu0 %v313
      %1344 = vmatprep.subr.mxu0 0.0
      %1345 = vmatpush1.msra.mxu0 %v312
      %1346 = vmatprep.subr.mxu0 0.0
      %1347 = vmatpush1.msra.mxu0 %v311
      %1348 = vmatprep.subr.mxu0 0.0
      %1349 = vmatpush1.msra.mxu0 %v310
      %1350 = vmatprep.subr.mxu0 0.0
      %1351 = vmatpush1.msra.mxu0 %v309
      %1352 = vmatprep.subr.mxu0 0.0
      %1353 = vmatpush1.msra.mxu0 %v308
      %1354 = vmatprep.subr.mxu0 0.0
      %1355 = vmatpush2.msra.mxu0 0.0
      %1356 = vmatprep.subr.mxu0 0.0
      %1357 = vmatpush2.msra.mxu0 0.0
      %1358 = vmatprep.subr.mxu0 0.0
      %1359 = vmatpush2.msra.mxu0 0.0
      %1360 = vmatprep.subr.mxu0 0.0
      %1361 = vmatpush2.msra.mxu0 0.0
      %1362 = vmatprep.subr.mxu0 0.0
      %1363 = vmatpush2.msra.mxu0 0.0
      %1364 = vmatprep.subr.mxu0 0.0
      %1365 = vmatpush2.msra.mxu0 0.0
      %1366 = vmatprep.subr.mxu0 0.0
      %1367 = vmatpush2.msra.mxu0 0.0
      %1368 = vmatprep.subr.mxu0 0.0
      %1369 = vmatpush2.msra.mxu0 0.0
      %1370 = vmatprep.subr.mxu0 0.0
      %1371 = vmatpush2.msra.mxu0 0.0
      %1372 = vmatprep.subr.mxu0 0.0
      %1373 = vmatpush2.msra.mxu0 0.0
      %1374 = vmatprep.subr.mxu0 0.0
      %1375 = vmatpush2.msra.mxu0 0.0
      %1376 = vmatprep.subr.mxu0 0.0
      %1377 = vmatpush2.msra.mxu0 0.0
      %1378 = vmatprep.subr.mxu0 0.0
      %1379 = vmatpush2.msra.mxu0 0.0
      %1380 = vmatprep.subr.mxu0 0.0
      %1381 = vmatpush2.msra.mxu0 0.0
      %1382 = vmatprep.subr.mxu0 0.0
      %1383 = vmatpush2.msra.mxu0 0.0
      %1384 = vmatprep.subr.mxu0 0.0
      %1385 = vmatpush2.msra.mxu0 0.0
      %1386 = vmatprep.mubr.f32.mxu0 0.0
      %1387 = vmatmul.mubr.f32.gmra.mxu0 %v1275
      %v1388 = vpop.f32.mrf.mxu0
      %v1389 = vadd.f32 %v1272, %v1388
      %v1390 = vpop.f32.mrf.mxu0
      %1391 = vmatprep.mubr.f32.mxu0 0.0
      %1392 = vmatmul.mubr.f32.gmra.mxu0 %v1278
      %v1393 = vpop.f32.mrf.mxu0
      %v1394 = vadd.f32 %v1272, %v1393
      %v1395 = vpop.f32.mrf.mxu0
      %1396 = vmatprep.mubr.f32.mxu0 0.0
      %1397 = vmatmul.mubr.f32.gmra.mxu0 %v1281
      %v1398 = vpop.f32.mrf.mxu0
      %v1399 = vadd.f32 %v1272, %v1398
      %v1400 = vpop.f32.mrf.mxu0
      %1401 = vmatprep.mubr.f32.mxu0 0.0
      %1402 = vmatmul.mubr.f32.gmra.mxu0 %v1284
      %v1403 = vpop.f32.mrf.mxu0
      %v1404 = vadd.f32 %v1272, %v1403
      %v1405 = vpop.f32.mrf.mxu0
      %1406 = vmatprep.mubr.f32.mxu0 0.0
      %1407 = vmatmul.mubr.f32.gmra.mxu0 %v1287
      %v1408 = vpop.f32.mrf.mxu0
      %v1409 = vadd.f32 %v1272, %v1408
      %v1410 = vpop.f32.mrf.mxu0
      %1411 = vmatprep.mubr.f32.mxu0 0.0
      %1412 = vmatmul.mubr.f32.gmra.mxu0 %v1290
      %v1413 = vpop.f32.mrf.mxu0
      %v1414 = vadd.f32 %v1272, %v1413
      %v1415 = vpop.f32.mrf.mxu0
      %1416 = vmatprep.mubr.f32.mxu0 0.0
      %1417 = vmatmul.mubr.f32.gmra.mxu0 %v1293
      %v1418 = vpop.f32.mrf.mxu0
      %v1419 = vadd.f32 %v1272, %v1418
      %v1420 = vpop.f32.mrf.mxu0
      %1421 = vmatprep.mubr.f32.mxu0 0.0
      %1422 = vmatmul.mubr.f32.gmra.mxu0 %v1296
      %v1423 = vpop.f32.mrf.mxu0
      %v1424 = vadd.f32 %v1272, %v1423
      %v1425 = vpop.f32.mrf.mxu0
      %1426 = vmatprep.mubr.f32.mxu0 0.0
      %1427 = vmatmul.mubr.f32.gmra.mxu0 %v1299
      %v1428 = vpop.f32.mrf.mxu0
      %v1429 = vadd.f32 %v1272, %v1428
      %v1430 = vpop.f32.mrf.mxu0
      %1431 = vmatprep.mubr.f32.mxu0 0.0
      %1432 = vmatmul.mubr.f32.gmra.mxu0 %v1302
      %v1433 = vpop.f32.mrf.mxu0
      %v1434 = vadd.f32 %v1272, %v1433
      %v1435 = vpop.f32.mrf.mxu0
      %1436 = vmatprep.mubr.f32.mxu0 0.0
      %1437 = vmatmul.mubr.f32.gmra.mxu0 %v1305
      %v1438 = vpop.f32.mrf.mxu0
      %v1439 = vadd.f32 %v1272, %v1438
      %v1440 = vpop.f32.mrf.mxu0
      %1441 = vmatprep.mubr.f32.mxu0 0.0
      %1442 = vmatmul.mubr.f32.gmra.mxu0 %v1308
      %v1443 = vpop.f32.mrf.mxu0
      %v1444 = vadd.f32 %v1272, %v1443
      %v1445 = vpop.f32.mrf.mxu0
      %1446 = vmatprep.mubr.f32.mxu0 0.0
      %1447 = vmatmul.mubr.f32.gmra.mxu0 %v1311
      %v1448 = vpop.f32.mrf.mxu0
      %v1449 = vadd.f32 %v1272, %v1448
      %v1450 = vpop.f32.mrf.mxu0
      %1451 = vmatprep.mubr.f32.mxu0 0.0
      %1452 = vmatmul.mubr.f32.gmra.mxu0 %v1314
      %v1453 = vpop.f32.mrf.mxu0
      %v1454 = vadd.f32 %v1272, %v1453
      %v1455 = vpop.f32.mrf.mxu0
      %1456 = vmatprep.mubr.f32.mxu0 0.0
      %1457 = vmatmul.mubr.f32.gmra.mxu0 %v1317
      %v1458 = vpop.f32.mrf.mxu0
      %v1459 = vadd.f32 %v1272, %v1458
      %v1460 = vpop.f32.mrf.mxu0
      %1461 = vmatprep.mubr.f32.mxu0 0.0
      %1462 = vmatmul.mubr.f32.gmra.mxu0 %v1320
      %v1463 = vpop.f32.mrf.mxu0
      %v1464 = vadd.f32 %v1272, %v1463
      %v1465 = vpop.f32.mrf.mxu0
      %1466 = vdwg.mxu0
      %v1467 = vmax.f32 %v1389, 0.0
      %v1468 = vmax.f32 %v1394, 0.0
      %v1469 = vmax.f32 %v1399, 0.0
      %v1470 = vmax.f32 %v1404, 0.0
      %v1471 = vmax.f32 %v1409, 0.0
      %v1472 = vmax.f32 %v1414, 0.0
      %v1473 = vmax.f32 %v1419, 0.0
      %v1474 = vmax.f32 %v1424, 0.0
      %v1475 = vmax.f32 %v1429, 0.0
      %v1476 = vmax.f32 %v1434, 0.0
      %v1477 = vmax.f32 %v1439, 0.0
      %v1478 = vmax.f32 %v1444, 0.0
      %v1479 = vmax.f32 %v1449, 0.0
      %v1480 = vmax.f32 %v1454, 0.0
      %v1481 = vmax.f32 %v1459, 0.0
      %v1482 = vmax.f32 %v1464, 0.0
      %v1483 = vsel %vm1011, %v1467, 0.0
      %v1484 = vsel %vm1012, %v1468, 0.0
      %v1485 = vsel %vm1013, %v1469, 0.0
      %v1486 = vsel %vm1014, %v1470, 0.0
      %v1487 = vsel %vm1015, %v1471, 0.0
      %v1488 = vsel %vm1016, %v1472, 0.0
      %v1489 = vsel %vm1017, %v1473, 0.0
      %v1490 = vsel %vm1018, %v1474, 0.0
      %v1491 = vsel %vm1019, %v1475, 0.0
      %v1492 = vsel %vm1020, %v1476, 0.0
      %v1493 = vsel %vm1021, %v1477, 0.0
      %v1494 = vsel %vm1022, %v1478, 0.0
      %v1495 = vsel %vm1023, %v1479, 0.0
      %v1496 = vsel %vm1024, %v1480, 0.0
      %v1497 = vsel %vm1025, %v1481, 0.0
      %v1498 = vsel %vm1026, %v1482, 0.0
      %v1499 = vrot.slane %v1483, 7
      %v1500 = vrot.slane %v1484, 7
      %v1501 = vrot.slane %v1485, 7
      %v1502 = vrot.slane %v1486, 7
      %v1503 = vrot.slane %v1487, 7
      %v1504 = vrot.slane %v1488, 7
      %v1505 = vrot.slane %v1489, 7
      %v1506 = vrot.slane %v1490, 7
      %v1507 = vrot.slane %v1491, 7
      %v1508 = vrot.slane %v1492, 7
      %v1509 = vrot.slane %v1493, 7
      %v1510 = vrot.slane %v1494, 7
      %v1511 = vrot.slane %v1495, 7
      %v1512 = vrot.slane %v1496, 7
      %v1513 = vrot.slane %v1497, 7
      %v1514 = vrot.slane %v1498, 7
      %v1515 = vsel %vm1059, %v1513, %v1514
      %v1516 = vsel %vm1059, %v1512, %v1513
      %v1517 = vsel %vm1059, %v1511, %v1512
      %v1518 = vsel %vm1059, %v1510, %v1511
      %v1519 = vsel %vm1059, %v1509, %v1510
      %v1520 = vsel %vm1059, %v1508, %v1509
      %v1521 = vsel %vm1059, %v1507, %v1508
      %v1522 = vsel %vm1059, %v1506, %v1507
      %v1523 = vsel %vm1059, %v1505, %v1506
      %v1524 = vsel %vm1059, %v1504, %v1505
      %v1525 = vsel %vm1059, %v1503, %v1504
      %v1526 = vsel %vm1059, %v1502, %v1503
      %v1527 = vsel %vm1059, %v1501, %v1502
      %v1528 = vsel %vm1059, %v1500, %v1501
      %v1529 = vsel %vm1059, %v1499, %v1500
      %v1530 = vsel %vm1059, %v1514, %v1499
      %v1531 = vrot.slane %v1483, 1
      %v1532 = vrot.slane %v1484, 1
      %v1533 = vrot.slane %v1485, 1
      %v1534 = vrot.slane %v1486, 1
      %v1535 = vrot.slane %v1487, 1
      %v1536 = vrot.slane %v1488, 1
      %v1537 = vrot.slane %v1489, 1
      %v1538 = vrot.slane %v1490, 1
      %v1539 = vrot.slane %v1491, 1
      %v1540 = vrot.slane %v1492, 1
      %v1541 = vrot.slane %v1493, 1
      %v1542 = vrot.slane %v1494, 1
      %v1543 = vrot.slane %v1495, 1
      %v1544 = vrot.slane %v1496, 1
      %v1545 = vrot.slane %v1497, 1
      %v1546 = vrot.slane %v1498, 1
      %v1547 = vsel %vm344, %v1545, %v1546
      %v1548 = vsel %vm344, %v1544, %v1545
      %v1549 = vsel %vm344, %v1543, %v1544
      %v1550 = vsel %vm344, %v1542, %v1543
      %v1551 = vsel %vm344, %v1541, %v1542
      %v1552 = vsel %vm344, %v1540, %v1541
      %v1553 = vsel %vm344, %v1539, %v1540
      %v1554 = vsel %vm344, %v1538, %v1539
      %v1555 = vsel %vm344, %v1537, %v1538
      %v1556 = vsel %vm344, %v1536, %v1537
      %v1557 = vsel %vm344, %v1535, %v1536
      %v1558 = vsel %vm344, %v1534, %v1535
      %v1559 = vsel %vm344, %v1533, %v1534
      %v1560 = vsel %vm344, %v1532, %v1533
      %v1561 = vsel %vm344, %v1531, %v1532
      %v1562 = vsel %vm344, %v1546, %v1531
      %1579 = vrot.lane.b32.xlu0 %v1483, 32
      %v1580 = vpop.permute.xlu0 %1579
      %1581 = vrot.lane.b32.xlu0 %v1484, 32
      %v1582 = vpop.permute.xlu0 %1581
      %1583 = vrot.lane.b32.xlu0 %v1485, 32
      %v1584 = vpop.permute.xlu0 %1583
      %1585 = vrot.lane.b32.xlu0 %v1486, 32
      %v1586 = vpop.permute.xlu0 %1585
      %1587 = vrot.lane.b32.xlu0 %v1487, 32
      %v1588 = vpop.permute.xlu0 %1587
      %1589 = vrot.lane.b32.xlu0 %v1488, 32
      %v1590 = vpop.permute.xlu0 %1589
      %1591 = vrot.lane.b32.xlu0 %v1489, 32
      %v1592 = vpop.permute.xlu0 %1591
      %1593 = vrot.lane.b32.xlu0 %v1490, 32
      %v1594 = vpop.permute.xlu0 %1593
      %1595 = vrot.lane.b32.xlu0 %v1491, 32
      %v1596 = vpop.permute.xlu0 %1595
      %1597 = vrot.lane.b32.xlu0 %v1492, 32
      %v1598 = vpop.permute.xlu0 %1597
      %1599 = vrot.lane.b32.xlu0 %v1493, 32
      %v1600 = vpop.permute.xlu0 %1599
      %1601 = vrot.lane.b32.xlu0 %v1494, 32
      %v1602 = vpop.permute.xlu0 %1601
      %1603 = vrot.lane.b32.xlu0 %v1495, 32
      %v1604 = vpop.permute.xlu0 %1603
      %1605 = vrot.lane.b32.xlu0 %v1496, 32
      %v1606 = vpop.permute.xlu0 %1605
      %1607 = vrot.lane.b32.xlu0 %v1497, 32
      %v1608 = vpop.permute.xlu0 %1607
      %1609 = vrot.lane.b32.xlu0 %v1498, 32
      %v1610 = vpop.permute.xlu0 %1609
      %1643 = vrot.lane.b32.xlu0 %v1561, 64
      %v1644 = vpop.permute.xlu0 %1643
      %1645 = vrot.lane.b32.xlu0 %v1560, 64
      %v1646 = vpop.permute.xlu0 %1645
      %1647 = vrot.lane.b32.xlu0 %v1559, 64
      %v1648 = vpop.permute.xlu0 %1647
      %1649 = vrot.lane.b32.xlu0 %v1558, 64
      %v1650 = vpop.permute.xlu0 %1649
      %1651 = vrot.lane.b32.xlu0 %v1557, 64
      %v1652 = vpop.permute.xlu0 %1651
      %1653 = vrot.lane.b32.xlu0 %v1556, 64
      %v1654 = vpop.permute.xlu0 %1653
      %1655 = vrot.lane.b32.xlu0 %v1555, 64
      %v1656 = vpop.permute.xlu0 %1655
      %1657 = vrot.lane.b32.xlu0 %v1554, 64
      %v1658 = vpop.permute.xlu0 %1657
      %1659 = vrot.lane.b32.xlu0 %v1553, 64
      %v1660 = vpop.permute.xlu0 %1659
      %1661 = vrot.lane.b32.xlu0 %v1552, 64
      %v1662 = vpop.permute.xlu0 %1661
      %1663 = vrot.lane.b32.xlu0 %v1551, 64
      %v1664 = vpop.permute.xlu0 %1663
      %1665 = vrot.lane.b32.xlu0 %v1550, 64
      %v1666 = vpop.permute.xlu0 %1665
      %1667 = vrot.lane.b32.xlu0 %v1549, 64
      %v1668 = vpop.permute.xlu0 %1667
      %1669 = vrot.lane.b32.xlu0 %v1548, 64
      %v1670 = vpop.permute.xlu0 %1669
      %1671 = vrot.lane.b32.xlu0 %v1547, 64
      %v1672 = vpop.permute.xlu0 %1671
      %1673 = vrot.lane.b32.xlu0 %v1562, 64
      %v1674 = vpop.permute.xlu0 %1673
      %v1691 = vsel %vm522, %v1530, %v1580
      %v1692 = vsel %vm522, %v1529, %v1582
      %v1693 = vsel %vm522, %v1528, %v1584
      %v1694 = vsel %vm522, %v1527, %v1586
      %v1695 = vsel %vm522, %v1526, %v1588
      %v1696 = vsel %vm522, %v1525, %v1590
      %v1697 = vsel %vm522, %v1524, %v1592
      %v1698 = vsel %vm522, %v1523, %v1594
      %v1699 = vsel %vm522, %v1522, %v1596
      %v1700 = vsel %vm522, %v1521, %v1598
      %v1701 = vsel %vm522, %v1520, %v1600
      %v1702 = vsel %vm522, %v1519, %v1602
      %v1703 = vsel %vm522, %v1518, %v1604
      %v1704 = vsel %vm522, %v1517, %v1606
      %v1705 = vsel %vm522, %v1516, %v1608
      %v1706 = vsel %vm522, %v1515, %v1610
      %v1707 = vsel %vm539, %v1691, %v1644
      %v1708 = vsel %vm539, %v1692, %v1646
      %v1709 = vsel %vm539, %v1693, %v1648
      %v1710 = vsel %vm539, %v1694, %v1650
      %v1711 = vsel %vm539, %v1695, %v1652
      %v1712 = vsel %vm539, %v1696, %v1654
      %v1713 = vsel %vm539, %v1697, %v1656
      %v1714 = vsel %vm539, %v1698, %v1658
      %v1715 = vsel %vm539, %v1699, %v1660
      %v1716 = vsel %vm539, %v1700, %v1662
      %v1717 = vsel %vm539, %v1701, %v1664
      %v1718 = vsel %vm539, %v1702, %v1666
      %v1719 = vsel %vm539, %v1703, %v1668
      %v1720 = vsel %vm539, %v1704, %v1670
      %v1721 = vsel %vm539, %v1705, %v1672
      %v1722 = vsel %vm539, %v1706, %v1674
      %v1724 = vsel %vm562, %v1707, 0
      %v1727 = vsel %vm562, %v1708, 0
      %v1730 = vsel %vm562, %v1709, 0
      %v1733 = vsel %vm562, %v1710, 0
      %v1736 = vsel %vm562, %v1711, 0
      %v1739 = vsel %vm562, %v1712, 0
      %v1742 = vsel %vm562, %v1713, 0
      %v1745 = vsel %vm562, %v1714, 0
      %v1748 = vsel %vm562, %v1715, 0
      %v1751 = vsel %vm562, %v1716, 0
      %v1754 = vsel %vm562, %v1717, 0
      %v1757 = vsel %vm562, %v1718, 0
      %v1760 = vsel %vm562, %v1719, 0
      %v1763 = vsel %vm562, %v1720, 0
      %v1766 = vsel %vm562, %v1721, 0
      %v1769 = vsel %vm562, %v1722, 0
      %1771 = vmatprep.subr.mxu0 0.0
      %1772 = vmatpush1.msra.mxu0 0.0
      %1773 = vmatprep.subr.mxu0 0.0
      %1774 = vmatpush1.msra.mxu0 0.0
      %1775 = vmatprep.subr.mxu0 0.0
      %1776 = vmatpush1.msra.mxu0 0.0
      %1777 = vmatprep.subr.mxu0 0.0
      %1778 = vmatpush1.msra.mxu0 0.0
      %1779 = vmatprep.subr.mxu0 0.0
      %1780 = vmatpush1.msra.mxu0 %v319
      %1781 = vmatprep.subr.mxu0 0.0
      %1782 = vmatpush1.msra.mxu0 %v318
      %1783 = vmatprep.subr.mxu0 0.0
      %1784 = vmatpush1.msra.mxu0 %v317
      %1785 = vmatprep.subr.mxu0 0.0
      %1786 = vmatpush1.msra.mxu0 %v316
      %1787 = vmatprep.subr.mxu0 0.0
      %1788 = vmatpush1.msra.mxu0 %v315
      %1789 = vmatprep.subr.mxu0 0.0
      %1790 = vmatpush1.msra.mxu0 %v314
      %1791 = vmatprep.subr.mxu0 0.0
      %1792 = vmatpush1.msra.mxu0 %v313
      %1793 = vmatprep.subr.mxu0 0.0
      %1794 = vmatpush1.msra.mxu0 %v312
      %1795 = vmatprep.subr.mxu0 0.0
      %1796 = vmatpush1.msra.mxu0 %v311
      %1797 = vmatprep.subr.mxu0 0.0
      %1798 = vmatpush1.msra.mxu0 %v310
      %1799 = vmatprep.subr.mxu0 0.0
      %1800 = vmatpush1.msra.mxu0 %v309
      %1801 = vmatprep.subr.mxu0 0.0
      %1802 = vmatpush1.msra.mxu0 %v308
      %1803 = vmatprep.subr.mxu0 0.0
      %1804 = vmatpush2.msra.mxu0 0.0
      %1805 = vmatprep.subr.mxu0 0.0
      %1806 = vmatpush2.msra.mxu0 0.0
      %1807 = vmatprep.subr.mxu0 0.0
      %1808 = vmatpush2.msra.mxu0 0.0
      %1809 = vmatprep.subr.mxu0 0.0
      %1810 = vmatpush2.msra.mxu0 0.0
      %1811 = vmatprep.subr.mxu0 0.0
      %1812 = vmatpush2.msra.mxu0 0.0
      %1813 = vmatprep.subr.mxu0 0.0
      %1814 = vmatpush2.msra.mxu0 0.0
      %1815 = vmatprep.subr.mxu0 0.0
      %1816 = vmatpush2.msra.mxu0 0.0
      %1817 = vmatprep.subr.mxu0 0.0
      %1818 = vmatpush2.msra.mxu0 0.0
      %1819 = vmatprep.subr.mxu0 0.0
      %1820 = vmatpush2.msra.mxu0 0.0
      %1821 = vmatprep.subr.mxu0 0.0
      %1822 = vmatpush2.msra.mxu0 0.0
      %1823 = vmatprep.subr.mxu0 0.0
      %1824 = vmatpush2.msra.mxu0 0.0
      %1825 = vmatprep.subr.mxu0 0.0
      %1826 = vmatpush2.msra.mxu0 0.0
      %1827 = vmatprep.subr.mxu0 0.0
      %1828 = vmatpush2.msra.mxu0 0.0
      %1829 = vmatprep.subr.mxu0 0.0
      %1830 = vmatpush2.msra.mxu0 0.0
      %1831 = vmatprep.subr.mxu0 0.0
      %1832 = vmatpush2.msra.mxu0 0.0
      %1833 = vmatprep.subr.mxu0 0.0
      %1834 = vmatpush2.msra.mxu0 0.0
      %1835 = vmatprep.mubr.f32.mxu0 0.0
      %1836 = vmatmul.mubr.f32.gmra.mxu0 %v1724
      %v1837 = vpop.f32.mrf.mxu0
      %v1838 = vadd.f32 %v1272, %v1837
      %v1839 = vpop.f32.mrf.mxu0
      %1840 = vmatprep.mubr.f32.mxu0 0.0
      %1841 = vmatmul.mubr.f32.gmra.mxu0 %v1727
      %v1842 = vpop.f32.mrf.mxu0
      %v1843 = vadd.f32 %v1272, %v1842
      %v1844 = vpop.f32.mrf.mxu0
      %1845 = vmatprep.mubr.f32.mxu0 0.0
      %1846 = vmatmul.mubr.f32.gmra.mxu0 %v1730
      %v1847 = vpop.f32.mrf.mxu0
      %v1848 = vadd.f32 %v1272, %v1847
      %v1849 = vpop.f32.mrf.mxu0
      %1850 = vmatprep.mubr.f32.mxu0 0.0
      %1851 = vmatmul.mubr.f32.gmra.mxu0 %v1733
      %v1852 = vpop.f32.mrf.mxu0
      %v1853 = vadd.f32 %v1272, %v1852
      %v1854 = vpop.f32.mrf.mxu0
      %1855 = vmatprep.mubr.f32.mxu0 0.0
      %1856 = vmatmul.mubr.f32.gmra.mxu0 %v1736
      %v1857 = vpop.f32.mrf.mxu0
      %v1858 = vadd.f32 %v1272, %v1857
      %v1859 = vpop.f32.mrf.mxu0
      %1860 = vmatprep.mubr.f32.mxu0 0.0
      %1861 = vmatmul.mubr.f32.gmra.mxu0 %v1739
      %v1862 = vpop.f32.mrf.mxu0
      %v1863 = vadd.f32 %v1272, %v1862
      %v1864 = vpop.f32.mrf.mxu0
      %1865 = vmatprep.mubr.f32.mxu0 0.0
      %1866 = vmatmul.mubr.f32.gmra.mxu0 %v1742
      %v1867 = vpop.f32.mrf.mxu0
      %v1868 = vadd.f32 %v1272, %v1867
      %v1869 = vpop.f32.mrf.mxu0
      %1870 = vmatprep.mubr.f32.mxu0 0.0
      %1871 = vmatmul.mubr.f32.gmra.mxu0 %v1745
      %v1872 = vpop.f32.mrf.mxu0
      %v1873 = vadd.f32 %v1272, %v1872
      %v1874 = vpop.f32.mrf.mxu0
      %1875 = vmatprep.mubr.f32.mxu0 0.0
      %1876 = vmatmul.mubr.f32.gmra.mxu0 %v1748
      %v1877 = vpop.f32.mrf.mxu0
      %v1878 = vadd.f32 %v1272, %v1877
      %v1879 = vpop.f32.mrf.mxu0
      %1880 = vmatprep.mubr.f32.mxu0 0.0
      %1881 = vmatmul.mubr.f32.gmra.mxu0 %v1751
      %v1882 = vpop.f32.mrf.mxu0
      %v1883 = vadd.f32 %v1272, %v1882
      %v1884 = vpop.f32.mrf.mxu0
      %1885 = vmatprep.mubr.f32.mxu0 0.0
      %1886 = vmatmul.mubr.f32.gmra.mxu0 %v1754
      %v1887 = vpop.f32.mrf.mxu0
      %v1888 = vadd.f32 %v1272, %v1887
      %v1889 = vpop.f32.mrf.mxu0
      %1890 = vmatprep.mubr.f32.mxu0 0.0
      %1891 = vmatmul.mubr.f32.gmra.mxu0 %v1757
      %v1892 = vpop.f32.mrf.mxu0
      %v1893 = vadd.f32 %v1272, %v1892
      %v1894 = vpop.f32.mrf.mxu0
      %1895 = vmatprep.mubr.f32.mxu0 0.0
      %1896 = vmatmul.mubr.f32.gmra.mxu0 %v1760
      %v1897 = vpop.f32.mrf.mxu0
      %v1898 = vadd.f32 %v1272, %v1897
      %v1899 = vpop.f32.mrf.mxu0
      %1900 = vmatprep.mubr.f32.mxu0 0.0
      %1901 = vmatmul.mubr.f32.gmra.mxu0 %v1763
      %v1902 = vpop.f32.mrf.mxu0
      %v1903 = vadd.f32 %v1272, %v1902
      %v1904 = vpop.f32.mrf.mxu0
      %1905 = vmatprep.mubr.f32.mxu0 0.0
      %1906 = vmatmul.mubr.f32.gmra.mxu0 %v1766
      %v1907 = vpop.f32.mrf.mxu0
      %v1908 = vadd.f32 %v1272, %v1907
      %v1909 = vpop.f32.mrf.mxu0
      %1910 = vmatprep.mubr.f32.mxu0 0.0
      %1911 = vmatmul.mubr.f32.gmra.mxu0 %v1769
      %v1912 = vpop.f32.mrf.mxu0
      %v1913 = vadd.f32 %v1272, %v1912
      %v1914 = vpop.f32.mrf.mxu0
      %1915 = vdwg.mxu0
      %v1916 = vsel %vm1011, %v1838, 0.0
      %v1917 = vsel %vm1012, %v1843, 0.0
      %v1918 = vsel %vm1013, %v1848, 0.0
      %v1919 = vsel %vm1014, %v1853, 0.0
      %v1920 = vsel %vm1015, %v1858, 0.0
      %v1921 = vsel %vm1016, %v1863, 0.0
      %v1922 = vsel %vm1017, %v1868, 0.0
      %v1923 = vsel %vm1018, %v1873, 0.0
      %v1924 = vsel %vm1019, %v1878, 0.0
      %v1925 = vsel %vm1020, %v1883, 0.0
      %v1926 = vsel %vm1021, %v1888, 0.0
      %v1927 = vsel %vm1022, %v1893, 0.0
      %v1928 = vsel %vm1023, %v1898, 0.0
      %v1929 = vsel %vm1024, %v1903, 0.0
      %v1930 = vsel %vm1025, %v1908, 0.0
      %v1931 = vsel %vm1026, %v1913, 0.0
      %v1932 = vrot.slane %v1916, 1
      %v1933 = vrot.slane %v1917, 1
      %v1934 = vrot.slane %v1918, 1
      %v1935 = vrot.slane %v1919, 1
      %v1936 = vrot.slane %v1920, 1
      %v1937 = vrot.slane %v1921, 1
      %v1938 = vrot.slane %v1922, 1
      %v1939 = vrot.slane %v1923, 1
      %v1940 = vrot.slane %v1924, 1
      %v1941 = vrot.slane %v1925, 1
      %v1942 = vrot.slane %v1926, 1
      %v1943 = vrot.slane %v1927, 1
      %v1944 = vrot.slane %v1928, 1
      %v1945 = vrot.slane %v1929, 1
      %v1946 = vrot.slane %v1930, 1
      %v1947 = vrot.slane %v1931, 1
      %v1948 = vsel %vm344, %v1946, %v1947
      %v1949 = vsel %vm344, %v1945, %v1946
      %v1950 = vsel %vm344, %v1944, %v1945
      %v1951 = vsel %vm344, %v1943, %v1944
      %v1952 = vsel %vm344, %v1942, %v1943
      %v1953 = vsel %vm344, %v1941, %v1942
      %v1954 = vsel %vm344, %v1940, %v1941
      %v1955 = vsel %vm344, %v1939, %v1940
      %v1956 = vsel %vm344, %v1938, %v1939
      %v1957 = vsel %vm344, %v1937, %v1938
      %v1958 = vsel %vm344, %v1936, %v1937
      %v1959 = vsel %vm344, %v1935, %v1936
      %v1960 = vsel %vm344, %v1934, %v1935
      %v1961 = vsel %vm344, %v1933, %v1934
      %v1962 = vsel %vm344, %v1932, %v1933
      %v1963 = vsel %vm344, %v1947, %v1932
      %v1964 = vrot.slane %v1916, 2
      %v1965 = vrot.slane %v1917, 2
      %v1966 = vrot.slane %v1918, 2
      %v1967 = vrot.slane %v1919, 2
      %v1968 = vrot.slane %v1920, 2
      %v1969 = vrot.slane %v1921, 2
      %v1970 = vrot.slane %v1922, 2
      %v1971 = vrot.slane %v1923, 2
      %v1972 = vrot.slane %v1924, 2
      %v1973 = vrot.slane %v1925, 2
      %v1974 = vrot.slane %v1926, 2
      %v1975 = vrot.slane %v1927, 2
      %v1976 = vrot.slane %v1928, 2
      %v1977 = vrot.slane %v1929, 2
      %v1978 = vrot.slane %v1930, 2
      %v1979 = vrot.slane %v1931, 2
      %v1980 = vsel %vm377, %v1978, %v1979
      %v1981 = vsel %vm377, %v1977, %v1978
      %v1982 = vsel %vm377, %v1976, %v1977
      %v1983 = vsel %vm377, %v1975, %v1976
      %v1984 = vsel %vm377, %v1974, %v1975
      %v1985 = vsel %vm377, %v1973, %v1974
      %v1986 = vsel %vm377, %v1972, %v1973
      %v1987 = vsel %vm377, %v1971, %v1972
      %v1988 = vsel %vm377, %v1970, %v1971
      %v1989 = vsel %vm377, %v1969, %v1970
      %v1990 = vsel %vm377, %v1968, %v1969
      %v1991 = vsel %vm377, %v1967, %v1968
      %v1992 = vsel %vm377, %v1966, %v1967
      %v1993 = vsel %vm377, %v1965, %v1966
      %v1994 = vsel %vm377, %v1964, %v1965
      %v1995 = vsel %vm377, %v1979, %v1964
      %v1996 = vmax.f32 %v1962, %v1994
      %v1997 = vmax.f32 %v1961, %v1993
      %v1998 = vmax.f32 %v1960, %v1992
      %v1999 = vmax.f32 %v1959, %v1991
      %v2000 = vmax.f32 %v1958, %v1990
      %v2001 = vmax.f32 %v1957, %v1989
      %v2002 = vmax.f32 %v1956, %v1988
      %v2003 = vmax.f32 %v1955, %v1987
      %v2004 = vmax.f32 %v1954, %v1986
      %v2005 = vmax.f32 %v1953, %v1985
      %v2006 = vmax.f32 %v1952, %v1984
      %v2007 = vmax.f32 %v1951, %v1983
      %v2008 = vmax.f32 %v1950, %v1982
      %v2009 = vmax.f32 %v1949, %v1981
      %v2010 = vmax.f32 %v1948, %v1980
      %v2011 = vmax.f32 %v1963, %v1995
      %v2012 = vmax.f32 %v1916, %v1996
      %v2013 = vmax.f32 %v1917, %v1997
      %v2014 = vmax.f32 %v1918, %v1998
      %v2015 = vmax.f32 %v1919, %v1999
      %v2016 = vmax.f32 %v1920, %v2000
      %v2017 = vmax.f32 %v1921, %v2001
      %v2018 = vmax.f32 %v1922, %v2002
      %v2019 = vmax.f32 %v1923, %v2003
      %v2020 = vmax.f32 %v1924, %v2004
      %v2021 = vmax.f32 %v1925, %v2005
      %v2022 = vmax.f32 %v1926, %v2006
      %v2023 = vmax.f32 %v1927, %v2007
      %v2024 = vmax.f32 %v1928, %v2008
      %v2025 = vmax.f32 %v1929, %v2009
      %v2026 = vmax.f32 %v1930, %v2010
      %v2027 = vmax.f32 %v1931, %v2011
      %2028 = vst.msk [vmem:[#allocation2] sm:$0xff] %vm522, %v2012
      %2029 = vst.msk [vmem:[#allocation2 + $0x8] sm:$0xff] %vm522, %v2013
      %2030 = vst.msk [vmem:[#allocation2 + $0x10] sm:$0xff] %vm522, %v2014
      %2031 = vst.msk [vmem:[#allocation2 + $0x18] sm:$0xff] %vm522, %v2015
      %2032 = vst.msk [vmem:[#allocation2 + $0x20] sm:$0xff] %vm522, %v2016
      %2033 = vst.msk [vmem:[#allocation2 + $0x28] sm:$0xff] %vm522, %v2017
      %2034 = vst.msk [vmem:[#allocation2 + $0x30] sm:$0xff] %vm522, %v2018
      %2035 = vst.msk [vmem:[#allocation2 + $0x38] sm:$0xff] %vm522, %v2019
      %2036 = vst.msk [vmem:[#allocation2 + $0x40] sm:$0xff] %vm522, %v2020
      %2037 = vst.msk [vmem:[#allocation2 + $0x48] sm:$0xff] %vm522, %v2021
      %2038 = vst.msk [vmem:[#allocation2 + $0x50] sm:$0xff] %vm522, %v2022
      %2039 = vst.msk [vmem:[#allocation2 + $0x58] sm:$0xff] %vm522, %v2023
      %2040 = vst.msk [vmem:[#allocation2 + $0x60] sm:$0xff] %vm522, %v2024
      %2041 = vst.msk [vmem:[#allocation2 + $0x68] sm:$0xff] %vm522, %v2025
      %2042 = vst.msk [vmem:[#allocation2 + $0x70] sm:$0xff] %vm522, %v2026
      %2043 = vst.msk [vmem:[#allocation2 + $0x78] sm:$0xff] %vm522, %v2027
      %v2044 = vld [vmem:[#allocation2] ss:$2 sm:$0xff]
      %s2045 = scalar_lea.vmem [#allocation2], 16
      %v2046 = vld [vmem:[%s2045] ss:$2 sm:$0xff]
      %s2047 = scalar_lea.vmem [#allocation2], 32
      %v2048 = vld [vmem:[%s2047] ss:$2 sm:$0xff]
      %s2049 = scalar_lea.vmem [#allocation2], 48
      %v2050 = vld [vmem:[%s2049] ss:$2 sm:$0xff]
      %s2051 = scalar_lea.vmem [#allocation2], 64
      %v2052 = vld [vmem:[%s2051] ss:$2 sm:$0xff]
      %s2053 = scalar_lea.vmem [#allocation2], 80
      %v2054 = vld [vmem:[%s2053] ss:$2 sm:$0xff]
      %s2055 = scalar_lea.vmem [#allocation2], 96
      %v2056 = vld [vmem:[%s2055] ss:$2 sm:$0xff]
      %s2057 = scalar_lea.vmem [#allocation2], 112
      %v2058 = vld [vmem:[%s2057] ss:$2 sm:$0xff]
      %vm2059 = vcmp.lt.s32.totalorder %v343, 0
      %v2060 = vsub.s32 0, %v343
      %v2061 = vsel %vm2059, %v2060, %v343
      %v2062 = vshrl.u32 %v2061, 3
      %v2063 = vand.u32 %v2061, 7
      %v2064 = vsub.s32 0, %v2063
      %v2065 = vsel %vm2059, %v2064, %v2063
      %vm2066 = vcmp.lt.s32.totalorder %v756, 0
      %v2067 = vsub.s32 0, %v756
      %v2068 = vsel %vm2066, %v2067, %v756
      %v2069 = vshrl.u32 %v2068, 3
      %v2070 = vand.u32 %v2068, 7
      %v2071 = vsub.s32 0, %v2070
      %v2072 = vsel %vm2066, %v2071, %v2070
      %vm2073 = vcmp.lt.s32.totalorder %v757, 0
      %v2074 = vsub.s32 0, %v757
      %v2075 = vsel %vm2073, %v2074, %v757
      %v2076 = vshrl.u32 %v2075, 3
      %v2077 = vand.u32 %v2075, 7
      %v2078 = vsub.s32 0, %v2077
      %v2079 = vsel %vm2073, %v2078, %v2077
      %vm2080 = vcmp.lt.s32.totalorder %v758, 0
      %v2081 = vsub.s32 0, %v758
      %v2082 = vsel %vm2080, %v2081, %v758
      %v2083 = vshrl.u32 %v2082, 3
      %v2084 = vand.u32 %v2082, 7
      %v2085 = vsub.s32 0, %v2084
      %v2086 = vsel %vm2080, %v2085, %v2084
      %vm2087 = vcmp.lt.s32.totalorder %v759, 0
      %v2088 = vsub.s32 0, %v759
      %v2089 = vsel %vm2087, %v2088, %v759
      %v2090 = vshrl.u32 %v2089, 3
      %v2091 = vand.u32 %v2089, 7
      %v2092 = vsub.s32 0, %v2091
      %v2093 = vsel %vm2087, %v2092, %v2091
      %vm2094 = vcmp.lt.s32.totalorder %v760, 0
      %v2095 = vsub.s32 0, %v760
      %v2096 = vsel %vm2094, %v2095, %v760
      %v2097 = vshrl.u32 %v2096, 3
      %v2098 = vand.u32 %v2096, 7
      %v2099 = vsub.s32 0, %v2098
      %v2100 = vsel %vm2094, %v2099, %v2098
      %vm2101 = vcmp.lt.s32.totalorder %v761, 0
      %v2102 = vsub.s32 0, %v761
      %v2103 = vsel %vm2101, %v2102, %v761
      %v2104 = vshrl.u32 %v2103, 3
      %v2105 = vand.u32 %v2103, 7
      %v2106 = vsub.s32 0, %v2105
      %v2107 = vsel %vm2101, %v2106, %v2105
      %vm2108 = vcmp.lt.s32.totalorder %v762, 0
      %v2109 = vsub.s32 0, %v762
      %v2110 = vsel %vm2108, %v2109, %v762
      %v2111 = vshrl.u32 %v2110, 3
      %v2112 = vand.u32 %v2110, 7
      %v2113 = vsub.s32 0, %v2112
      %v2114 = vsel %vm2108, %v2113, %v2112
      %vm2115 = vcmp.ne.s32.totalorder %v2065, 0
      %vm2116 = vcmp.ne.s32.totalorder %v2072, 0
      %vm2117 = vcmp.ne.s32.totalorder %v2079, 0
      %vm2118 = vcmp.ne.s32.totalorder %v2086, 0
      %vm2119 = vcmp.ne.s32.totalorder %v2093, 0
      %vm2120 = vcmp.ne.s32.totalorder %v2100, 0
      %vm2121 = vcmp.ne.s32.totalorder %v2107, 0
      %vm2122 = vcmp.ne.s32.totalorder %v2114, 0
      %vm2123 = vcmp.lt.s32.totalorder %v2065, 0
      %vm2124 = vcmp.lt.s32.totalorder %v2072, 0
      %vm2125 = vcmp.lt.s32.totalorder %v2079, 0
      %vm2126 = vcmp.lt.s32.totalorder %v2086, 0
      %vm2127 = vcmp.lt.s32.totalorder %v2093, 0
      %vm2128 = vcmp.lt.s32.totalorder %v2100, 0
      %vm2129 = vcmp.lt.s32.totalorder %v2107, 0
      %vm2130 = vcmp.lt.s32.totalorder %v2114, 0
      %vm2131 = vmand %vm2123, %vm2115
      %vm2132 = vmand %vm2124, %vm2116
      %vm2133 = vmand %vm2125, %vm2117
      %vm2134 = vmand %vm2126, %vm2118
      %vm2135 = vmand %vm2127, %vm2119
      %vm2136 = vmand %vm2128, %vm2120
      %vm2137 = vmand %vm2129, %vm2121
      %vm2138 = vmand %vm2130, %vm2122
      %v2139 = vadd.s32 %v2065, 8
      %v2140 = vadd.s32 %v2072, 8
      %v2141 = vadd.s32 %v2079, 8
      %v2142 = vadd.s32 %v2086, 8
      %v2143 = vadd.s32 %v2093, 8
      %v2144 = vadd.s32 %v2100, 8
      %v2145 = vadd.s32 %v2107, 8
      %v2146 = vadd.s32 %v2114, 8
      %v2147 = vsel %vm2131, %v2139, %v2065
      %v2148 = vsel %vm2132, %v2140, %v2072
      %v2149 = vsel %vm2133, %v2141, %v2079
      %v2150 = vsel %vm2134, %v2142, %v2086
      %v2151 = vsel %vm2135, %v2143, %v2093
      %v2152 = vsel %vm2136, %v2144, %v2100
      %v2153 = vsel %vm2137, %v2145, %v2107
      %v2154 = vsel %vm2138, %v2146, %v2114
      %vm2155 = vcmp.lt.s32.totalorder %v2147, 7
      %vm2156 = vcmp.lt.s32.totalorder %v2148, 7
      %vm2157 = vcmp.lt.s32.totalorder %v2149, 7
      %vm2158 = vcmp.lt.s32.totalorder %v2150, 7
      %vm2159 = vcmp.lt.s32.totalorder %v2151, 7
      %vm2160 = vcmp.lt.s32.totalorder %v2152, 7
      %vm2161 = vcmp.lt.s32.totalorder %v2153, 7
      %vm2162 = vcmp.lt.s32.totalorder %v2154, 7
      %v2163 = vmax.f32 %v2044, 0.0
      %v2164 = vmax.f32 %v2046, 0.0
      %v2165 = vmax.f32 %v2048, 0.0
      %v2166 = vmax.f32 %v2050, 0.0
      %v2167 = vmax.f32 %v2052, 0.0
      %v2168 = vmax.f32 %v2054, 0.0
      %v2169 = vmax.f32 %v2056, 0.0
      %v2170 = vmax.f32 %v2058, 0.0
      %v2171 = vsel %vm2155, 1, 0
      %v2172 = vsel %vm2156, 1, 0
      %v2173 = vsel %vm2157, 1, 0
      %v2174 = vsel %vm2158, 1, 0
      %v2175 = vsel %vm2159, 1, 0
      %v2176 = vsel %vm2160, 1, 0
      %v2177 = vsel %vm2161, 1, 0
      %v2178 = vsel %vm2162, 1, 0
      %vm2179 = vcmp.eq.s32.totalorder %v2171, 1
      %vm2180 = vcmp.eq.s32.totalorder %v2172, 1
      %vm2181 = vcmp.eq.s32.totalorder %v2173, 1
      %vm2182 = vcmp.eq.s32.totalorder %v2174, 1
      %vm2183 = vcmp.eq.s32.totalorder %v2175, 1
      %vm2184 = vcmp.eq.s32.totalorder %v2176, 1
      %vm2185 = vcmp.eq.s32.totalorder %v2177, 1
      %vm2186 = vcmp.eq.s32.totalorder %v2178, 1
      %v2187 = vsel %vm2179, %v2163, 0.0
      %v2188 = vsel %vm2180, %v2164, 0.0
      %v2189 = vsel %vm2181, %v2165, 0.0
      %v2190 = vsel %vm2182, %v2166, 0.0
      %v2191 = vsel %vm2183, %v2167, 0.0
      %v2192 = vsel %vm2184, %v2168, 0.0
      %v2193 = vsel %vm2185, %v2169, 0.0
      %v2194 = vsel %vm2186, %v2170, 0.0
      %v2195 = vrot.slane %v2187, 7
      %v2196 = vrot.slane %v2188, 7
      %v2197 = vrot.slane %v2189, 7
      %v2198 = vrot.slane %v2190, 7
      %v2199 = vrot.slane %v2191, 7
      %v2200 = vrot.slane %v2192, 7
      %v2201 = vrot.slane %v2193, 7
      %v2202 = vrot.slane %v2194, 7
      %v2203 = vsel %vm1059, %v2201, %v2202
      %v2204 = vsel %vm1059, %v2200, %v2201
      %v2205 = vsel %vm1059, %v2199, %v2200
      %v2206 = vsel %vm1059, %v2198, %v2199
      %v2207 = vsel %vm1059, %v2197, %v2198
      %v2208 = vsel %vm1059, %v2196, %v2197
      %v2209 = vsel %vm1059, %v2195, %v2196
      %v2210 = vsel %vm1059, %v2202, %v2195
      %v2211 = vrot.slane %v2187, 1
      %v2212 = vrot.slane %v2188, 1
      %v2213 = vrot.slane %v2189, 1
      %v2214 = vrot.slane %v2190, 1
      %v2215 = vrot.slane %v2191, 1
      %v2216 = vrot.slane %v2192, 1
      %v2217 = vrot.slane %v2193, 1
      %v2218 = vrot.slane %v2194, 1
      %v2219 = vsel %vm344, %v2217, %v2218
      %v2220 = vsel %vm344, %v2216, %v2217
      %v2221 = vsel %vm344, %v2215, %v2216
      %v2222 = vsel %vm344, %v2214, %v2215
      %v2223 = vsel %vm344, %v2213, %v2214
      %v2224 = vsel %vm344, %v2212, %v2213
      %v2225 = vsel %vm344, %v2211, %v2212
      %v2226 = vsel %vm344, %v2218, %v2211
      %2235 = vrot.lane.b32.xlu0 %v2187, 32
      %v2236 = vpop.permute.xlu0 %2235
      %2237 = vrot.lane.b32.xlu0 %v2188, 32
      %v2238 = vpop.permute.xlu0 %2237
      %2239 = vrot.lane.b32.xlu0 %v2189, 32
      %v2240 = vpop.permute.xlu0 %2239
      %2241 = vrot.lane.b32.xlu0 %v2190, 32
      %v2242 = vpop.permute.xlu0 %2241
      %2243 = vrot.lane.b32.xlu0 %v2191, 32
      %v2244 = vpop.permute.xlu0 %2243
      %2245 = vrot.lane.b32.xlu0 %v2192, 32
      %v2246 = vpop.permute.xlu0 %2245
      %2247 = vrot.lane.b32.xlu0 %v2193, 32
      %v2248 = vpop.permute.xlu0 %2247
      %2249 = vrot.lane.b32.xlu0 %v2194, 32
      %v2250 = vpop.permute.xlu0 %2249
      %2267 = vrot.lane.b32.xlu0 %v2225, 64
      %v2268 = vpop.permute.xlu0 %2267
      %2269 = vrot.lane.b32.xlu0 %v2224, 64
      %v2270 = vpop.permute.xlu0 %2269
      %2271 = vrot.lane.b32.xlu0 %v2223, 64
      %v2272 = vpop.permute.xlu0 %2271
      %2273 = vrot.lane.b32.xlu0 %v2222, 64
      %v2274 = vpop.permute.xlu0 %2273
      %2275 = vrot.lane.b32.xlu0 %v2221, 64
      %v2276 = vpop.permute.xlu0 %2275
      %2277 = vrot.lane.b32.xlu0 %v2220, 64
      %v2278 = vpop.permute.xlu0 %2277
      %2279 = vrot.lane.b32.xlu0 %v2219, 64
      %v2280 = vpop.permute.xlu0 %2279
      %2281 = vrot.lane.b32.xlu0 %v2226, 64
      %v2282 = vpop.permute.xlu0 %2281
      %v2291 = vsel %vm522, %v2210, %v2236
      %v2292 = vsel %vm522, %v2209, %v2238
      %v2293 = vsel %vm522, %v2208, %v2240
      %v2294 = vsel %vm522, %v2207, %v2242
      %v2295 = vsel %vm522, %v2206, %v2244
      %v2296 = vsel %vm522, %v2205, %v2246
      %v2297 = vsel %vm522, %v2204, %v2248
      %v2298 = vsel %vm522, %v2203, %v2250
      %v2299 = vsel %vm539, %v2291, %v2268
      %v2300 = vsel %vm539, %v2292, %v2270
      %v2301 = vsel %vm539, %v2293, %v2272
      %v2302 = vsel %vm539, %v2294, %v2274
      %v2303 = vsel %vm539, %v2295, %v2276
      %v2304 = vsel %vm539, %v2296, %v2278
      %v2305 = vsel %vm539, %v2297, %v2280
      %v2306 = vsel %vm539, %v2298, %v2282
      %v2308 = vsel %vm562, %v2299, 0
      %v2311 = vsel %vm562, %v2300, 0
      %v2314 = vsel %vm562, %v2301, 0
      %v2317 = vsel %vm562, %v2302, 0
      %v2320 = vsel %vm562, %v2303, 0
      %v2323 = vsel %vm562, %v2304, 0
      %v2326 = vsel %vm562, %v2305, 0
      %v2329 = vsel %vm562, %v2306, 0
      %2331 = vmatprep.subr.mxu0 0.0
      %2332 = vmatpush1.msra.mxu0 0.0
      %2333 = vmatprep.subr.mxu0 0.0
      %2334 = vmatpush1.msra.mxu0 0.0
      %2335 = vmatprep.subr.mxu0 0.0
      %2336 = vmatpush1.msra.mxu0 0.0
      %2337 = vmatprep.subr.mxu0 0.0
      %2338 = vmatpush1.msra.mxu0 0.0
      %2339 = vmatprep.subr.mxu0 0.0
      %2340 = vmatpush1.msra.mxu0 %v319
      %2341 = vmatprep.subr.mxu0 0.0
      %2342 = vmatpush1.msra.mxu0 %v318
      %2343 = vmatprep.subr.mxu0 0.0
      %2344 = vmatpush1.msra.mxu0 %v317
      %2345 = vmatprep.subr.mxu0 0.0
      %2346 = vmatpush1.msra.mxu0 %v316
      %2347 = vmatprep.subr.mxu0 0.0
      %2348 = vmatpush1.msra.mxu0 %v315
      %2349 = vmatprep.subr.mxu0 0.0
      %2350 = vmatpush1.msra.mxu0 %v314
      %2351 = vmatprep.subr.mxu0 0.0
      %2352 = vmatpush1.msra.mxu0 %v313
      %2353 = vmatprep.subr.mxu0 0.0
      %2354 = vmatpush1.msra.mxu0 %v312
      %2355 = vmatprep.subr.mxu0 0.0
      %2356 = vmatpush1.msra.mxu0 %v311
      %2357 = vmatprep.subr.mxu0 0.0
      %2358 = vmatpush1.msra.mxu0 %v310
      %2359 = vmatprep.subr.mxu0 0.0
      %2360 = vmatpush1.msra.mxu0 %v309
      %2361 = vmatprep.subr.mxu0 0.0
      %2362 = vmatpush1.msra.mxu0 %v308
      %2363 = vmatprep.subr.mxu0 0.0
      %2364 = vmatpush2.msra.mxu0 0.0
      %2365 = vmatprep.subr.mxu0 0.0
      %2366 = vmatpush2.msra.mxu0 0.0
      %2367 = vmatprep.subr.mxu0 0.0
      %2368 = vmatpush2.msra.mxu0 0.0
      %2369 = vmatprep.subr.mxu0 0.0
      %2370 = vmatpush2.msra.mxu0 0.0
      %2371 = vmatprep.subr.mxu0 0.0
      %2372 = vmatpush2.msra.mxu0 0.0
      %2373 = vmatprep.subr.mxu0 0.0
      %2374 = vmatpush2.msra.mxu0 0.0
      %2375 = vmatprep.subr.mxu0 0.0
      %2376 = vmatpush2.msra.mxu0 0.0
      %2377 = vmatprep.subr.mxu0 0.0
      %2378 = vmatpush2.msra.mxu0 0.0
      %2379 = vmatprep.subr.mxu0 0.0
      %2380 = vmatpush2.msra.mxu0 0.0
      %2381 = vmatprep.subr.mxu0 0.0
      %2382 = vmatpush2.msra.mxu0 0.0
      %2383 = vmatprep.subr.mxu0 0.0
      %2384 = vmatpush2.msra.mxu0 0.0
      %2385 = vmatprep.subr.mxu0 0.0
      %2386 = vmatpush2.msra.mxu0 0.0
      %2387 = vmatprep.subr.mxu0 0.0
      %2388 = vmatpush2.msra.mxu0 0.0
      %2389 = vmatprep.subr.mxu0 0.0
      %2390 = vmatpush2.msra.mxu0 0.0
      %2391 = vmatprep.subr.mxu0 0.0
      %2392 = vmatpush2.msra.mxu0 0.0
      %2393 = vmatprep.subr.mxu0 0.0
      %2394 = vmatpush2.msra.mxu0 0.0
      %2395 = vmatprep.mubr.f32.mxu0 0.0
      %2396 = vmatmul.mubr.f32.gmra.mxu0 %v2308
      %v2397 = vpop.f32.mrf.mxu0
      %v2398 = vadd.f32 %v1272, %v2397
      %v2399 = vpop.f32.mrf.mxu0
      %2400 = vmatprep.mubr.f32.mxu0 0.0
      %2401 = vmatmul.mubr.f32.gmra.mxu0 %v2311
      %v2402 = vpop.f32.mrf.mxu0
      %v2403 = vadd.f32 %v1272, %v2402
      %v2404 = vpop.f32.mrf.mxu0
      %2405 = vmatprep.mubr.f32.mxu0 0.0
      %2406 = vmatmul.mubr.f32.gmra.mxu0 %v2314
      %v2407 = vpop.f32.mrf.mxu0
      %v2408 = vadd.f32 %v1272, %v2407
      %v2409 = vpop.f32.mrf.mxu0
      %2410 = vmatprep.mubr.f32.mxu0 0.0
      %2411 = vmatmul.mubr.f32.gmra.mxu0 %v2317
      %v2412 = vpop.f32.mrf.mxu0
      %v2413 = vadd.f32 %v1272, %v2412
      %v2414 = vpop.f32.mrf.mxu0
      %2415 = vmatprep.mubr.f32.mxu0 0.0
      %2416 = vmatmul.mubr.f32.gmra.mxu0 %v2320
      %v2417 = vpop.f32.mrf.mxu0
      %v2418 = vadd.f32 %v1272, %v2417
      %v2419 = vpop.f32.mrf.mxu0
      %2420 = vmatprep.mubr.f32.mxu0 0.0
      %2421 = vmatmul.mubr.f32.gmra.mxu0 %v2323
      %v2422 = vpop.f32.mrf.mxu0
      %v2423 = vadd.f32 %v1272, %v2422
      %v2424 = vpop.f32.mrf.mxu0
      %2425 = vmatprep.mubr.f32.mxu0 0.0
      %2426 = vmatmul.mubr.f32.gmra.mxu0 %v2326
      %v2427 = vpop.f32.mrf.mxu0
      %v2428 = vadd.f32 %v1272, %v2427
      %v2429 = vpop.f32.mrf.mxu0
      %2430 = vmatprep.mubr.f32.mxu0 0.0
      %2431 = vmatmul.mubr.f32.gmra.mxu0 %v2329
      %v2432 = vpop.f32.mrf.mxu0
      %v2433 = vadd.f32 %v1272, %v2432
      %v2434 = vpop.f32.mrf.mxu0
      %2435 = vdwg.mxu0
      %v2436 = vmax.f32 %v2398, 0.0
      %v2437 = vmax.f32 %v2403, 0.0
      %v2438 = vmax.f32 %v2408, 0.0
      %v2439 = vmax.f32 %v2413, 0.0
      %v2440 = vmax.f32 %v2418, 0.0
      %v2441 = vmax.f32 %v2423, 0.0
      %v2442 = vmax.f32 %v2428, 0.0
      %v2443 = vmax.f32 %v2433, 0.0
      %v2444 = vsel %vm2179, %v2436, 0.0
      %v2445 = vsel %vm2180, %v2437, 0.0
      %v2446 = vsel %vm2181, %v2438, 0.0
      %v2447 = vsel %vm2182, %v2439, 0.0
      %v2448 = vsel %vm2183, %v2440, 0.0
      %v2449 = vsel %vm2184, %v2441, 0.0
      %v2450 = vsel %vm2185, %v2442, 0.0
      %v2451 = vsel %vm2186, %v2443, 0.0
      %v2452 = vrot.slane %v2444, 7
      %v2453 = vrot.slane %v2445, 7
      %v2454 = vrot.slane %v2446, 7
      %v2455 = vrot.slane %v2447, 7
      %v2456 = vrot.slane %v2448, 7
      %v2457 = vrot.slane %v2449, 7
      %v2458 = vrot.slane %v2450, 7
      %v2459 = vrot.slane %v2451, 7
      %v2460 = vsel %vm1059, %v2458, %v2459
      %v2461 = vsel %vm1059, %v2457, %v2458
      %v2462 = vsel %vm1059, %v2456, %v2457
      %v2463 = vsel %vm1059, %v2455, %v2456
      %v2464 = vsel %vm1059, %v2454, %v2455
      %v2465 = vsel %vm1059, %v2453, %v2454
      %v2466 = vsel %vm1059, %v2452, %v2453
      %v2467 = vsel %vm1059, %v2459, %v2452
      %v2468 = vrot.slane %v2444, 1
      %v2469 = vrot.slane %v2445, 1
      %v2470 = vrot.slane %v2446, 1
      %v2471 = vrot.slane %v2447, 1
      %v2472 = vrot.slane %v2448, 1
      %v2473 = vrot.slane %v2449, 1
      %v2474 = vrot.slane %v2450, 1
      %v2475 = vrot.slane %v2451, 1
      %v2476 = vsel %vm344, %v2474, %v2475
      %v2477 = vsel %vm344, %v2473, %v2474
      %v2478 = vsel %vm344, %v2472, %v2473
      %v2479 = vsel %vm344, %v2471, %v2472
      %v2480 = vsel %vm344, %v2470, %v2471
      %v2481 = vsel %vm344, %v2469, %v2470
      %v2482 = vsel %vm344, %v2468, %v2469
      %v2483 = vsel %vm344, %v2475, %v2468
      %2492 = vrot.lane.b32.xlu0 %v2444, 32
      %v2493 = vpop.permute.xlu0 %2492
      %2494 = vrot.lane.b32.xlu0 %v2445, 32
      %v2495 = vpop.permute.xlu0 %2494
      %2496 = vrot.lane.b32.xlu0 %v2446, 32
      %v2497 = vpop.permute.xlu0 %2496
      %2498 = vrot.lane.b32.xlu0 %v2447, 32
      %v2499 = vpop.permute.xlu0 %2498
      %2500 = vrot.lane.b32.xlu0 %v2448, 32
      %v2501 = vpop.permute.xlu0 %2500
      %2502 = vrot.lane.b32.xlu0 %v2449, 32
      %v2503 = vpop.permute.xlu0 %2502
      %2504 = vrot.lane.b32.xlu0 %v2450, 32
      %v2505 = vpop.permute.xlu0 %2504
      %2506 = vrot.lane.b32.xlu0 %v2451, 32
      %v2507 = vpop.permute.xlu0 %2506
      %2524 = vrot.lane.b32.xlu0 %v2482, 64
      %v2525 = vpop.permute.xlu0 %2524
      %2526 = vrot.lane.b32.xlu0 %v2481, 64
      %v2527 = vpop.permute.xlu0 %2526
      %2528 = vrot.lane.b32.xlu0 %v2480, 64
      %v2529 = vpop.permute.xlu0 %2528
      %2530 = vrot.lane.b32.xlu0 %v2479, 64
      %v2531 = vpop.permute.xlu0 %2530
      %2532 = vrot.lane.b32.xlu0 %v2478, 64
      %v2533 = vpop.permute.xlu0 %2532
      %2534 = vrot.lane.b32.xlu0 %v2477, 64
      %v2535 = vpop.permute.xlu0 %2534
      %2536 = vrot.lane.b32.xlu0 %v2476, 64
      %v2537 = vpop.permute.xlu0 %2536
      %2538 = vrot.lane.b32.xlu0 %v2483, 64
      %v2539 = vpop.permute.xlu0 %2538
      %v2548 = vsel %vm522, %v2467, %v2493
      %v2549 = vsel %vm522, %v2466, %v2495
      %v2550 = vsel %vm522, %v2465, %v2497
      %v2551 = vsel %vm522, %v2464, %v2499
      %v2552 = vsel %vm522, %v2463, %v2501
      %v2553 = vsel %vm522, %v2462, %v2503
      %v2554 = vsel %vm522, %v2461, %v2505
      %v2555 = vsel %vm522, %v2460, %v2507
      %v2556 = vsel %vm539, %v2548, %v2525
      %v2557 = vsel %vm539, %v2549, %v2527
      %v2558 = vsel %vm539, %v2550, %v2529
      %v2559 = vsel %vm539, %v2551, %v2531
      %v2560 = vsel %vm539, %v2552, %v2533
      %v2561 = vsel %vm539, %v2553, %v2535
      %v2562 = vsel %vm539, %v2554, %v2537
      %v2563 = vsel %vm539, %v2555, %v2539
      %v2565 = vsel %vm562, %v2556, 0
      %v2568 = vsel %vm562, %v2557, 0
      %v2571 = vsel %vm562, %v2558, 0
      %v2574 = vsel %vm562, %v2559, 0
      %v2577 = vsel %vm562, %v2560, 0
      %v2580 = vsel %vm562, %v2561, 0
      %v2583 = vsel %vm562, %v2562, 0
      %v2586 = vsel %vm562, %v2563, 0
      %2588 = vmatprep.subr.mxu0 0.0
      %2589 = vmatpush1.msra.mxu0 0.0
      %2590 = vmatprep.subr.mxu0 0.0
      %2591 = vmatpush1.msra.mxu0 0.0
      %2592 = vmatprep.subr.mxu0 0.0
      %2593 = vmatpush1.msra.mxu0 0.0
      %2594 = vmatprep.subr.mxu0 0.0
      %2595 = vmatpush1.msra.mxu0 0.0
      %2596 = vmatprep.subr.mxu0 0.0
      %2597 = vmatpush1.msra.mxu0 %v319
      %2598 = vmatprep.subr.mxu0 0.0
      %2599 = vmatpush1.msra.mxu0 %v318
      %2600 = vmatprep.subr.mxu0 0.0
      %2601 = vmatpush1.msra.mxu0 %v317
      %2602 = vmatprep.subr.mxu0 0.0
      %2603 = vmatpush1.msra.mxu0 %v316
      %2604 = vmatprep.subr.mxu0 0.0
      %2605 = vmatpush1.msra.mxu0 %v315
      %2606 = vmatprep.subr.mxu0 0.0
      %2607 = vmatpush1.msra.mxu0 %v314
      %2608 = vmatprep.subr.mxu0 0.0
      %2609 = vmatpush1.msra.mxu0 %v313
      %2610 = vmatprep.subr.mxu0 0.0
      %2611 = vmatpush1.msra.mxu0 %v312
      %2612 = vmatprep.subr.mxu0 0.0
      %2613 = vmatpush1.msra.mxu0 %v311
      %2614 = vmatprep.subr.mxu0 0.0
      %2615 = vmatpush1.msra.mxu0 %v310
      %2616 = vmatprep.subr.mxu0 0.0
      %2617 = vmatpush1.msra.mxu0 %v309
      %2618 = vmatprep.subr.mxu0 0.0
      %2619 = vmatpush1.msra.mxu0 %v308
      %2620 = vmatprep.subr.mxu0 0.0
      %2621 = vmatpush2.msra.mxu0 0.0
      %2622 = vmatprep.subr.mxu0 0.0
      %2623 = vmatpush2.msra.mxu0 0.0
      %2624 = vmatprep.subr.mxu0 0.0
      %2625 = vmatpush2.msra.mxu0 0.0
      %2626 = vmatprep.subr.mxu0 0.0
      %2627 = vmatpush2.msra.mxu0 0.0
      %2628 = vmatprep.subr.mxu0 0.0
      %2629 = vmatpush2.msra.mxu0 0.0
      %2630 = vmatprep.subr.mxu0 0.0
      %2631 = vmatpush2.msra.mxu0 0.0
      %2632 = vmatprep.subr.mxu0 0.0
      %2633 = vmatpush2.msra.mxu0 0.0
      %2634 = vmatprep.subr.mxu0 0.0
      %2635 = vmatpush2.msra.mxu0 0.0
      %2636 = vmatprep.subr.mxu0 0.0
      %2637 = vmatpush2.msra.mxu0 0.0
      %2638 = vmatprep.subr.mxu0 0.0
      %2639 = vmatpush2.msra.mxu0 0.0
      %2640 = vmatprep.subr.mxu0 0.0
      %2641 = vmatpush2.msra.mxu0 0.0
      %2642 = vmatprep.subr.mxu0 0.0
      %2643 = vmatpush2.msra.mxu0 0.0
      %2644 = vmatprep.subr.mxu0 0.0
      %2645 = vmatpush2.msra.mxu0 0.0
      %2646 = vmatprep.subr.mxu0 0.0
      %2647 = vmatpush2.msra.mxu0 0.0
      %2648 = vmatprep.subr.mxu0 0.0
      %2649 = vmatpush2.msra.mxu0 0.0
      %2650 = vmatprep.subr.mxu0 0.0
      %2651 = vmatpush2.msra.mxu0 0.0
      %2652 = vmatprep.mubr.f32.mxu0 0.0
      %2653 = vmatmul.mubr.f32.gmra.mxu0 %v2565
      %v2654 = vpop.f32.mrf.mxu0
      %v2655 = vadd.f32 %v1272, %v2654
      %v2656 = vpop.f32.mrf.mxu0
      %2657 = vmatprep.mubr.f32.mxu0 0.0
      %2658 = vmatmul.mubr.f32.gmra.mxu0 %v2568
      %v2659 = vpop.f32.mrf.mxu0
      %v2660 = vadd.f32 %v1272, %v2659
      %v2661 = vpop.f32.mrf.mxu0
      %2662 = vmatprep.mubr.f32.mxu0 0.0
      %2663 = vmatmul.mubr.f32.gmra.mxu0 %v2571
      %v2664 = vpop.f32.mrf.mxu0
      %v2665 = vadd.f32 %v1272, %v2664
      %v2666 = vpop.f32.mrf.mxu0
      %2667 = vmatprep.mubr.f32.mxu0 0.0
      %2668 = vmatmul.mubr.f32.gmra.mxu0 %v2574
      %v2669 = vpop.f32.mrf.mxu0
      %v2670 = vadd.f32 %v1272, %v2669
      %v2671 = vpop.f32.mrf.mxu0
      %2672 = vmatprep.mubr.f32.mxu0 0.0
      %2673 = vmatmul.mubr.f32.gmra.mxu0 %v2577
      %v2674 = vpop.f32.mrf.mxu0
      %v2675 = vadd.f32 %v1272, %v2674
      %v2676 = vpop.f32.mrf.mxu0
      %2677 = vmatprep.mubr.f32.mxu0 0.0
      %2678 = vmatmul.mubr.f32.gmra.mxu0 %v2580
      %v2679 = vpop.f32.mrf.mxu0
      %v2680 = vadd.f32 %v1272, %v2679
      %v2681 = vpop.f32.mrf.mxu0
      %2682 = vmatprep.mubr.f32.mxu0 0.0
      %2683 = vmatmul.mubr.f32.gmra.mxu0 %v2583
      %v2684 = vpop.f32.mrf.mxu0
      %v2685 = vadd.f32 %v1272, %v2684
      %v2686 = vpop.f32.mrf.mxu0
      %2687 = vmatprep.mubr.f32.mxu0 0.0
      %2688 = vmatmul.mubr.f32.gmra.mxu0 %v2586
      %v2689 = vpop.f32.mrf.mxu0
      %v2690 = vadd.f32 %v1272, %v2689
      %v2691 = vpop.f32.mrf.mxu0
      %2692 = vdwg.mxu0
      %v2693 = vadd.f32 %v2655, %v2044
      %v2694 = vadd.f32 %v2660, %v2046
      %v2695 = vadd.f32 %v2665, %v2048
      %v2696 = vadd.f32 %v2670, %v2050
      %v2697 = vadd.f32 %v2675, %v2052
      %v2698 = vadd.f32 %v2680, %v2054
      %v2699 = vadd.f32 %v2685, %v2056
      %v2700 = vadd.f32 %v2690, %v2058
      %v2701 = vsel %vm2179, %v2693, 0.0
      %v2702 = vsel %vm2180, %v2694, 0.0
      %v2703 = vsel %vm2181, %v2695, 0.0
      %v2704 = vsel %vm2182, %v2696, 0.0
      %v2705 = vsel %vm2183, %v2697, 0.0
      %v2706 = vsel %vm2184, %v2698, 0.0
      %v2707 = vsel %vm2185, %v2699, 0.0
      %v2708 = vsel %vm2186, %v2700, 0.0
      %v2709 = vrot.slane %v2701, 1
      %v2710 = vrot.slane %v2702, 1
      %v2711 = vrot.slane %v2703, 1
      %v2712 = vrot.slane %v2704, 1
      %v2713 = vrot.slane %v2705, 1
      %v2714 = vrot.slane %v2706, 1
      %v2715 = vrot.slane %v2707, 1
      %v2716 = vrot.slane %v2708, 1
      %v2717 = vsel %vm344, %v2715, %v2716
      %v2718 = vsel %vm344, %v2714, %v2715
      %v2719 = vsel %vm344, %v2713, %v2714
      %v2720 = vsel %vm344, %v2712, %v2713
      %v2721 = vsel %vm344, %v2711, %v2712
      %v2722 = vsel %vm344, %v2710, %v2711
      %v2723 = vsel %vm344, %v2709, %v2710
      %v2724 = vsel %vm344, %v2716, %v2709
      %v2725 = vrot.slane %v2701, 2
      %v2726 = vrot.slane %v2702, 2
      %v2727 = vrot.slane %v2703, 2
      %v2728 = vrot.slane %v2704, 2
      %v2729 = vrot.slane %v2705, 2
      %v2730 = vrot.slane %v2706, 2
      %v2731 = vrot.slane %v2707, 2
      %v2732 = vrot.slane %v2708, 2
      %v2733 = vsel %vm377, %v2731, %v2732
      %v2734 = vsel %vm377, %v2730, %v2731
      %v2735 = vsel %vm377, %v2729, %v2730
      %v2736 = vsel %vm377, %v2728, %v2729
      %v2737 = vsel %vm377, %v2727, %v2728
      %v2738 = vsel %vm377, %v2726, %v2727
      %v2739 = vsel %vm377, %v2725, %v2726
      %v2740 = vsel %vm377, %v2732, %v2725
      %v2741 = vmax.f32 %v2723, %v2739
      %v2742 = vmax.f32 %v2722, %v2738
      %v2743 = vmax.f32 %v2721, %v2737
      %v2744 = vmax.f32 %v2720, %v2736
      %v2745 = vmax.f32 %v2719, %v2735
      %v2746 = vmax.f32 %v2718, %v2734
      %v2747 = vmax.f32 %v2717, %v2733
      %v2748 = vmax.f32 %v2724, %v2740
      %v2749 = vmax.f32 %v2701, %v2741
      %v2750 = vmax.f32 %v2702, %v2742
      %v2751 = vmax.f32 %v2703, %v2743
      %v2752 = vmax.f32 %v2704, %v2744
      %v2753 = vmax.f32 %v2705, %v2745
      %v2754 = vmax.f32 %v2706, %v2746
      %v2755 = vmax.f32 %v2707, %v2747
      %v2756 = vmax.f32 %v2708, %v2748
      %2757 = vst.msk [vmem:[#allocation2] sm:$0xff] %vm522, %v2749
      %2758 = vst.msk [vmem:[#allocation2 + $0x8] sm:$0xff] %vm522, %v2750
      %2759 = vst.msk [vmem:[#allocation2 + $0x10] sm:$0xff] %vm522, %v2751
      %2760 = vst.msk [vmem:[#allocation2 + $0x18] sm:$0xff] %vm522, %v2752
      %2761 = vst.msk [vmem:[#allocation2 + $0x20] sm:$0xff] %vm522, %v2753
      %2762 = vst.msk [vmem:[#allocation2 + $0x28] sm:$0xff] %vm522, %v2754
      %2763 = vst.msk [vmem:[#allocation2 + $0x30] sm:$0xff] %vm522, %v2755
      %2764 = vst.msk [vmem:[#allocation2 + $0x38] sm:$0xff] %vm522, %v2756
      %v2765 = vld [vmem:[#allocation2] ss:$2 sm:$0xff]
      %v2766 = vld [vmem:[%s2045] ss:$2 sm:$0xff]
      %v2767 = vld [vmem:[%s2047] ss:$2 sm:$0xff]
      %v2768 = vld [vmem:[%s2049] ss:$2 sm:$0xff]
      %vm2769 = vcmp.lt.s32.totalorder %v343, 0
      %v2770 = vsub.s32 0, %v343
      %v2771 = vsel %vm2769, %v2770, %v343
      %v2772 = vshrl.u32 %v2771, 2
      %v2773 = vand.u32 %v2771, 3
      %v2774 = vsub.s32 0, %v2773
      %v2775 = vsel %vm2769, %v2774, %v2773
      %vm2776 = vcmp.lt.s32.totalorder %v756, 0
      %v2777 = vsub.s32 0, %v756
      %v2778 = vsel %vm2776, %v2777, %v756
      %v2779 = vshrl.u32 %v2778, 2
      %v2780 = vand.u32 %v2778, 3
      %v2781 = vsub.s32 0, %v2780
      %v2782 = vsel %vm2776, %v2781, %v2780
      %vm2783 = vcmp.lt.s32.totalorder %v757, 0
      %v2784 = vsub.s32 0, %v757
      %v2785 = vsel %vm2783, %v2784, %v757
      %v2786 = vshrl.u32 %v2785, 2
      %v2787 = vand.u32 %v2785, 3
      %v2788 = vsub.s32 0, %v2787
      %v2789 = vsel %vm2783, %v2788, %v2787
      %vm2790 = vcmp.lt.s32.totalorder %v758, 0
      %v2791 = vsub.s32 0, %v758
      %v2792 = vsel %vm2790, %v2791, %v758
      %v2793 = vshrl.u32 %v2792, 2
      %v2794 = vand.u32 %v2792, 3
      %v2795 = vsub.s32 0, %v2794
      %v2796 = vsel %vm2790, %v2795, %v2794
      %vm2797 = vcmp.ne.s32.totalorder %v2775, 0
      %vm2798 = vcmp.ne.s32.totalorder %v2782, 0
      %vm2799 = vcmp.ne.s32.totalorder %v2789, 0
      %vm2800 = vcmp.ne.s32.totalorder %v2796, 0
      %vm2801 = vcmp.lt.s32.totalorder %v2775, 0
      %vm2802 = vcmp.lt.s32.totalorder %v2782, 0
      %vm2803 = vcmp.lt.s32.totalorder %v2789, 0
      %vm2804 = vcmp.lt.s32.totalorder %v2796, 0
      %vm2805 = vmand %vm2801, %vm2797
      %vm2806 = vmand %vm2802, %vm2798
      %vm2807 = vmand %vm2803, %vm2799
      %vm2808 = vmand %vm2804, %vm2800
      %v2809 = vadd.s32 %v2775, 4
      %v2810 = vadd.s32 %v2782, 4
      %v2811 = vadd.s32 %v2789, 4
      %v2812 = vadd.s32 %v2796, 4
      %v2813 = vsel %vm2805, %v2809, %v2775
      %v2814 = vsel %vm2806, %v2810, %v2782
      %v2815 = vsel %vm2807, %v2811, %v2789
      %v2816 = vsel %vm2808, %v2812, %v2796
      %vm2817 = vcmp.lt.s32.totalorder %v2813, 3
      %vm2818 = vcmp.lt.s32.totalorder %v2814, 3
      %vm2819 = vcmp.lt.s32.totalorder %v2815, 3
      %vm2820 = vcmp.lt.s32.totalorder %v2816, 3
      %v2821 = vmax.f32 %v2765, 0.0
      %v2822 = vmax.f32 %v2766, 0.0
      %v2823 = vmax.f32 %v2767, 0.0
      %v2824 = vmax.f32 %v2768, 0.0
      %v2825 = vsel %vm2817, 1, 0
      %v2826 = vsel %vm2818, 1, 0
      %v2827 = vsel %vm2819, 1, 0
      %v2828 = vsel %vm2820, 1, 0
      %vm2829 = vcmp.eq.s32.totalorder %v2825, 1
      %vm2830 = vcmp.eq.s32.totalorder %v2826, 1
      %vm2831 = vcmp.eq.s32.totalorder %v2827, 1
      %vm2832 = vcmp.eq.s32.totalorder %v2828, 1
      %v2833 = vsel %vm2829, %v2821, 0.0
      %v2834 = vsel %vm2830, %v2822, 0.0
      %v2835 = vsel %vm2831, %v2823, 0.0
      %v2836 = vsel %vm2832, %v2824, 0.0
      %v2837 = vrot.slane %v2833, 7
      %v2838 = vrot.slane %v2834, 7
      %v2839 = vrot.slane %v2835, 7
      %v2840 = vrot.slane %v2836, 7
      %v2841 = vsel %vm1059, %v2839, %v2840
      %v2842 = vsel %vm1059, %v2838, %v2839
      %v2843 = vsel %vm1059, %v2837, %v2838
      %v2844 = vsel %vm1059, %v2840, %v2837
      %v2845 = vrot.slane %v2833, 1
      %v2846 = vrot.slane %v2834, 1
      %v2847 = vrot.slane %v2835, 1
      %v2848 = vrot.slane %v2836, 1
      %v2849 = vsel %vm344, %v2847, %v2848
      %v2850 = vsel %vm344, %v2846, %v2847
      %v2851 = vsel %vm344, %v2845, %v2846
      %v2852 = vsel %vm344, %v2848, %v2845
      %2857 = vrot.lane.b32.xlu0 %v2833, 32
      %v2858 = vpop.permute.xlu0 %2857
      %2859 = vrot.lane.b32.xlu0 %v2834, 32
      %v2860 = vpop.permute.xlu0 %2859
      %2861 = vrot.lane.b32.xlu0 %v2835, 32
      %v2862 = vpop.permute.xlu0 %2861
      %2863 = vrot.lane.b32.xlu0 %v2836, 32
      %v2864 = vpop.permute.xlu0 %2863
      %2873 = vrot.lane.b32.xlu0 %v2851, 64
      %v2874 = vpop.permute.xlu0 %2873
      %2875 = vrot.lane.b32.xlu0 %v2850, 64
      %v2876 = vpop.permute.xlu0 %2875
      %2877 = vrot.lane.b32.xlu0 %v2849, 64
      %v2878 = vpop.permute.xlu0 %2877
      %2879 = vrot.lane.b32.xlu0 %v2852, 64
      %v2880 = vpop.permute.xlu0 %2879
      %v2885 = vsel %vm522, %v2844, %v2858
      %v2886 = vsel %vm522, %v2843, %v2860
      %v2887 = vsel %vm522, %v2842, %v2862
      %v2888 = vsel %vm522, %v2841, %v2864
      %v2889 = vsel %vm539, %v2885, %v2874
      %v2890 = vsel %vm539, %v2886, %v2876
      %v2891 = vsel %vm539, %v2887, %v2878
      %v2892 = vsel %vm539, %v2888, %v2880
      %v2894 = vsel %vm562, %v2889, 0
      %v2897 = vsel %vm562, %v2890, 0
      %v2900 = vsel %vm562, %v2891, 0
      %v2903 = vsel %vm562, %v2892, 0
      %2905 = vmatprep.subr.mxu0 0.0
      %2906 = vmatpush1.msra.mxu0 0.0
      %2907 = vmatprep.subr.mxu0 0.0
      %2908 = vmatpush1.msra.mxu0 0.0
      %2909 = vmatprep.subr.mxu0 0.0
      %2910 = vmatpush1.msra.mxu0 0.0
      %2911 = vmatprep.subr.mxu0 0.0
      %2912 = vmatpush1.msra.mxu0 0.0
      %2913 = vmatprep.subr.mxu0 0.0
      %2914 = vmatpush1.msra.mxu0 %v319
      %2915 = vmatprep.subr.mxu0 0.0
      %2916 = vmatpush1.msra.mxu0 %v318
      %2917 = vmatprep.subr.mxu0 0.0
      %2918 = vmatpush1.msra.mxu0 %v317
      %2919 = vmatprep.subr.mxu0 0.0
      %2920 = vmatpush1.msra.mxu0 %v316
      %2921 = vmatprep.subr.mxu0 0.0
      %2922 = vmatpush1.msra.mxu0 %v315
      %2923 = vmatprep.subr.mxu0 0.0
      %2924 = vmatpush1.msra.mxu0 %v314
      %2925 = vmatprep.subr.mxu0 0.0
      %2926 = vmatpush1.msra.mxu0 %v313
      %2927 = vmatprep.subr.mxu0 0.0
      %2928 = vmatpush1.msra.mxu0 %v312
      %2929 = vmatprep.subr.mxu0 0.0
      %2930 = vmatpush1.msra.mxu0 %v311
      %2931 = vmatprep.subr.mxu0 0.0
      %2932 = vmatpush1.msra.mxu0 %v310
      %2933 = vmatprep.subr.mxu0 0.0
      %2934 = vmatpush1.msra.mxu0 %v309
      %2935 = vmatprep.subr.mxu0 0.0
      %2936 = vmatpush1.msra.mxu0 %v308
      %2937 = vmatprep.subr.mxu0 0.0
      %2938 = vmatpush2.msra.mxu0 0.0
      %2939 = vmatprep.subr.mxu0 0.0
      %2940 = vmatpush2.msra.mxu0 0.0
      %2941 = vmatprep.subr.mxu0 0.0
      %2942 = vmatpush2.msra.mxu0 0.0
      %2943 = vmatprep.subr.mxu0 0.0
      %2944 = vmatpush2.msra.mxu0 0.0
      %2945 = vmatprep.subr.mxu0 0.0
      %2946 = vmatpush2.msra.mxu0 0.0
      %2947 = vmatprep.subr.mxu0 0.0
      %2948 = vmatpush2.msra.mxu0 0.0
      %2949 = vmatprep.subr.mxu0 0.0
      %2950 = vmatpush2.msra.mxu0 0.0
      %2951 = vmatprep.subr.mxu0 0.0
      %2952 = vmatpush2.msra.mxu0 0.0
      %2953 = vmatprep.subr.mxu0 0.0
      %2954 = vmatpush2.msra.mxu0 0.0
      %2955 = vmatprep.subr.mxu0 0.0
      %2956 = vmatpush2.msra.mxu0 0.0
      %2957 = vmatprep.subr.mxu0 0.0
      %2958 = vmatpush2.msra.mxu0 0.0
      %2959 = vmatprep.subr.mxu0 0.0
      %2960 = vmatpush2.msra.mxu0 0.0
      %2961 = vmatprep.subr.mxu0 0.0
      %2962 = vmatpush2.msra.mxu0 0.0
      %2963 = vmatprep.subr.mxu0 0.0
      %2964 = vmatpush2.msra.mxu0 0.0
      %2965 = vmatprep.subr.mxu0 0.0
      %2966 = vmatpush2.msra.mxu0 0.0
      %2967 = vmatprep.subr.mxu0 0.0
      %2968 = vmatpush2.msra.mxu0 0.0
      %2969 = vmatprep.mubr.f32.mxu0 0.0
      %2970 = vmatmul.mubr.f32.gmra.mxu0 %v2894
      %v2971 = vpop.f32.mrf.mxu0
      %v2972 = vadd.f32 %v1272, %v2971
      %v2973 = vpop.f32.mrf.mxu0
      %2974 = vmatprep.mubr.f32.mxu0 0.0
      %2975 = vmatmul.mubr.f32.gmra.mxu0 %v2897
      %v2976 = vpop.f32.mrf.mxu0
      %v2977 = vadd.f32 %v1272, %v2976
      %v2978 = vpop.f32.mrf.mxu0
      %2979 = vmatprep.mubr.f32.mxu0 0.0
      %2980 = vmatmul.mubr.f32.gmra.mxu0 %v2900
      %v2981 = vpop.f32.mrf.mxu0
      %v2982 = vadd.f32 %v1272, %v2981
      %v2983 = vpop.f32.mrf.mxu0
      %2984 = vmatprep.mubr.f32.mxu0 0.0
      %2985 = vmatmul.mubr.f32.gmra.mxu0 %v2903
      %v2986 = vpop.f32.mrf.mxu0
      %v2987 = vadd.f32 %v1272, %v2986
      %v2988 = vpop.f32.mrf.mxu0
      %2989 = vdwg.mxu0
      %v2990 = vmax.f32 %v2972, 0.0
      %v2991 = vmax.f32 %v2977, 0.0
      %v2992 = vmax.f32 %v2982, 0.0
      %v2993 = vmax.f32 %v2987, 0.0
      %v2994 = vsel %vm2829, %v2990, 0.0
      %v2995 = vsel %vm2830, %v2991, 0.0
      %v2996 = vsel %vm2831, %v2992, 0.0
      %v2997 = vsel %vm2832, %v2993, 0.0
      %v2998 = vrot.slane %v2994, 7
      %v2999 = vrot.slane %v2995, 7
      %v3000 = vrot.slane %v2996, 7
      %v3001 = vrot.slane %v2997, 7
      %v3002 = vsel %vm1059, %v3000, %v3001
      %v3003 = vsel %vm1059, %v2999, %v3000
      %v3004 = vsel %vm1059, %v2998, %v2999
      %v3005 = vsel %vm1059, %v3001, %v2998
      %v3006 = vrot.slane %v2994, 1
      %v3007 = vrot.slane %v2995, 1
      %v3008 = vrot.slane %v2996, 1
      %v3009 = vrot.slane %v2997, 1
      %v3010 = vsel %vm344, %v3008, %v3009
      %v3011 = vsel %vm344, %v3007, %v3008
      %v3012 = vsel %vm344, %v3006, %v3007
      %v3013 = vsel %vm344, %v3009, %v3006
      %3018 = vrot.lane.b32.xlu0 %v2994, 32
      %v3019 = vpop.permute.xlu0 %3018
      %3020 = vrot.lane.b32.xlu0 %v2995, 32
      %v3021 = vpop.permute.xlu0 %3020
      %3022 = vrot.lane.b32.xlu0 %v2996, 32
      %v3023 = vpop.permute.xlu0 %3022
      %3024 = vrot.lane.b32.xlu0 %v2997, 32
      %v3025 = vpop.permute.xlu0 %3024
      %3034 = vrot.lane.b32.xlu0 %v3012, 64
      %v3035 = vpop.permute.xlu0 %3034
      %3036 = vrot.lane.b32.xlu0 %v3011, 64
      %v3037 = vpop.permute.xlu0 %3036
      %3038 = vrot.lane.b32.xlu0 %v3010, 64
      %v3039 = vpop.permute.xlu0 %3038
      %3040 = vrot.lane.b32.xlu0 %v3013, 64
      %v3041 = vpop.permute.xlu0 %3040
      %v3046 = vsel %vm522, %v3005, %v3019
      %v3047 = vsel %vm522, %v3004, %v3021
      %v3048 = vsel %vm522, %v3003, %v3023
      %v3049 = vsel %vm522, %v3002, %v3025
      %v3050 = vsel %vm539, %v3046, %v3035
      %v3051 = vsel %vm539, %v3047, %v3037
      %v3052 = vsel %vm539, %v3048, %v3039
      %v3053 = vsel %vm539, %v3049, %v3041
      %v3055 = vsel %vm562, %v3050, 0
      %v3058 = vsel %vm562, %v3051, 0
      %v3061 = vsel %vm562, %v3052, 0
      %v3064 = vsel %vm562, %v3053, 0
      %3066 = vmatprep.subr.mxu0 0.0
      %3067 = vmatpush1.msra.mxu0 0.0
      %3068 = vmatprep.subr.mxu0 0.0
      %3069 = vmatpush1.msra.mxu0 0.0
      %3070 = vmatprep.subr.mxu0 0.0
      %3071 = vmatpush1.msra.mxu0 0.0
      %3072 = vmatprep.subr.mxu0 0.0
      %3073 = vmatpush1.msra.mxu0 0.0
      %3074 = vmatprep.subr.mxu0 0.0
      %3075 = vmatpush1.msra.mxu0 %v319
      %3076 = vmatprep.subr.mxu0 0.0
      %3077 = vmatpush1.msra.mxu0 %v318
      %3078 = vmatprep.subr.mxu0 0.0
      %3079 = vmatpush1.msra.mxu0 %v317
      %3080 = vmatprep.subr.mxu0 0.0
      %3081 = vmatpush1.msra.mxu0 %v316
      %3082 = vmatprep.subr.mxu0 0.0
      %3083 = vmatpush1.msra.mxu0 %v315
      %3084 = vmatprep.subr.mxu0 0.0
      %3085 = vmatpush1.msra.mxu0 %v314
      %3086 = vmatprep.subr.mxu0 0.0
      %3087 = vmatpush1.msra.mxu0 %v313
      %3088 = vmatprep.subr.mxu0 0.0
      %3089 = vmatpush1.msra.mxu0 %v312
      %3090 = vmatprep.subr.mxu0 0.0
      %3091 = vmatpush1.msra.mxu0 %v311
      %3092 = vmatprep.subr.mxu0 0.0
      %3093 = vmatpush1.msra.mxu0 %v310
      %3094 = vmatprep.subr.mxu0 0.0
      %3095 = vmatpush1.msra.mxu0 %v309
      %3096 = vmatprep.subr.mxu0 0.0
      %3097 = vmatpush1.msra.mxu0 %v308
      %3098 = vmatprep.subr.mxu0 0.0
      %3099 = vmatpush2.msra.mxu0 0.0
      %3100 = vmatprep.subr.mxu0 0.0
      %3101 = vmatpush2.msra.mxu0 0.0
      %3102 = vmatprep.subr.mxu0 0.0
      %3103 = vmatpush2.msra.mxu0 0.0
      %3104 = vmatprep.subr.mxu0 0.0
      %3105 = vmatpush2.msra.mxu0 0.0
      %3106 = vmatprep.subr.mxu0 0.0
      %3107 = vmatpush2.msra.mxu0 0.0
      %3108 = vmatprep.subr.mxu0 0.0
      %3109 = vmatpush2.msra.mxu0 0.0
      %3110 = vmatprep.subr.mxu0 0.0
      %3111 = vmatpush2.msra.mxu0 0.0
      %3112 = vmatprep.subr.mxu0 0.0
      %3113 = vmatpush2.msra.mxu0 0.0
      %3114 = vmatprep.subr.mxu0 0.0
      %3115 = vmatpush2.msra.mxu0 0.0
      %3116 = vmatprep.subr.mxu0 0.0
      %3117 = vmatpush2.msra.mxu0 0.0
      %3118 = vmatprep.subr.mxu0 0.0
      %3119 = vmatpush2.msra.mxu0 0.0
      %3120 = vmatprep.subr.mxu0 0.0
      %3121 = vmatpush2.msra.mxu0 0.0
      %3122 = vmatprep.subr.mxu0 0.0
      %3123 = vmatpush2.msra.mxu0 0.0
      %3124 = vmatprep.subr.mxu0 0.0
      %3125 = vmatpush2.msra.mxu0 0.0
      %3126 = vmatprep.subr.mxu0 0.0
      %3127 = vmatpush2.msra.mxu0 0.0
      %3128 = vmatprep.subr.mxu0 0.0
      %3129 = vmatpush2.msra.mxu0 0.0
      %3130 = vmatprep.mubr.f32.mxu0 0.0
      %3131 = vmatmul.mubr.f32.gmra.mxu0 %v3055
      %v3132 = vpop.f32.mrf.mxu0
      %v3133 = vadd.f32 %v1272, %v3132
      %v3134 = vpop.f32.mrf.mxu0
      %3135 = vmatprep.mubr.f32.mxu0 0.0
      %3136 = vmatmul.mubr.f32.gmra.mxu0 %v3058
      %v3137 = vpop.f32.mrf.mxu0
      %v3138 = vadd.f32 %v1272, %v3137
      %v3139 = vpop.f32.mrf.mxu0
      %3140 = vmatprep.mubr.f32.mxu0 0.0
      %3141 = vmatmul.mubr.f32.gmra.mxu0 %v3061
      %v3142 = vpop.f32.mrf.mxu0
      %v3143 = vadd.f32 %v1272, %v3142
      %v3144 = vpop.f32.mrf.mxu0
      %3145 = vmatprep.mubr.f32.mxu0 0.0
      %3146 = vmatmul.mubr.f32.gmra.mxu0 %v3064
      %v3147 = vpop.f32.mrf.mxu0
      %v3148 = vadd.f32 %v1272, %v3147
      %v3149 = vpop.f32.mrf.mxu0
      %3150 = vdwg.mxu0
      %v3151 = vadd.f32 %v3133, %v2765
      %v3152 = vadd.f32 %v3138, %v2766
      %v3153 = vadd.f32 %v3143, %v2767
      %v3154 = vadd.f32 %v3148, %v2768
      %v3155 = vsel %vm2829, %v3151, 0.0
      %v3156 = vsel %vm2830, %v3152, 0.0
      %v3157 = vsel %vm2831, %v3153, 0.0
      %v3158 = vsel %vm2832, %v3154, 0.0
      %v3159 = vrot.slane %v3155, 1
      %v3160 = vrot.slane %v3156, 1
      %v3161 = vrot.slane %v3157, 1
      %v3162 = vrot.slane %v3158, 1
      %v3163 = vsel %vm344, %v3161, %v3162
      %v3164 = vsel %vm344, %v3160, %v3161
      %v3165 = vsel %vm344, %v3159, %v3160
      %v3166 = vsel %vm344, %v3162, %v3159
      %v3167 = vrot.slane %v3155, 2
      %v3168 = vrot.slane %v3156, 2
      %v3169 = vrot.slane %v3157, 2
      %v3170 = vrot.slane %v3158, 2
      %v3171 = vsel %vm377, %v3169, %v3170
      %v3172 = vsel %vm377, %v3168, %v3169
      %v3173 = vsel %vm377, %v3167, %v3168
      %v3174 = vsel %vm377, %v3170, %v3167
      %v3175 = vmax.f32 %v3165, %v3173
      %v3176 = vmax.f32 %v3164, %v3172
      %v3177 = vmax.f32 %v3163, %v3171
      %v3178 = vmax.f32 %v3166, %v3174
      %v3179 = vmax.f32 %v3155, %v3175
      %v3180 = vmax.f32 %v3156, %v3176
      %v3181 = vmax.f32 %v3157, %v3177
      %v3182 = vmax.f32 %v3158, %v3178
      %3183 = vst.msk [vmem:[#allocation2] sm:$0xff] %vm522, %v3179
      %3184 = vst.msk [vmem:[#allocation2 + $0x8] sm:$0xff] %vm522, %v3180
      %3185 = vst.msk [vmem:[#allocation2 + $0x10] sm:$0xff] %vm522, %v3181
      %3186 = vst.msk [vmem:[#allocation2 + $0x18] sm:$0xff] %vm522, %v3182
      %v3187 = vld [vmem:[#allocation2] ss:$2 sm:$0xff]
      %v3188 = vld [vmem:[%s2045] ss:$2 sm:$0xff]
      %vm3189 = vcmp.lt.s32.totalorder %v343, 0
      %v3190 = vsub.s32 0, %v343
      %v3191 = vsel %vm3189, %v3190, %v343
      %v3192 = vshrl.u32 %v3191, 1
      %v3193 = vand.u32 %v3191, 1
      %v3194 = vsub.s32 0, %v3193
      %v3195 = vsel %vm3189, %v3194, %v3193
      %vm3196 = vcmp.lt.s32.totalorder %v756, 0
      %v3197 = vsub.s32 0, %v756
      %v3198 = vsel %vm3196, %v3197, %v756
      %v3199 = vshrl.u32 %v3198, 1
      %v3200 = vand.u32 %v3198, 1
      %v3201 = vsub.s32 0, %v3200
      %v3202 = vsel %vm3196, %v3201, %v3200
      %vm3203 = vcmp.ne.s32.totalorder %v3195, 0
      %vm3204 = vcmp.ne.s32.totalorder %v3202, 0
      %vm3205 = vcmp.lt.s32.totalorder %v3195, 0
      %vm3206 = vcmp.lt.s32.totalorder %v3202, 0
      %vm3207 = vmand %vm3205, %vm3203
      %vm3208 = vmand %vm3206, %vm3204
      %v3209 = vadd.s32 %v3195, 2
      %v3210 = vadd.s32 %v3202, 2
      %v3211 = vsel %vm3207, %v3209, %v3195
      %v3212 = vsel %vm3208, %v3210, %v3202
      %vm3213 = vcmp.lt.s32.totalorder %v3211, 1
      %vm3214 = vcmp.lt.s32.totalorder %v3212, 1
      %v3215 = vmax.f32 %v3187, 0.0
      %v3216 = vmax.f32 %v3188, 0.0
      %v3217 = vsel %vm3213, 1, 0
      %v3218 = vsel %vm3214, 1, 0
      %vm3219 = vcmp.eq.s32.totalorder %v3217, 1
      %vm3220 = vcmp.eq.s32.totalorder %v3218, 1
      %v3221 = vsel %vm3219, %v3215, 0.0
      %v3222 = vsel %vm3220, %v3216, 0.0
      %v3223 = vrot.slane %v3221, 7
      %v3224 = vrot.slane %v3222, 7
      %v3225 = vsel %vm1059, %v3223, %v3224
      %v3226 = vsel %vm1059, %v3224, %v3223
      %v3227 = vrot.slane %v3221, 1
      %v3228 = vrot.slane %v3222, 1
      %v3229 = vsel %vm344, %v3227, %v3228
      %v3230 = vsel %vm344, %v3228, %v3227
      %3233 = vrot.lane.b32.xlu0 %v3221, 32
      %v3234 = vpop.permute.xlu0 %3233
      %3235 = vrot.lane.b32.xlu0 %v3222, 32
      %v3236 = vpop.permute.xlu0 %3235
      %3241 = vrot.lane.b32.xlu0 %v3229, 64
      %v3242 = vpop.permute.xlu0 %3241
      %3243 = vrot.lane.b32.xlu0 %v3230, 64
      %v3244 = vpop.permute.xlu0 %3243
      %v3247 = vsel %vm522, %v3226, %v3234
      %v3248 = vsel %vm522, %v3225, %v3236
      %v3249 = vsel %vm539, %v3247, %v3242
      %v3250 = vsel %vm539, %v3248, %v3244
      %v3252 = vsel %vm562, %v3249, 0
      %v3255 = vsel %vm562, %v3250, 0
      %3257 = vmatprep.subr.mxu0 0.0
      %3258 = vmatpush1.msra.mxu0 0.0
      %3259 = vmatprep.subr.mxu0 0.0
      %3260 = vmatpush1.msra.mxu0 0.0
      %3261 = vmatprep.subr.mxu0 0.0
      %3262 = vmatpush1.msra.mxu0 0.0
      %3263 = vmatprep.subr.mxu0 0.0
      %3264 = vmatpush1.msra.mxu0 0.0
      %3265 = vmatprep.subr.mxu0 0.0
      %3266 = vmatpush1.msra.mxu0 %v319
      %3267 = vmatprep.subr.mxu0 0.0
      %3268 = vmatpush1.msra.mxu0 %v318
      %3269 = vmatprep.subr.mxu0 0.0
      %3270 = vmatpush1.msra.mxu0 %v317
      %3271 = vmatprep.subr.mxu0 0.0
      %3272 = vmatpush1.msra.mxu0 %v316
      %3273 = vmatprep.subr.mxu0 0.0
      %3274 = vmatpush1.msra.mxu0 %v315
      %3275 = vmatprep.subr.mxu0 0.0
      %3276 = vmatpush1.msra.mxu0 %v314
      %3277 = vmatprep.subr.mxu0 0.0
      %3278 = vmatpush1.msra.mxu0 %v313
      %3279 = vmatprep.subr.mxu0 0.0
      %3280 = vmatpush1.msra.mxu0 %v312
      %3281 = vmatprep.subr.mxu0 0.0
      %3282 = vmatpush1.msra.mxu0 %v311
      %3283 = vmatprep.subr.mxu0 0.0
      %3284 = vmatpush1.msra.mxu0 %v310
      %3285 = vmatprep.subr.mxu0 0.0
      %3286 = vmatpush1.msra.mxu0 %v309
      %3287 = vmatprep.subr.mxu0 0.0
      %3288 = vmatpush1.msra.mxu0 %v308
      %3289 = vmatprep.subr.mxu0 0.0
      %3290 = vmatpush2.msra.mxu0 0.0
      %3291 = vmatprep.subr.mxu0 0.0
      %3292 = vmatpush2.msra.mxu0 0.0
      %3293 = vmatprep.subr.mxu0 0.0
      %3294 = vmatpush2.msra.mxu0 0.0
      %3295 = vmatprep.subr.mxu0 0.0
      %3296 = vmatpush2.msra.mxu0 0.0
      %3297 = vmatprep.subr.mxu0 0.0
      %3298 = vmatpush2.msra.mxu0 0.0
      %3299 = vmatprep.subr.mxu0 0.0
      %3300 = vmatpush2.msra.mxu0 0.0
      %3301 = vmatprep.subr.mxu0 0.0
      %3302 = vmatpush2.msra.mxu0 0.0
      %3303 = vmatprep.subr.mxu0 0.0
      %3304 = vmatpush2.msra.mxu0 0.0
      %3305 = vmatprep.subr.mxu0 0.0
      %3306 = vmatpush2.msra.mxu0 0.0
      %3307 = vmatprep.subr.mxu0 0.0
      %3308 = vmatpush2.msra.mxu0 0.0
      %3309 = vmatprep.subr.mxu0 0.0
      %3310 = vmatpush2.msra.mxu0 0.0
      %3311 = vmatprep.subr.mxu0 0.0
      %3312 = vmatpush2.msra.mxu0 0.0
      %3313 = vmatprep.subr.mxu0 0.0
      %3314 = vmatpush2.msra.mxu0 0.0
      %3315 = vmatprep.subr.mxu0 0.0
      %3316 = vmatpush2.msra.mxu0 0.0
      %3317 = vmatprep.subr.mxu0 0.0
      %3318 = vmatpush2.msra.mxu0 0.0
      %3319 = vmatprep.subr.mxu0 0.0
      %3320 = vmatpush2.msra.mxu0 0.0
      %3321 = vmatprep.mubr.f32.mxu0 0.0
      %3322 = vmatmul.mubr.f32.gmra.mxu0 %v3252
      %v3323 = vpop.f32.mrf.mxu0
      %v3324 = vadd.f32 %v1272, %v3323
      %v3325 = vpop.f32.mrf.mxu0
      %3326 = vmatprep.mubr.f32.mxu0 0.0
      %3327 = vmatmul.mubr.f32.gmra.mxu0 %v3255
      %v3328 = vpop.f32.mrf.mxu0
      %v3329 = vadd.f32 %v1272, %v3328
      %v3330 = vpop.f32.mrf.mxu0
      %3331 = vdwg.mxu0
      %v3332 = vmax.f32 %v3324, 0.0
      %v3333 = vmax.f32 %v3329, 0.0
      %v3334 = vsel %vm3219, %v3332, 0.0
      %v3335 = vsel %vm3220, %v3333, 0.0
      %v3336 = vrot.slane %v3334, 7
      %v3337 = vrot.slane %v3335, 7
      %v3338 = vsel %vm1059, %v3336, %v3337
      %v3339 = vsel %vm1059, %v3337, %v3336
      %v3340 = vrot.slane %v3334, 1
      %v3341 = vrot.slane %v3335, 1
      %v3342 = vsel %vm344, %v3340, %v3341
      %v3343 = vsel %vm344, %v3341, %v3340
      %3346 = vrot.lane.b32.xlu0 %v3334, 32
      %v3347 = vpop.permute.xlu0 %3346
      %3348 = vrot.lane.b32.xlu0 %v3335, 32
      %v3349 = vpop.permute.xlu0 %3348
      %3354 = vrot.lane.b32.xlu0 %v3342, 64
      %v3355 = vpop.permute.xlu0 %3354
      %3356 = vrot.lane.b32.xlu0 %v3343, 64
      %v3357 = vpop.permute.xlu0 %3356
      %v3360 = vsel %vm522, %v3339, %v3347
      %v3361 = vsel %vm522, %v3338, %v3349
      %v3362 = vsel %vm539, %v3360, %v3355
      %v3363 = vsel %vm539, %v3361, %v3357
      %v3365 = vsel %vm562, %v3362, 0
      %v3368 = vsel %vm562, %v3363, 0
      %3370 = vmatprep.subr.mxu0 0.0
      %3371 = vmatpush1.msra.mxu0 0.0
      %3372 = vmatprep.subr.mxu0 0.0
      %3373 = vmatpush1.msra.mxu0 0.0
      %3374 = vmatprep.subr.mxu0 0.0
      %3375 = vmatpush1.msra.mxu0 0.0
      %3376 = vmatprep.subr.mxu0 0.0
      %3377 = vmatpush1.msra.mxu0 0.0
      %3378 = vmatprep.subr.mxu0 0.0
      %3379 = vmatpush1.msra.mxu0 %v319
      %3380 = vmatprep.subr.mxu0 0.0
      %3381 = vmatpush1.msra.mxu0 %v318
      %3382 = vmatprep.subr.mxu0 0.0
      %3383 = vmatpush1.msra.mxu0 %v317
      %3384 = vmatprep.subr.mxu0 0.0
      %3385 = vmatpush1.msra.mxu0 %v316
      %3386 = vmatprep.subr.mxu0 0.0
      %3387 = vmatpush1.msra.mxu0 %v315
      %3388 = vmatprep.subr.mxu0 0.0
      %3389 = vmatpush1.msra.mxu0 %v314
      %3390 = vmatprep.subr.mxu0 0.0
      %3391 = vmatpush1.msra.mxu0 %v313
      %3392 = vmatprep.subr.mxu0 0.0
      %3393 = vmatpush1.msra.mxu0 %v312
      %3394 = vmatprep.subr.mxu0 0.0
      %3395 = vmatpush1.msra.mxu0 %v311
      %3396 = vmatprep.subr.mxu0 0.0
      %3397 = vmatpush1.msra.mxu0 %v310
      %3398 = vmatprep.subr.mxu0 0.0
      %3399 = vmatpush1.msra.mxu0 %v309
      %3400 = vmatprep.subr.mxu0 0.0
      %3401 = vmatpush1.msra.mxu0 %v308
      %3402 = vmatprep.subr.mxu0 0.0
      %3403 = vmatpush2.msra.mxu0 0.0
      %3404 = vmatprep.subr.mxu0 0.0
      %3405 = vmatpush2.msra.mxu0 0.0
      %3406 = vmatprep.subr.mxu0 0.0
      %3407 = vmatpush2.msra.mxu0 0.0
      %3408 = vmatprep.subr.mxu0 0.0
      %3409 = vmatpush2.msra.mxu0 0.0
      %3410 = vmatprep.subr.mxu0 0.0
      %3411 = vmatpush2.msra.mxu0 0.0
      %3412 = vmatprep.subr.mxu0 0.0
      %3413 = vmatpush2.msra.mxu0 0.0
      %3414 = vmatprep.subr.mxu0 0.0
      %3415 = vmatpush2.msra.mxu0 0.0
      %3416 = vmatprep.subr.mxu0 0.0
      %3417 = vmatpush2.msra.mxu0 0.0
      %3418 = vmatprep.subr.mxu0 0.0
      %3419 = vmatpush2.msra.mxu0 0.0
      %3420 = vmatprep.subr.mxu0 0.0
      %3421 = vmatpush2.msra.mxu0 0.0
      %3422 = vmatprep.subr.mxu0 0.0
      %3423 = vmatpush2.msra.mxu0 0.0
      %3424 = vmatprep.subr.mxu0 0.0
      %3425 = vmatpush2.msra.mxu0 0.0
      %3426 = vmatprep.subr.mxu0 0.0
      %3427 = vmatpush2.msra.mxu0 0.0
      %3428 = vmatprep.subr.mxu0 0.0
      %3429 = vmatpush2.msra.mxu0 0.0
      %3430 = vmatprep.subr.mxu0 0.0
      %3431 = vmatpush2.msra.mxu0 0.0
      %3432 = vmatprep.subr.mxu0 0.0
      %3433 = vmatpush2.msra.mxu0 0.0
      %3434 = vmatprep.mubr.f32.mxu0 0.0
      %3435 = vmatmul.mubr.f32.gmra.mxu0 %v3365
      %v3436 = vpop.f32.mrf.mxu0
      %v3437 = vadd.f32 %v1272, %v3436
      %v3438 = vpop.f32.mrf.mxu0
      %3439 = vmatprep.mubr.f32.mxu0 0.0
      %3440 = vmatmul.mubr.f32.gmra.mxu0 %v3368
      %v3441 = vpop.f32.mrf.mxu0
      %v3442 = vadd.f32 %v1272, %v3441
      %v3443 = vpop.f32.mrf.mxu0
      %3444 = vdwg.mxu0
      %v3445 = vadd.f32 %v3437, %v3187
      %v3446 = vadd.f32 %v3442, %v3188
      %3447 = vst.msk [vmem:[#allocation2] sm:$0xff] %vm522, %v3445
      %3448 = vst.msk [vmem:[#allocation2 + $0x8] sm:$0xff] %vm522, %v3446
      %v3449 = vld [vmem:[#allocation2] ss:$2 sm:$0xff]
      %v3451 = vlaneseq
      %v3452 = vshrl.u32 %v3451, 7
      %v3453 = vsub.s32 0, %v3452
      %v3454 = vrot.slane %v325, %v3453
      %v3457 = vsel %vm522, %v3449, 0
      %3459 = vmatprep.subr.mxu0 0.0
      %3460 = vmatpush1.msra.mxu0 0.0
      %3461 = vmatprep.subr.mxu0 0.0
      %3462 = vmatpush1.msra.mxu0 0.0
      %3463 = vmatprep.subr.mxu0 0.0
      %3464 = vmatpush1.msra.mxu0 0.0
      %3465 = vmatprep.subr.mxu0 0.0
      %3466 = vmatpush1.msra.mxu0 0.0
      %3467 = vmatprep.subr.mxu0 0.0
      %3468 = vmatpush1.msra.mxu0 0.0
      %3469 = vmatprep.subr.mxu0 0.0
      %3470 = vmatpush1.msra.mxu0 0.0
      %3471 = vmatprep.subr.mxu0 0.0
      %3472 = vmatpush1.msra.mxu0 0.0
      %3473 = vmatprep.subr.mxu0 0.0
      %3474 = vmatpush1.msra.mxu0 0.0
      %3475 = vmatprep.subr.mxu0 0.0
      %3476 = vmatpush1.msra.mxu0 0.0
      %3477 = vmatprep.subr.mxu0 0.0
      %3478 = vmatpush1.msra.mxu0 0.0
      %3479 = vmatprep.subr.mxu0 0.0
      %3480 = vmatpush1.msra.mxu0 0.0
      %3481 = vmatprep.subr.mxu0 0.0
      %3482 = vmatpush1.msra.mxu0 0.0
      %3483 = vmatprep.subr.mxu0 0.0
      %3484 = vmatpush1.msra.mxu0 %v324
      %3485 = vmatprep.subr.mxu0 0.0
      %3486 = vmatpush1.msra.mxu0 %v323
      %3487 = vmatprep.subr.mxu0 0.0
      %3488 = vmatpush1.msra.mxu0 %v322
      %3489 = vmatprep.subr.mxu0 0.0
      %3490 = vmatpush1.msra.mxu0 %v321
      %3491 = vmatprep.subr.mxu0 0.0
      %3492 = vmatpush2.msra.mxu0 0.0
      %3493 = vmatprep.subr.mxu0 0.0
      %3494 = vmatpush2.msra.mxu0 0.0
      %3495 = vmatprep.subr.mxu0 0.0
      %3496 = vmatpush2.msra.mxu0 0.0
      %3497 = vmatprep.subr.mxu0 0.0
      %3498 = vmatpush2.msra.mxu0 0.0
      %3499 = vmatprep.subr.mxu0 0.0
      %3500 = vmatpush2.msra.mxu0 0.0
      %3501 = vmatprep.subr.mxu0 0.0
      %3502 = vmatpush2.msra.mxu0 0.0
      %3503 = vmatprep.subr.mxu0 0.0
      %3504 = vmatpush2.msra.mxu0 0.0
      %3505 = vmatprep.subr.mxu0 0.0
      %3506 = vmatpush2.msra.mxu0 0.0
      %3507 = vmatprep.subr.mxu0 0.0
      %3508 = vmatpush2.msra.mxu0 0.0
      %3509 = vmatprep.subr.mxu0 0.0
      %3510 = vmatpush2.msra.mxu0 0.0
      %3511 = vmatprep.subr.mxu0 0.0
      %3512 = vmatpush2.msra.mxu0 0.0
      %3513 = vmatprep.subr.mxu0 0.0
      %3514 = vmatpush2.msra.mxu0 0.0
      %3515 = vmatprep.subr.mxu0 0.0
      %3516 = vmatpush2.msra.mxu0 0.0
      %3517 = vmatprep.subr.mxu0 0.0
      %3518 = vmatpush2.msra.mxu0 0.0
      %3519 = vmatprep.subr.mxu0 0.0
      %3520 = vmatpush2.msra.mxu0 0.0
      %3521 = vmatprep.subr.mxu0 0.0
      %3522 = vmatpush2.msra.mxu0 0.0
      %3523 = vmatprep.mubr.f32.mxu0 0.0
      %3524 = vmatmul.mubr.f32.gmra.mxu0 %v3457
      %v3525 = vpop.f32.mrf.mxu0
      %v3526 = vadd.f32 %v3454, %v3525
      %v3527 = vpop.f32.mrf.mxu0
      %3528 = vdwg.mxu0
      %vm3529 = vcmask 64512
      %3530 = vst.msk [vmem:[%s278] sm:$0xff] %vm3529, %v3526
      %p3531 = scmp.lt.s32.totalorder %s18, 1
      %s3532 = scalar_select %p3531, %s18, 1
      %s3533 = smul.addr %s3532, 8
      %s3534 = scalar_lea.vmem %s7, %s3533
      // Predicated region
      $region49: #{tpu_custom_call.1} parent=47 // pred_check
        %p3535 = pneg %p188
      $region50: #{tpu_custom_call.1} parent=47 // pred_check_branch
        %3537 = sbr.rel (%p3535) target = $region52
      $region51: #{tpu_custom_call.1} parent=47 // pred_region
        _
      $region52: #{tpu_custom_call.1} parent=47 // pred_fallthru
        _
    $region48: #{tpu_custom_call.1} parent=5 // pred_fallthru
      _
    %p3538 = scmp.le.s32.totalorder 2, %s13
    // Predicated region
    $region53: #{tpu_custom_call.1} parent=5 // pred_check
      %p3539 = pneg %p3538
    $region54: #{tpu_custom_call.1} parent=5 // pred_check_branch
      %3541 = sbr.rel (%p3539) target = $region56
    $region55: #{tpu_custom_call.1} parent=5 // pred_region
      %s3542 = ssub.s32 %s13, 2
      // Predicated region
      $region57: #{tpu_custom_call.1} parent=55 // pred_check
        %p3543 = pneg %p194
      $region58: #{tpu_custom_call.1} parent=55 // pred_check_branch
        %3545 = sbr.rel (%p3543) target = $region60
      $region59: #{tpu_custom_call.1} parent=55 // pred_region
        %p3546 = scmp.lt.s32.totalorder %s19, 1
        %s3547 = scalar_select %p3546, %s19, 1
        %s3548 = smul.addr %s3547, 8
        %s3549 = scalar_lea.vmem %s7, %s3548
      $region60: #{tpu_custom_call.1} parent=55 // pred_fallthru
        _
    $region56: #{tpu_custom_call.1} parent=5 // pred_fallthru
      _
  $region6: #{tpu_custom_call.1} parent=0 // loop_footer
    %s17 = sadd.s32 1, %s13
  $region7: #{tpu_custom_call.1} parent=0 // loop_footer_branch
    %12 = sbr.rel target = $region3
  $region8: #{tpu_custom_call.1} parent=0 // loop_exit
    _

</llo_original>
